<compile_context>
chip_gen: v7x
topology: tpu7x:2x2x1
jax: 0.10.0
libtpu: 0.0.40
codegen_flags: <defaults>
</compile_context>

<pallas_src>
import jax
import jax.numpy as jnp
from jax.experimental import pallas as pl
from jax.experimental.pallas import tpu as pltpu  # noqa: F401  (TPU backend)

# Small, forward-consistent shapes.
B, S, D = 2, 8, 32
NUM_HEADS = 4
HEAD_DIM = D // NUM_HEADS
D_FF = 64
NUM_LAYERS = 2
EPS = 1e-5
SCALE = 1.0 / float(HEAD_DIM) ** 0.5


def _layernorm(h, gamma, beta):
    mu = jnp.mean(h, axis=-1, keepdims=True)
    var = jnp.mean(jnp.square(h - mu), axis=-1, keepdims=True)
    return (h - mu) * jax.lax.rsqrt(var + EPS) * gamma + beta


def encoder_kernel(x_ref,
                   wqkv_ref, bqkv_ref, wo_ref, bo_ref,
                   g1_ref, be1_ref,
                   w1_ref, bb1_ref, w2_ref, bb2_ref,
                   g2_ref, be2_ref,
                   o_ref):
    x = x_ref[...].astype(jnp.float32)            # (B*S, D), resident in VMEM

    wqkv = wqkv_ref[...]
    bqkv = bqkv_ref[...]
    wo = wo_ref[...]
    bo = bo_ref[...]
    g1 = g1_ref[...]
    be1 = be1_ref[...]
    w1 = w1_ref[...]
    bb1 = bb1_ref[...]
    w2 = w2_ref[...]
    bb2 = bb2_ref[...]
    g2 = g2_ref[...]
    be2 = be2_ref[...]

    # All layers share identical parameters (deepcopy semantics), so the whole
    # stack is statically unrolled inside one kernel invocation with the
    # activations never leaving on-chip memory between layers.
    for _ in range(NUM_LAYERS):                    # static unroll, NUM_LAYERS=2
        # --- fused QKV projection: one MXU push instead of three -----------
        # Q columns of wqkv/bqkv are pre-scaled by 1/sqrt(head_dim).
        qkv = jnp.dot(x, wqkv, preferred_element_type=jnp.float32) + bqkv

        # --- multi-head self-attention (per batch element) -----------------
        batch_outs = []
        for b in range(B):                         # static loops, static slices
            row0 = b * S
            acc = bo                               # (1, D) broadcasts to (S, D)
            for h in range(NUM_HEADS):
                q_lo = h * HEAD_DIM
                k_lo = D + h * HEAD_DIM
                v_lo = 2 * D + h * HEAD_DIM
                qh = qkv[row0:row0 + S, q_lo:q_lo + HEAD_DIM]   # (S, Dh)
                kh = qkv[row0:row0 + S, k_lo:k_lo + HEAD_DIM]
                vh = qkv[row0:row0 + S, v_lo:v_lo + HEAD_DIM]
                s = jnp.dot(qh, kh.T, preferred_element_type=jnp.float32)
                s = s - jnp.max(s, axis=-1, keepdims=True)
                p = jnp.exp(s)
                p = p * pl.reciprocal(jnp.sum(p, axis=-1, keepdims=True),
                                      approx=True)               # EUP divide
                head = jnp.dot(p, vh, preferred_element_type=jnp.float32)
                # Fold the output projection per head: head @ W_O[h-rows, :]
                # accumulates straight into (S, D) — no lane concatenate.
                acc = acc + jnp.dot(
                    head, wo[h * HEAD_DIM:(h + 1) * HEAD_DIM, :],
                    preferred_element_type=jnp.float32)
            batch_outs.append(acc)
        attn = jnp.concatenate(batch_outs, axis=0)  # sublane concat -> (B*S, D)

        # --- residual + LayerNorm 1 (post-norm) -----------------------------
        h1 = _layernorm(x + attn, g1, be1)

        # --- feed-forward: Linear -> ReLU -> Linear --------------------------
        f = jnp.dot(h1, w1, preferred_element_type=jnp.float32) + bb1
        f = jnp.maximum(f, 0.0)
        f = jnp.dot(f, w2, preferred_element_type=jnp.float32) + bb2

        # --- residual + LayerNorm 2 ------------------------------------------
        x = _layernorm(h1 + f, g2, be2)

    o_ref[...] = x.astype(o_ref.dtype)


def encoder(x, packed_params):
    """Apply the full NUM_LAYERS encoder stack in a single pallas_call."""
    bsz, seq, dim = x.shape
    x2d = x.reshape(bsz * seq, dim)
    out2d = pl.pallas_call(
        encoder_kernel,
        out_shape=jax.ShapeDtypeStruct(x2d.shape, x2d.dtype),
        # No grid: single invocation, every operand lives fully in VMEM.
    )(x2d, *packed_params)
    return out2d.reshape(bsz, seq, dim)


def init_layer_params(key):
    ks = jax.random.split(key, 6)

    def w(k, shape):
        return jax.random.normal(k, shape, jnp.float32) * 0.02

    zD = jnp.zeros((1, D), jnp.float32)
    oD = jnp.ones((1, D), jnp.float32)
    zF = jnp.zeros((1, D_FF), jnp.float32)

    return dict(
        wq=w(ks[0], (D, D)), bq=zD,
        wk=w(ks[1], (D, D)), bk=zD,
        wv=w(ks[2], (D, D)), bv=zD,
        wo=w(ks[3], (D, D)), bo=zD,
        g1=oD, be1=zD,
        w1=w(ks[4], (D, D_FF)), bb1=zF,
        w2=w(ks[5], (D_FF, D)), bb2=zD,
        g2=oD, be2=zD,
    )


def pack_params(p):
    # Fold the 1/sqrt(head_dim) attention scale into the Q projection (one-time)
    # and pack Q/K/V into a single (D, 3D) weight / (1, 3D) bias.
    wqkv = jnp.concatenate([p["wq"] * SCALE, p["wk"], p["wv"]], axis=1)
    bqkv = jnp.concatenate([p["bq"] * SCALE, p["bk"], p["bv"]], axis=1)
    return [wqkv, bqkv, p["wo"], p["bo"],
            p["g1"], p["be1"],
            p["w1"], p["bb1"], p["w2"], p["bb2"],
            p["g2"], p["be2"]]


if __name__ == "__main__":
    key = jax.random.PRNGKey(0)
    kx, kp = jax.random.split(key)
    x = jax.random.normal(kx, (B, S, D), jnp.float32)
    packed = pack_params(init_layer_params(kp))

    out = encoder(x, packed)
    out = jax.block_until_ready(out)
    assert out.shape == (B, S, D)
    assert bool(jnp.all(jnp.isfinite(out)))
    print("KERNEL_OK")
</pallas_src>

<mosaic_0001>
module attributes {stable_mosaic.version = 11 : i64} {
  func.func @encoder_kernel(%arg0: memref<16x32xf32, #tpu.memory_space<vmem>>, %arg1: memref<32x96xf32, #tpu.memory_space<vmem>>, %arg2: memref<1x96xf32, #tpu.memory_space<vmem>>, %arg3: memref<32x32xf32, #tpu.memory_space<vmem>>, %arg4: memref<1x32xf32, #tpu.memory_space<vmem>>, %arg5: memref<1x32xf32, #tpu.memory_space<vmem>>, %arg6: memref<1x32xf32, #tpu.memory_space<vmem>>, %arg7: memref<32x64xf32, #tpu.memory_space<vmem>>, %arg8: memref<1x64xf32, #tpu.memory_space<vmem>>, %arg9: memref<64x32xf32, #tpu.memory_space<vmem>>, %arg10: memref<1x32xf32, #tpu.memory_space<vmem>>, %arg11: memref<1x32xf32, #tpu.memory_space<vmem>>, %arg12: memref<1x32xf32, #tpu.memory_space<vmem>>, %arg13: memref<16x32xf32, #tpu.memory_space<vmem>>) attributes {dimension_semantics = [], scalar_prefetch = 0 : i64, scratch_operands = 0 : i64, tpu.core_type = #tpu.core_type<tc>} {
    %c0 = arith.constant 0 : index
    %c0_0 = arith.constant 0 : index
    %0 = vector.load %arg0[%c0, %c0_0] : memref<16x32xf32, #tpu.memory_space<vmem>>, vector<16x32xf32>
    %c0_1 = arith.constant 0 : index
    %c0_2 = arith.constant 0 : index
    %1 = vector.load %arg1[%c0_1, %c0_2] : memref<32x96xf32, #tpu.memory_space<vmem>>, vector<32x96xf32>
    %c0_3 = arith.constant 0 : index
    %c0_4 = arith.constant 0 : index
    %2 = vector.load %arg2[%c0_3, %c0_4] : memref<1x96xf32, #tpu.memory_space<vmem>>, vector<1x96xf32>
    %c0_5 = arith.constant 0 : index
    %c0_6 = arith.constant 0 : index
    %3 = vector.load %arg3[%c0_5, %c0_6] : memref<32x32xf32, #tpu.memory_space<vmem>>, vector<32x32xf32>
    %c0_7 = arith.constant 0 : index
    %c0_8 = arith.constant 0 : index
    %4 = vector.load %arg4[%c0_7, %c0_8] : memref<1x32xf32, #tpu.memory_space<vmem>>, vector<1x32xf32>
    %c0_9 = arith.constant 0 : index
    %c0_10 = arith.constant 0 : index
    %5 = vector.load %arg5[%c0_9, %c0_10] : memref<1x32xf32, #tpu.memory_space<vmem>>, vector<1x32xf32>
    %c0_11 = arith.constant 0 : index
    %c0_12 = arith.constant 0 : index
    %6 = vector.load %arg6[%c0_11, %c0_12] : memref<1x32xf32, #tpu.memory_space<vmem>>, vector<1x32xf32>
    %c0_13 = arith.constant 0 : index
    %c0_14 = arith.constant 0 : index
    %7 = vector.load %arg7[%c0_13, %c0_14] : memref<32x64xf32, #tpu.memory_space<vmem>>, vector<32x64xf32>
    %c0_15 = arith.constant 0 : index
    %c0_16 = arith.constant 0 : index
    %8 = vector.load %arg8[%c0_15, %c0_16] : memref<1x64xf32, #tpu.memory_space<vmem>>, vector<1x64xf32>
    %c0_17 = arith.constant 0 : index
    %c0_18 = arith.constant 0 : index
    %9 = vector.load %arg9[%c0_17, %c0_18] : memref<64x32xf32, #tpu.memory_space<vmem>>, vector<64x32xf32>
    %c0_19 = arith.constant 0 : index
    %c0_20 = arith.constant 0 : index
    %10 = vector.load %arg10[%c0_19, %c0_20] : memref<1x32xf32, #tpu.memory_space<vmem>>, vector<1x32xf32>
    %c0_21 = arith.constant 0 : index
    %c0_22 = arith.constant 0 : index
    %11 = vector.load %arg11[%c0_21, %c0_22] : memref<1x32xf32, #tpu.memory_space<vmem>>, vector<1x32xf32>
    %c0_23 = arith.constant 0 : index
    %c0_24 = arith.constant 0 : index
    %12 = vector.load %arg12[%c0_23, %c0_24] : memref<1x32xf32, #tpu.memory_space<vmem>>, vector<1x32xf32>
    %cst = arith.constant dense<0.000000e+00> : vector<16x96xf32>
    %13 = tpu.matmul %0, %1, %cst {dimension_numbers = #tpu.dot_dimension_numbers<[1], [0], [0], [1], [0, 0, 1, 1], [], []>} : vector<16x32xf32>, vector<32x96xf32>, vector<16x96xf32> -> vector<16x96xf32>
    %14 = vector.broadcast %2 : vector<1x96xf32> to vector<16x96xf32>
    %15 = arith.addf %13, %14 : vector<16x96xf32>
    %16 = vector.extract_strided_slice %15 {offsets = [0, 0], sizes = [8, 8], strides = [1, 1]} : vector<16x96xf32> to vector<8x8xf32>
    %17 = vector.extract_strided_slice %15 {offsets = [0, 32], sizes = [8, 8], strides = [1, 1]} : vector<16x96xf32> to vector<8x8xf32>
    %18 = vector.extract_strided_slice %15 {offsets = [0, 64], sizes = [8, 8], strides = [1, 1]} : vector<16x96xf32> to vector<8x8xf32>
    %19 = tpu.transpose %17, [1, 0] : vector<8x8xf32> -> vector<8x8xf32>
    %cst_25 = arith.constant dense<0.000000e+00> : vector<8x8xf32>
    %20 = tpu.matmul %16, %19, %cst_25 {dimension_numbers = #tpu.dot_dimension_numbers<[1], [0], [0], [1], [0, 0, 1, 1], [], []>} : vector<8x8xf32>, vector<8x8xf32>, vector<8x8xf32> -> vector<8x8xf32>
    %cst_26 = arith.constant dense<0xFF800000> : vector<8xf32>
    %21 = vector.multi_reduction <maximumf>, %20, %cst_26 [1] : vector<8x8xf32> to vector<8xf32>
    %22 = vector.shape_cast %21 : vector<8xf32> to vector<8x1xf32>
    %23 = vector.broadcast %22 : vector<8x1xf32> to vector<8x8xf32>
    %24 = arith.subf %20, %23 : vector<8x8xf32>
    %25 = math.exp %24 : vector<8x8xf32>
    %cst_27 = arith.constant dense<0.000000e+00> : vector<8xf32>
    %26 = vector.multi_reduction <add>, %25, %cst_27 [1] : vector<8x8xf32> to vector<8xf32>
    %27 = vector.shape_cast %26 : vector<8xf32> to vector<8x1xf32>
    %28 = tpu.reciprocal %27 {approx = true} : vector<8x1xf32> -> vector<8x1xf32>
    %29 = vector.broadcast %28 : vector<8x1xf32> to vector<8x8xf32>
    %30 = arith.mulf %25, %29 : vector<8x8xf32>
    %cst_28 = arith.constant dense<0.000000e+00> : vector<8x8xf32>
    %31 = tpu.matmul %30, %18, %cst_28 {dimension_numbers = #tpu.dot_dimension_numbers<[1], [0], [0], [1], [0, 0, 1, 1], [], []>} : vector<8x8xf32>, vector<8x8xf32>, vector<8x8xf32> -> vector<8x8xf32>
    %32 = vector.extract_strided_slice %3 {offsets = [0, 0], sizes = [8, 32], strides = [1, 1]} : vector<32x32xf32> to vector<8x32xf32>
    %cst_29 = arith.constant dense<0.000000e+00> : vector<8x32xf32>
    %33 = tpu.matmul %31, %32, %cst_29 {dimension_numbers = #tpu.dot_dimension_numbers<[1], [0], [0], [1], [0, 0, 1, 1], [], []>} : vector<8x8xf32>, vector<8x32xf32>, vector<8x32xf32> -> vector<8x32xf32>
    %34 = vector.broadcast %4 : vector<1x32xf32> to vector<8x32xf32>
    %35 = arith.addf %34, %33 : vector<8x32xf32>
    %36 = vector.extract_strided_slice %15 {offsets = [0, 8], sizes = [8, 8], strides = [1, 1]} : vector<16x96xf32> to vector<8x8xf32>
    %37 = vector.extract_strided_slice %15 {offsets = [0, 40], sizes = [8, 8], strides = [1, 1]} : vector<16x96xf32> to vector<8x8xf32>
    %38 = vector.extract_strided_slice %15 {offsets = [0, 72], sizes = [8, 8], strides = [1, 1]} : vector<16x96xf32> to vector<8x8xf32>
    %39 = tpu.transpose %37, [1, 0] : vector<8x8xf32> -> vector<8x8xf32>
    %cst_30 = arith.constant dense<0.000000e+00> : vector<8x8xf32>
    %40 = tpu.matmul %36, %39, %cst_30 {dimension_numbers = #tpu.dot_dimension_numbers<[1], [0], [0], [1], [0, 0, 1, 1], [], []>} : vector<8x8xf32>, vector<8x8xf32>, vector<8x8xf32> -> vector<8x8xf32>
    %cst_31 = arith.constant dense<0xFF800000> : vector<8xf32>
    %41 = vector.multi_reduction <maximumf>, %40, %cst_31 [1] : vector<8x8xf32> to vector<8xf32>
    %42 = vector.shape_cast %41 : vector<8xf32> to vector<8x1xf32>
    %43 = vector.broadcast %42 : vector<8x1xf32> to vector<8x8xf32>
    %44 = arith.subf %40, %43 : vector<8x8xf32>
    %45 = math.exp %44 : vector<8x8xf32>
    %cst_32 = arith.constant dense<0.000000e+00> : vector<8xf32>
    %46 = vector.multi_reduction <add>, %45, %cst_32 [1] : vector<8x8xf32> to vector<8xf32>
    %47 = vector.shape_cast %46 : vector<8xf32> to vector<8x1xf32>
    %48 = tpu.reciprocal %47 {approx = true} : vector<8x1xf32> -> vector<8x1xf32>
    %49 = vector.broadcast %48 : vector<8x1xf32> to vector<8x8xf32>
    %50 = arith.mulf %45, %49 : vector<8x8xf32>
    %cst_33 = arith.constant dense<0.000000e+00> : vector<8x8xf32>
    %51 = tpu.matmul %50, %38, %cst_33 {dimension_numbers = #tpu.dot_dimension_numbers<[1], [0], [0], [1], [0, 0, 1, 1], [], []>} : vector<8x8xf32>, vector<8x8xf32>, vector<8x8xf32> -> vector<8x8xf32>
    %52 = vector.extract_strided_slice %3 {offsets = [8, 0], sizes = [8, 32], strides = [1, 1]} : vector<32x32xf32> to vector<8x32xf32>
    %cst_34 = arith.constant dense<0.000000e+00> : vector<8x32xf32>
    %53 = tpu.matmul %51, %52, %cst_34 {dimension_numbers = #tpu.dot_dimension_numbers<[1], [0], [0], [1], [0, 0, 1, 1], [], []>} : vector<8x8xf32>, vector<8x32xf32>, vector<8x32xf32> -> vector<8x32xf32>
    %54 = arith.addf %35, %53 : vector<8x32xf32>
    %55 = vector.extract_strided_slice %15 {offsets = [0, 16], sizes = [8, 8], strides = [1, 1]} : vector<16x96xf32> to vector<8x8xf32>
    %56 = vector.extract_strided_slice %15 {offsets = [0, 48], sizes = [8, 8], strides = [1, 1]} : vector<16x96xf32> to vector<8x8xf32>
    %57 = vector.extract_strided_slice %15 {offsets = [0, 80], sizes = [8, 8], strides = [1, 1]} : vector<16x96xf32> to vector<8x8xf32>
    %58 = tpu.transpose %56, [1, 0] : vector<8x8xf32> -> vector<8x8xf32>
    %cst_35 = arith.constant dense<0.000000e+00> : vector<8x8xf32>
    %59 = tpu.matmul %55, %58, %cst_35 {dimension_numbers = #tpu.dot_dimension_numbers<[1], [0], [0], [1], [0, 0, 1, 1], [], []>} : vector<8x8xf32>, vector<8x8xf32>, vector<8x8xf32> -> vector<8x8xf32>
    %cst_36 = arith.constant dense<0xFF800000> : vector<8xf32>
    %60 = vector.multi_reduction <maximumf>, %59, %cst_36 [1] : vector<8x8xf32> to vector<8xf32>
    %61 = vector.shape_cast %60 : vector<8xf32> to vector<8x1xf32>
    %62 = vector.broadcast %61 : vector<8x1xf32> to vector<8x8xf32>
    %63 = arith.subf %59, %62 : vector<8x8xf32>
    %64 = math.exp %63 : vector<8x8xf32>
    %cst_37 = arith.constant dense<0.000000e+00> : vector<8xf32>
    %65 = vector.multi_reduction <add>, %64, %cst_37 [1] : vector<8x8xf32> to vector<8xf32>
    %66 = vector.shape_cast %65 : vector<8xf32> to vector<8x1xf32>
    %67 = tpu.reciprocal %66 {approx = true} : vector<8x1xf32> -> vector<8x1xf32>
    %68 = vector.broadcast %67 : vector<8x1xf32> to vector<8x8xf32>
    %69 = arith.mulf %64, %68 : vector<8x8xf32>
    %cst_38 = arith.constant dense<0.000000e+00> : vector<8x8xf32>
    %70 = tpu.matmul %69, %57, %cst_38 {dimension_numbers = #tpu.dot_dimension_numbers<[1], [0], [0], [1], [0, 0, 1, 1], [], []>} : vector<8x8xf32>, vector<8x8xf32>, vector<8x8xf32> -> vector<8x8xf32>
    %71 = vector.extract_strided_slice %3 {offsets = [16, 0], sizes = [8, 32], strides = [1, 1]} : vector<32x32xf32> to vector<8x32xf32>
    %cst_39 = arith.constant dense<0.000000e+00> : vector<8x32xf32>
    %72 = tpu.matmul %70, %71, %cst_39 {dimension_numbers = #tpu.dot_dimension_numbers<[1], [0], [0], [1], [0, 0, 1, 1], [], []>} : vector<8x8xf32>, vector<8x32xf32>, vector<8x32xf32> -> vector<8x32xf32>
    %73 = arith.addf %54, %72 : vector<8x32xf32>
    %74 = vector.extract_strided_slice %15 {offsets = [0, 24], sizes = [8, 8], strides = [1, 1]} : vector<16x96xf32> to vector<8x8xf32>
    %75 = vector.extract_strided_slice %15 {offsets = [0, 56], sizes = [8, 8], strides = [1, 1]} : vector<16x96xf32> to vector<8x8xf32>
    %76 = vector.extract_strided_slice %15 {offsets = [0, 88], sizes = [8, 8], strides = [1, 1]} : vector<16x96xf32> to vector<8x8xf32>
    %77 = tpu.transpose %75, [1, 0] : vector<8x8xf32> -> vector<8x8xf32>
    %cst_40 = arith.constant dense<0.000000e+00> : vector<8x8xf32>
    %78 = tpu.matmul %74, %77, %cst_40 {dimension_numbers = #tpu.dot_dimension_numbers<[1], [0], [0], [1], [0, 0, 1, 1], [], []>} : vector<8x8xf32>, vector<8x8xf32>, vector<8x8xf32> -> vector<8x8xf32>
    %cst_41 = arith.constant dense<0xFF800000> : vector<8xf32>
    %79 = vector.multi_reduction <maximumf>, %78, %cst_41 [1] : vector<8x8xf32> to vector<8xf32>
    %80 = vector.shape_cast %79 : vector<8xf32> to vector<8x1xf32>
    %81 = vector.broadcast %80 : vector<8x1xf32> to vector<8x8xf32>
    %82 = arith.subf %78, %81 : vector<8x8xf32>
    %83 = math.exp %82 : vector<8x8xf32>
    %cst_42 = arith.constant dense<0.000000e+00> : vector<8xf32>
    %84 = vector.multi_reduction <add>, %83, %cst_42 [1] : vector<8x8xf32> to vector<8xf32>
    %85 = vector.shape_cast %84 : vector<8xf32> to vector<8x1xf32>
    %86 = tpu.reciprocal %85 {approx = true} : vector<8x1xf32> -> vector<8x1xf32>
    %87 = vector.broadcast %86 : vector<8x1xf32> to vector<8x8xf32>
    %88 = arith.mulf %83, %87 : vector<8x8xf32>
    %cst_43 = arith.constant dense<0.000000e+00> : vector<8x8xf32>
    %89 = tpu.matmul %88, %76, %cst_43 {dimension_numbers = #tpu.dot_dimension_numbers<[1], [0], [0], [1], [0, 0, 1, 1], [], []>} : vector<8x8xf32>, vector<8x8xf32>, vector<8x8xf32> -> vector<8x8xf32>
    %90 = vector.extract_strided_slice %3 {offsets = [24, 0], sizes = [8, 32], strides = [1, 1]} : vector<32x32xf32> to vector<8x32xf32>
    %cst_44 = arith.constant dense<0.000000e+00> : vector<8x32xf32>
    %91 = tpu.matmul %89, %90, %cst_44 {dimension_numbers = #tpu.dot_dimension_numbers<[1], [0], [0], [1], [0, 0, 1, 1], [], []>} : vector<8x8xf32>, vector<8x32xf32>, vector<8x32xf32> -> vector<8x32xf32>
    %92 = arith.addf %73, %91 : vector<8x32xf32>
    %93 = vector.extract_strided_slice %15 {offsets = [8, 0], sizes = [8, 8], strides = [1, 1]} : vector<16x96xf32> to vector<8x8xf32>
    %94 = vector.extract_strided_slice %15 {offsets = [8, 32], sizes = [8, 8], strides = [1, 1]} : vector<16x96xf32> to vector<8x8xf32>
    %95 = vector.extract_strided_slice %15 {offsets = [8, 64], sizes = [8, 8], strides = [1, 1]} : vector<16x96xf32> to vector<8x8xf32>
    %96 = tpu.transpose %94, [1, 0] : vector<8x8xf32> -> vector<8x8xf32>
    %cst_45 = arith.constant dense<0.000000e+00> : vector<8x8xf32>
    %97 = tpu.matmul %93, %96, %cst_45 {dimension_numbers = #tpu.dot_dimension_numbers<[1], [0], [0], [1], [0, 0, 1, 1], [], []>} : vector<8x8xf32>, vector<8x8xf32>, vector<8x8xf32> -> vector<8x8xf32>
    %cst_46 = arith.constant dense<0xFF800000> : vector<8xf32>
    %98 = vector.multi_reduction <maximumf>, %97, %cst_46 [1] : vector<8x8xf32> to vector<8xf32>
    %99 = vector.shape_cast %98 : vector<8xf32> to vector<8x1xf32>
    %100 = vector.broadcast %99 : vector<8x1xf32> to vector<8x8xf32>
    %101 = arith.subf %97, %100 : vector<8x8xf32>
    %102 = math.exp %101 : vector<8x8xf32>
    %cst_47 = arith.constant dense<0.000000e+00> : vector<8xf32>
    %103 = vector.multi_reduction <add>, %102, %cst_47 [1] : vector<8x8xf32> to vector<8xf32>
    %104 = vector.shape_cast %103 : vector<8xf32> to vector<8x1xf32>
    %105 = tpu.reciprocal %104 {approx = true} : vector<8x1xf32> -> vector<8x1xf32>
    %106 = vector.broadcast %105 : vector<8x1xf32> to vector<8x8xf32>
    %107 = arith.mulf %102, %106 : vector<8x8xf32>
    %cst_48 = arith.constant dense<0.000000e+00> : vector<8x8xf32>
    %108 = tpu.matmul %107, %95, %cst_48 {dimension_numbers = #tpu.dot_dimension_numbers<[1], [0], [0], [1], [0, 0, 1, 1], [], []>} : vector<8x8xf32>, vector<8x8xf32>, vector<8x8xf32> -> vector<8x8xf32>
    %109 = vector.extract_strided_slice %3 {offsets = [0, 0], sizes = [8, 32], strides = [1, 1]} : vector<32x32xf32> to vector<8x32xf32>
    %cst_49 = arith.constant dense<0.000000e+00> : vector<8x32xf32>
    %110 = tpu.matmul %108, %109, %cst_49 {dimension_numbers = #tpu.dot_dimension_numbers<[1], [0], [0], [1], [0, 0, 1, 1], [], []>} : vector<8x8xf32>, vector<8x32xf32>, vector<8x32xf32> -> vector<8x32xf32>
    %111 = vector.broadcast %4 : vector<1x32xf32> to vector<8x32xf32>
    %112 = arith.addf %111, %110 : vector<8x32xf32>
    %113 = vector.extract_strided_slice %15 {offsets = [8, 8], sizes = [8, 8], strides = [1, 1]} : vector<16x96xf32> to vector<8x8xf32>
    %114 = vector.extract_strided_slice %15 {offsets = [8, 40], sizes = [8, 8], strides = [1, 1]} : vector<16x96xf32> to vector<8x8xf32>
    %115 = vector.extract_strided_slice %15 {offsets = [8, 72], sizes = [8, 8], strides = [1, 1]} : vector<16x96xf32> to vector<8x8xf32>
    %116 = tpu.transpose %114, [1, 0] : vector<8x8xf32> -> vector<8x8xf32>
    %cst_50 = arith.constant dense<0.000000e+00> : vector<8x8xf32>
    %117 = tpu.matmul %113, %116, %cst_50 {dimension_numbers = #tpu.dot_dimension_numbers<[1], [0], [0], [1], [0, 0, 1, 1], [], []>} : vector<8x8xf32>, vector<8x8xf32>, vector<8x8xf32> -> vector<8x8xf32>
    %cst_51 = arith.constant dense<0xFF800000> : vector<8xf32>
    %118 = vector.multi_reduction <maximumf>, %117, %cst_51 [1] : vector<8x8xf32> to vector<8xf32>
    %119 = vector.shape_cast %118 : vector<8xf32> to vector<8x1xf32>
    %120 = vector.broadcast %119 : vector<8x1xf32> to vector<8x8xf32>
    %121 = arith.subf %117, %120 : vector<8x8xf32>
    %122 = math.exp %121 : vector<8x8xf32>
    %cst_52 = arith.constant dense<0.000000e+00> : vector<8xf32>
    %123 = vector.multi_reduction <add>, %122, %cst_52 [1] : vector<8x8xf32> to vector<8xf32>
    %124 = vector.shape_cast %123 : vector<8xf32> to vector<8x1xf32>
    %125 = tpu.reciprocal %124 {approx = true} : vector<8x1xf32> -> vector<8x1xf32>
    %126 = vector.broadcast %125 : vector<8x1xf32> to vector<8x8xf32>
    %127 = arith.mulf %122, %126 : vector<8x8xf32>
    %cst_53 = arith.constant dense<0.000000e+00> : vector<8x8xf32>
    %128 = tpu.matmul %127, %115, %cst_53 {dimension_numbers = #tpu.dot_dimension_numbers<[1], [0], [0], [1], [0, 0, 1, 1], [], []>} : vector<8x8xf32>, vector<8x8xf32>, vector<8x8xf32> -> vector<8x8xf32>
    %129 = vector.extract_strided_slice %3 {offsets = [8, 0], sizes = [8, 32], strides = [1, 1]} : vector<32x32xf32> to vector<8x32xf32>
    %cst_54 = arith.constant dense<0.000000e+00> : vector<8x32xf32>
    %130 = tpu.matmul %128, %129, %cst_54 {dimension_numbers = #tpu.dot_dimension_numbers<[1], [0], [0], [1], [0, 0, 1, 1], [], []>} : vector<8x8xf32>, vector<8x32xf32>, vector<8x32xf32> -> vector<8x32xf32>
    %131 = arith.addf %112, %130 : vector<8x32xf32>
    %132 = vector.extract_strided_slice %15 {offsets = [8, 16], sizes = [8, 8], strides = [1, 1]} : vector<16x96xf32> to vector<8x8xf32>
    %133 = vector.extract_strided_slice %15 {offsets = [8, 48], sizes = [8, 8], strides = [1, 1]} : vector<16x96xf32> to vector<8x8xf32>
    %134 = vector.extract_strided_slice %15 {offsets = [8, 80], sizes = [8, 8], strides = [1, 1]} : vector<16x96xf32> to vector<8x8xf32>
    %135 = tpu.transpose %133, [1, 0] : vector<8x8xf32> -> vector<8x8xf32>
    %cst_55 = arith.constant dense<0.000000e+00> : vector<8x8xf32>
    %136 = tpu.matmul %132, %135, %cst_55 {dimension_numbers = #tpu.dot_dimension_numbers<[1], [0], [0], [1], [0, 0, 1, 1], [], []>} : vector<8x8xf32>, vector<8x8xf32>, vector<8x8xf32> -> vector<8x8xf32>
    %cst_56 = arith.constant dense<0xFF800000> : vector<8xf32>
    %137 = vector.multi_reduction <maximumf>, %136, %cst_56 [1] : vector<8x8xf32> to vector<8xf32>
    %138 = vector.shape_cast %137 : vector<8xf32> to vector<8x1xf32>
    %139 = vector.broadcast %138 : vector<8x1xf32> to vector<8x8xf32>
    %140 = arith.subf %136, %139 : vector<8x8xf32>
    %141 = math.exp %140 : vector<8x8xf32>
    %cst_57 = arith.constant dense<0.000000e+00> : vector<8xf32>
    %142 = vector.multi_reduction <add>, %141, %cst_57 [1] : vector<8x8xf32> to vector<8xf32>
    %143 = vector.shape_cast %142 : vector<8xf32> to vector<8x1xf32>
    %144 = tpu.reciprocal %143 {approx = true} : vector<8x1xf32> -> vector<8x1xf32>
    %145 = vector.broadcast %144 : vector<8x1xf32> to vector<8x8xf32>
    %146 = arith.mulf %141, %145 : vector<8x8xf32>
    %cst_58 = arith.constant dense<0.000000e+00> : vector<8x8xf32>
    %147 = tpu.matmul %146, %134, %cst_58 {dimension_numbers = #tpu.dot_dimension_numbers<[1], [0], [0], [1], [0, 0, 1, 1], [], []>} : vector<8x8xf32>, vector<8x8xf32>, vector<8x8xf32> -> vector<8x8xf32>
    %148 = vector.extract_strided_slice %3 {offsets = [16, 0], sizes = [8, 32], strides = [1, 1]} : vector<32x32xf32> to vector<8x32xf32>
    %cst_59 = arith.constant dense<0.000000e+00> : vector<8x32xf32>
    %149 = tpu.matmul %147, %148, %cst_59 {dimension_numbers = #tpu.dot_dimension_numbers<[1], [0], [0], [1], [0, 0, 1, 1], [], []>} : vector<8x8xf32>, vector<8x32xf32>, vector<8x32xf32> -> vector<8x32xf32>
    %150 = arith.addf %131, %149 : vector<8x32xf32>
    %151 = vector.extract_strided_slice %15 {offsets = [8, 24], sizes = [8, 8], strides = [1, 1]} : vector<16x96xf32> to vector<8x8xf32>
    %152 = vector.extract_strided_slice %15 {offsets = [8, 56], sizes = [8, 8], strides = [1, 1]} : vector<16x96xf32> to vector<8x8xf32>
    %153 = vector.extract_strided_slice %15 {offsets = [8, 88], sizes = [8, 8], strides = [1, 1]} : vector<16x96xf32> to vector<8x8xf32>
    %154 = tpu.transpose %152, [1, 0] : vector<8x8xf32> -> vector<8x8xf32>
    %cst_60 = arith.constant dense<0.000000e+00> : vector<8x8xf32>
    %155 = tpu.matmul %151, %154, %cst_60 {dimension_numbers = #tpu.dot_dimension_numbers<[1], [0], [0], [1], [0, 0, 1, 1], [], []>} : vector<8x8xf32>, vector<8x8xf32>, vector<8x8xf32> -> vector<8x8xf32>
    %cst_61 = arith.constant dense<0xFF800000> : vector<8xf32>
    %156 = vector.multi_reduction <maximumf>, %155, %cst_61 [1] : vector<8x8xf32> to vector<8xf32>
    %157 = vector.shape_cast %156 : vector<8xf32> to vector<8x1xf32>
    %158 = vector.broadcast %157 : vector<8x1xf32> to vector<8x8xf32>
    %159 = arith.subf %155, %158 : vector<8x8xf32>
    %160 = math.exp %159 : vector<8x8xf32>
    %cst_62 = arith.constant dense<0.000000e+00> : vector<8xf32>
    %161 = vector.multi_reduction <add>, %160, %cst_62 [1] : vector<8x8xf32> to vector<8xf32>
    %162 = vector.shape_cast %161 : vector<8xf32> to vector<8x1xf32>
    %163 = tpu.reciprocal %162 {approx = true} : vector<8x1xf32> -> vector<8x1xf32>
    %164 = vector.broadcast %163 : vector<8x1xf32> to vector<8x8xf32>
    %165 = arith.mulf %160, %164 : vector<8x8xf32>
    %cst_63 = arith.constant dense<0.000000e+00> : vector<8x8xf32>
    %166 = tpu.matmul %165, %153, %cst_63 {dimension_numbers = #tpu.dot_dimension_numbers<[1], [0], [0], [1], [0, 0, 1, 1], [], []>} : vector<8x8xf32>, vector<8x8xf32>, vector<8x8xf32> -> vector<8x8xf32>
    %167 = vector.extract_strided_slice %3 {offsets = [24, 0], sizes = [8, 32], strides = [1, 1]} : vector<32x32xf32> to vector<8x32xf32>
    %cst_64 = arith.constant dense<0.000000e+00> : vector<8x32xf32>
    %168 = tpu.matmul %166, %167, %cst_64 {dimension_numbers = #tpu.dot_dimension_numbers<[1], [0], [0], [1], [0, 0, 1, 1], [], []>} : vector<8x8xf32>, vector<8x32xf32>, vector<8x32xf32> -> vector<8x32xf32>
    %169 = arith.addf %150, %168 : vector<8x32xf32>
    %170 = tpu.concatenate %92, %169 in 0 : vector<8x32xf32>, vector<8x32xf32> -> vector<16x32xf32>
    %171 = arith.addf %0, %170 : vector<16x32xf32>
    %cst_65 = arith.constant dense<0.000000e+00> : vector<16xf32>
    %172 = vector.multi_reduction <add>, %171, %cst_65 [1] : vector<16x32xf32> to vector<16xf32>
    %173 = vector.shape_cast %172 : vector<16xf32> to vector<16x1xf32>
    %cst_66 = arith.constant 3.200000e+01 : f32
    %174 = vector.broadcast %cst_66 : f32 to vector<16x1xf32>
    %175 = arith.divf %173, %174 : vector<16x1xf32>
    %176 = vector.broadcast %175 : vector<16x1xf32> to vector<16x32xf32>
    %177 = arith.subf %171, %176 : vector<16x32xf32>
    %178 = arith.mulf %177, %177 : vector<16x32xf32>
    %cst_67 = arith.constant dense<0.000000e+00> : vector<16xf32>
    %179 = vector.multi_reduction <add>, %178, %cst_67 [1] : vector<16x32xf32> to vector<16xf32>
    %180 = vector.shape_cast %179 : vector<16xf32> to vector<16x1xf32>
    %cst_68 = arith.constant 3.200000e+01 : f32
    %181 = vector.broadcast %cst_68 : f32 to vector<16x1xf32>
    %182 = arith.divf %180, %181 : vector<16x1xf32>
    %183 = vector.broadcast %175 : vector<16x1xf32> to vector<16x32xf32>
    %184 = arith.subf %171, %183 : vector<16x32xf32>
    %cst_69 = arith.constant 9.99999974E-6 : f32
    %185 = vector.broadcast %cst_69 : f32 to vector<16x1xf32>
    %186 = arith.addf %182, %185 : vector<16x1xf32>
    %187 = math.rsqrt %186 : vector<16x1xf32>
    %188 = vector.broadcast %187 : vector<16x1xf32> to vector<16x32xf32>
    %189 = arith.mulf %184, %188 : vector<16x32xf32>
    %190 = vector.broadcast %5 : vector<1x32xf32> to vector<16x32xf32>
    %191 = arith.mulf %189, %190 : vector<16x32xf32>
    %192 = vector.broadcast %6 : vector<1x32xf32> to vector<16x32xf32>
    %193 = arith.addf %191, %192 : vector<16x32xf32>
    %cst_70 = arith.constant dense<0.000000e+00> : vector<16x64xf32>
    %194 = tpu.matmul %193, %7, %cst_70 {dimension_numbers = #tpu.dot_dimension_numbers<[1], [0], [0], [1], [0, 0, 1, 1], [], []>} : vector<16x32xf32>, vector<32x64xf32>, vector<16x64xf32> -> vector<16x64xf32>
    %195 = vector.broadcast %8 : vector<1x64xf32> to vector<16x64xf32>
    %196 = arith.addf %194, %195 : vector<16x64xf32>
    %cst_71 = arith.constant 0.000000e+00 : f32
    %197 = vector.broadcast %cst_71 : f32 to vector<16x64xf32>
    %198 = arith.maximumf %196, %197 : vector<16x64xf32>
    %cst_72 = arith.constant dense<0.000000e+00> : vector<16x32xf32>
    %199 = tpu.matmul %198, %9, %cst_72 {dimension_numbers = #tpu.dot_dimension_numbers<[1], [0], [0], [1], [0, 0, 1, 1], [], []>} : vector<16x64xf32>, vector<64x32xf32>, vector<16x32xf32> -> vector<16x32xf32>
    %200 = vector.broadcast %10 : vector<1x32xf32> to vector<16x32xf32>
    %201 = arith.addf %199, %200 : vector<16x32xf32>
    %202 = arith.addf %193, %201 : vector<16x32xf32>
    %cst_73 = arith.constant dense<0.000000e+00> : vector<16xf32>
    %203 = vector.multi_reduction <add>, %202, %cst_73 [1] : vector<16x32xf32> to vector<16xf32>
    %204 = vector.shape_cast %203 : vector<16xf32> to vector<16x1xf32>
    %cst_74 = arith.constant 3.200000e+01 : f32
    %205 = vector.broadcast %cst_74 : f32 to vector<16x1xf32>
    %206 = arith.divf %204, %205 : vector<16x1xf32>
    %207 = vector.broadcast %206 : vector<16x1xf32> to vector<16x32xf32>
    %208 = arith.subf %202, %207 : vector<16x32xf32>
    %209 = arith.mulf %208, %208 : vector<16x32xf32>
    %cst_75 = arith.constant dense<0.000000e+00> : vector<16xf32>
    %210 = vector.multi_reduction <add>, %209, %cst_75 [1] : vector<16x32xf32> to vector<16xf32>
    %211 = vector.shape_cast %210 : vector<16xf32> to vector<16x1xf32>
    %cst_76 = arith.constant 3.200000e+01 : f32
    %212 = vector.broadcast %cst_76 : f32 to vector<16x1xf32>
    %213 = arith.divf %211, %212 : vector<16x1xf32>
    %214 = vector.broadcast %206 : vector<16x1xf32> to vector<16x32xf32>
    %215 = arith.subf %202, %214 : vector<16x32xf32>
    %cst_77 = arith.constant 9.99999974E-6 : f32
    %216 = vector.broadcast %cst_77 : f32 to vector<16x1xf32>
    %217 = arith.addf %213, %216 : vector<16x1xf32>
    %218 = math.rsqrt %217 : vector<16x1xf32>
    %219 = vector.broadcast %218 : vector<16x1xf32> to vector<16x32xf32>
    %220 = arith.mulf %215, %219 : vector<16x32xf32>
    %221 = vector.broadcast %11 : vector<1x32xf32> to vector<16x32xf32>
    %222 = arith.mulf %220, %221 : vector<16x32xf32>
    %223 = vector.broadcast %12 : vector<1x32xf32> to vector<16x32xf32>
    %224 = arith.addf %222, %223 : vector<16x32xf32>
    %cst_78 = arith.constant dense<0.000000e+00> : vector<16x96xf32>
    %225 = tpu.matmul %224, %1, %cst_78 {dimension_numbers = #tpu.dot_dimension_numbers<[1], [0], [0], [1], [0, 0, 1, 1], [], []>} : vector<16x32xf32>, vector<32x96xf32>, vector<16x96xf32> -> vector<16x96xf32>
    %226 = vector.broadcast %2 : vector<1x96xf32> to vector<16x96xf32>
    %227 = arith.addf %225, %226 : vector<16x96xf32>
    %228 = vector.extract_strided_slice %227 {offsets = [0, 0], sizes = [8, 8], strides = [1, 1]} : vector<16x96xf32> to vector<8x8xf32>
    %229 = vector.extract_strided_slice %227 {offsets = [0, 32], sizes = [8, 8], strides = [1, 1]} : vector<16x96xf32> to vector<8x8xf32>
    %230 = vector.extract_strided_slice %227 {offsets = [0, 64], sizes = [8, 8], strides = [1, 1]} : vector<16x96xf32> to vector<8x8xf32>
    %231 = tpu.transpose %229, [1, 0] : vector<8x8xf32> -> vector<8x8xf32>
    %cst_79 = arith.constant dense<0.000000e+00> : vector<8x8xf32>
    %232 = tpu.matmul %228, %231, %cst_79 {dimension_numbers = #tpu.dot_dimension_numbers<[1], [0], [0], [1], [0, 0, 1, 1], [], []>} : vector<8x8xf32>, vector<8x8xf32>, vector<8x8xf32> -> vector<8x8xf32>
    %cst_80 = arith.constant dense<0xFF800000> : vector<8xf32>
    %233 = vector.multi_reduction <maximumf>, %232, %cst_80 [1] : vector<8x8xf32> to vector<8xf32>
    %234 = vector.shape_cast %233 : vector<8xf32> to vector<8x1xf32>
    %235 = vector.broadcast %234 : vector<8x1xf32> to vector<8x8xf32>
    %236 = arith.subf %232, %235 : vector<8x8xf32>
    %237 = math.exp %236 : vector<8x8xf32>
    %cst_81 = arith.constant dense<0.000000e+00> : vector<8xf32>
    %238 = vector.multi_reduction <add>, %237, %cst_81 [1] : vector<8x8xf32> to vector<8xf32>
    %239 = vector.shape_cast %238 : vector<8xf32> to vector<8x1xf32>
    %240 = tpu.reciprocal %239 {approx = true} : vector<8x1xf32> -> vector<8x1xf32>
    %241 = vector.broadcast %240 : vector<8x1xf32> to vector<8x8xf32>
    %242 = arith.mulf %237, %241 : vector<8x8xf32>
    %cst_82 = arith.constant dense<0.000000e+00> : vector<8x8xf32>
    %243 = tpu.matmul %242, %230, %cst_82 {dimension_numbers = #tpu.dot_dimension_numbers<[1], [0], [0], [1], [0, 0, 1, 1], [], []>} : vector<8x8xf32>, vector<8x8xf32>, vector<8x8xf32> -> vector<8x8xf32>
    %244 = vector.extract_strided_slice %3 {offsets = [0, 0], sizes = [8, 32], strides = [1, 1]} : vector<32x32xf32> to vector<8x32xf32>
    %cst_83 = arith.constant dense<0.000000e+00> : vector<8x32xf32>
    %245 = tpu.matmul %243, %244, %cst_83 {dimension_numbers = #tpu.dot_dimension_numbers<[1], [0], [0], [1], [0, 0, 1, 1], [], []>} : vector<8x8xf32>, vector<8x32xf32>, vector<8x32xf32> -> vector<8x32xf32>
    %246 = vector.broadcast %4 : vector<1x32xf32> to vector<8x32xf32>
    %247 = arith.addf %246, %245 : vector<8x32xf32>
    %248 = vector.extract_strided_slice %227 {offsets = [0, 8], sizes = [8, 8], strides = [1, 1]} : vector<16x96xf32> to vector<8x8xf32>
    %249 = vector.extract_strided_slice %227 {offsets = [0, 40], sizes = [8, 8], strides = [1, 1]} : vector<16x96xf32> to vector<8x8xf32>
    %250 = vector.extract_strided_slice %227 {offsets = [0, 72], sizes = [8, 8], strides = [1, 1]} : vector<16x96xf32> to vector<8x8xf32>
    %251 = tpu.transpose %249, [1, 0] : vector<8x8xf32> -> vector<8x8xf32>
    %cst_84 = arith.constant dense<0.000000e+00> : vector<8x8xf32>
    %252 = tpu.matmul %248, %251, %cst_84 {dimension_numbers = #tpu.dot_dimension_numbers<[1], [0], [0], [1], [0, 0, 1, 1], [], []>} : vector<8x8xf32>, vector<8x8xf32>, vector<8x8xf32> -> vector<8x8xf32>
    %cst_85 = arith.constant dense<0xFF800000> : vector<8xf32>
    %253 = vector.multi_reduction <maximumf>, %252, %cst_85 [1] : vector<8x8xf32> to vector<8xf32>
    %254 = vector.shape_cast %253 : vector<8xf32> to vector<8x1xf32>
    %255 = vector.broadcast %254 : vector<8x1xf32> to vector<8x8xf32>
    %256 = arith.subf %252, %255 : vector<8x8xf32>
    %257 = math.exp %256 : vector<8x8xf32>
    %cst_86 = arith.constant dense<0.000000e+00> : vector<8xf32>
    %258 = vector.multi_reduction <add>, %257, %cst_86 [1] : vector<8x8xf32> to vector<8xf32>
    %259 = vector.shape_cast %258 : vector<8xf32> to vector<8x1xf32>
    %260 = tpu.reciprocal %259 {approx = true} : vector<8x1xf32> -> vector<8x1xf32>
    %261 = vector.broadcast %260 : vector<8x1xf32> to vector<8x8xf32>
    %262 = arith.mulf %257, %261 : vector<8x8xf32>
    %cst_87 = arith.constant dense<0.000000e+00> : vector<8x8xf32>
    %263 = tpu.matmul %262, %250, %cst_87 {dimension_numbers = #tpu.dot_dimension_numbers<[1], [0], [0], [1], [0, 0, 1, 1], [], []>} : vector<8x8xf32>, vector<8x8xf32>, vector<8x8xf32> -> vector<8x8xf32>
    %264 = vector.extract_strided_slice %3 {offsets = [8, 0], sizes = [8, 32], strides = [1, 1]} : vector<32x32xf32> to vector<8x32xf32>
    %cst_88 = arith.constant dense<0.000000e+00> : vector<8x32xf32>
    %265 = tpu.matmul %263, %264, %cst_88 {dimension_numbers = #tpu.dot_dimension_numbers<[1], [0], [0], [1], [0, 0, 1, 1], [], []>} : vector<8x8xf32>, vector<8x32xf32>, vector<8x32xf32> -> vector<8x32xf32>
    %266 = arith.addf %247, %265 : vector<8x32xf32>
    %267 = vector.extract_strided_slice %227 {offsets = [0, 16], sizes = [8, 8], strides = [1, 1]} : vector<16x96xf32> to vector<8x8xf32>
    %268 = vector.extract_strided_slice %227 {offsets = [0, 48], sizes = [8, 8], strides = [1, 1]} : vector<16x96xf32> to vector<8x8xf32>
    %269 = vector.extract_strided_slice %227 {offsets = [0, 80], sizes = [8, 8], strides = [1, 1]} : vector<16x96xf32> to vector<8x8xf32>
    %270 = tpu.transpose %268, [1, 0] : vector<8x8xf32> -> vector<8x8xf32>
    %cst_89 = arith.constant dense<0.000000e+00> : vector<8x8xf32>
    %271 = tpu.matmul %267, %270, %cst_89 {dimension_numbers = #tpu.dot_dimension_numbers<[1], [0], [0], [1], [0, 0, 1, 1], [], []>} : vector<8x8xf32>, vector<8x8xf32>, vector<8x8xf32> -> vector<8x8xf32>
    %cst_90 = arith.constant dense<0xFF800000> : vector<8xf32>
    %272 = vector.multi_reduction <maximumf>, %271, %cst_90 [1] : vector<8x8xf32> to vector<8xf32>
    %273 = vector.shape_cast %272 : vector<8xf32> to vector<8x1xf32>
    %274 = vector.broadcast %273 : vector<8x1xf32> to vector<8x8xf32>
    %275 = arith.subf %271, %274 : vector<8x8xf32>
    %276 = math.exp %275 : vector<8x8xf32>
    %cst_91 = arith.constant dense<0.000000e+00> : vector<8xf32>
    %277 = vector.multi_reduction <add>, %276, %cst_91 [1] : vector<8x8xf32> to vector<8xf32>
    %278 = vector.shape_cast %277 : vector<8xf32> to vector<8x1xf32>
    %279 = tpu.reciprocal %278 {approx = true} : vector<8x1xf32> -> vector<8x1xf32>
    %280 = vector.broadcast %279 : vector<8x1xf32> to vector<8x8xf32>
    %281 = arith.mulf %276, %280 : vector<8x8xf32>
    %cst_92 = arith.constant dense<0.000000e+00> : vector<8x8xf32>
    %282 = tpu.matmul %281, %269, %cst_92 {dimension_numbers = #tpu.dot_dimension_numbers<[1], [0], [0], [1], [0, 0, 1, 1], [], []>} : vector<8x8xf32>, vector<8x8xf32>, vector<8x8xf32> -> vector<8x8xf32>
    %283 = vector.extract_strided_slice %3 {offsets = [16, 0], sizes = [8, 32], strides = [1, 1]} : vector<32x32xf32> to vector<8x32xf32>
    %cst_93 = arith.constant dense<0.000000e+00> : vector<8x32xf32>
    %284 = tpu.matmul %282, %283, %cst_93 {dimension_numbers = #tpu.dot_dimension_numbers<[1], [0], [0], [1], [0, 0, 1, 1], [], []>} : vector<8x8xf32>, vector<8x32xf32>, vector<8x32xf32> -> vector<8x32xf32>
    %285 = arith.addf %266, %284 : vector<8x32xf32>
    %286 = vector.extract_strided_slice %227 {offsets = [0, 24], sizes = [8, 8], strides = [1, 1]} : vector<16x96xf32> to vector<8x8xf32>
    %287 = vector.extract_strided_slice %227 {offsets = [0, 56], sizes = [8, 8], strides = [1, 1]} : vector<16x96xf32> to vector<8x8xf32>
    %288 = vector.extract_strided_slice %227 {offsets = [0, 88], sizes = [8, 8], strides = [1, 1]} : vector<16x96xf32> to vector<8x8xf32>
    %289 = tpu.transpose %287, [1, 0] : vector<8x8xf32> -> vector<8x8xf32>
    %cst_94 = arith.constant dense<0.000000e+00> : vector<8x8xf32>
    %290 = tpu.matmul %286, %289, %cst_94 {dimension_numbers = #tpu.dot_dimension_numbers<[1], [0], [0], [1], [0, 0, 1, 1], [], []>} : vector<8x8xf32>, vector<8x8xf32>, vector<8x8xf32> -> vector<8x8xf32>
    %cst_95 = arith.constant dense<0xFF800000> : vector<8xf32>
    %291 = vector.multi_reduction <maximumf>, %290, %cst_95 [1] : vector<8x8xf32> to vector<8xf32>
    %292 = vector.shape_cast %291 : vector<8xf32> to vector<8x1xf32>
    %293 = vector.broadcast %292 : vector<8x1xf32> to vector<8x8xf32>
    %294 = arith.subf %290, %293 : vector<8x8xf32>
    %295 = math.exp %294 : vector<8x8xf32>
    %cst_96 = arith.constant dense<0.000000e+00> : vector<8xf32>
    %296 = vector.multi_reduction <add>, %295, %cst_96 [1] : vector<8x8xf32> to vector<8xf32>
    %297 = vector.shape_cast %296 : vector<8xf32> to vector<8x1xf32>
    %298 = tpu.reciprocal %297 {approx = true} : vector<8x1xf32> -> vector<8x1xf32>
    %299 = vector.broadcast %298 : vector<8x1xf32> to vector<8x8xf32>
    %300 = arith.mulf %295, %299 : vector<8x8xf32>
    %cst_97 = arith.constant dense<0.000000e+00> : vector<8x8xf32>
    %301 = tpu.matmul %300, %288, %cst_97 {dimension_numbers = #tpu.dot_dimension_numbers<[1], [0], [0], [1], [0, 0, 1, 1], [], []>} : vector<8x8xf32>, vector<8x8xf32>, vector<8x8xf32> -> vector<8x8xf32>
    %302 = vector.extract_strided_slice %3 {offsets = [24, 0], sizes = [8, 32], strides = [1, 1]} : vector<32x32xf32> to vector<8x32xf32>
    %cst_98 = arith.constant dense<0.000000e+00> : vector<8x32xf32>
    %303 = tpu.matmul %301, %302, %cst_98 {dimension_numbers = #tpu.dot_dimension_numbers<[1], [0], [0], [1], [0, 0, 1, 1], [], []>} : vector<8x8xf32>, vector<8x32xf32>, vector<8x32xf32> -> vector<8x32xf32>
    %304 = arith.addf %285, %303 : vector<8x32xf32>
    %305 = vector.extract_strided_slice %227 {offsets = [8, 0], sizes = [8, 8], strides = [1, 1]} : vector<16x96xf32> to vector<8x8xf32>
    %306 = vector.extract_strided_slice %227 {offsets = [8, 32], sizes = [8, 8], strides = [1, 1]} : vector<16x96xf32> to vector<8x8xf32>
    %307 = vector.extract_strided_slice %227 {offsets = [8, 64], sizes = [8, 8], strides = [1, 1]} : vector<16x96xf32> to vector<8x8xf32>
    %308 = tpu.transpose %306, [1, 0] : vector<8x8xf32> -> vector<8x8xf32>
    %cst_99 = arith.constant dense<0.000000e+00> : vector<8x8xf32>
    %309 = tpu.matmul %305, %308, %cst_99 {dimension_numbers = #tpu.dot_dimension_numbers<[1], [0], [0], [1], [0, 0, 1, 1], [], []>} : vector<8x8xf32>, vector<8x8xf32>, vector<8x8xf32> -> vector<8x8xf32>
    %cst_100 = arith.constant dense<0xFF800000> : vector<8xf32>
    %310 = vector.multi_reduction <maximumf>, %309, %cst_100 [1] : vector<8x8xf32> to vector<8xf32>
    %311 = vector.shape_cast %310 : vector<8xf32> to vector<8x1xf32>
    %312 = vector.broadcast %311 : vector<8x1xf32> to vector<8x8xf32>
    %313 = arith.subf %309, %312 : vector<8x8xf32>
    %314 = math.exp %313 : vector<8x8xf32>
    %cst_101 = arith.constant dense<0.000000e+00> : vector<8xf32>
    %315 = vector.multi_reduction <add>, %314, %cst_101 [1] : vector<8x8xf32> to vector<8xf32>
    %316 = vector.shape_cast %315 : vector<8xf32> to vector<8x1xf32>
    %317 = tpu.reciprocal %316 {approx = true} : vector<8x1xf32> -> vector<8x1xf32>
    %318 = vector.broadcast %317 : vector<8x1xf32> to vector<8x8xf32>
    %319 = arith.mulf %314, %318 : vector<8x8xf32>
    %cst_102 = arith.constant dense<0.000000e+00> : vector<8x8xf32>
    %320 = tpu.matmul %319, %307, %cst_102 {dimension_numbers = #tpu.dot_dimension_numbers<[1], [0], [0], [1], [0, 0, 1, 1], [], []>} : vector<8x8xf32>, vector<8x8xf32>, vector<8x8xf32> -> vector<8x8xf32>
    %321 = vector.extract_strided_slice %3 {offsets = [0, 0], sizes = [8, 32], strides = [1, 1]} : vector<32x32xf32> to vector<8x32xf32>
    %cst_103 = arith.constant dense<0.000000e+00> : vector<8x32xf32>
    %322 = tpu.matmul %320, %321, %cst_103 {dimension_numbers = #tpu.dot_dimension_numbers<[1], [0], [0], [1], [0, 0, 1, 1], [], []>} : vector<8x8xf32>, vector<8x32xf32>, vector<8x32xf32> -> vector<8x32xf32>
    %323 = vector.broadcast %4 : vector<1x32xf32> to vector<8x32xf32>
    %324 = arith.addf %323, %322 : vector<8x32xf32>
    %325 = vector.extract_strided_slice %227 {offsets = [8, 8], sizes = [8, 8], strides = [1, 1]} : vector<16x96xf32> to vector<8x8xf32>
    %326 = vector.extract_strided_slice %227 {offsets = [8, 40], sizes = [8, 8], strides = [1, 1]} : vector<16x96xf32> to vector<8x8xf32>
    %327 = vector.extract_strided_slice %227 {offsets = [8, 72], sizes = [8, 8], strides = [1, 1]} : vector<16x96xf32> to vector<8x8xf32>
    %328 = tpu.transpose %326, [1, 0] : vector<8x8xf32> -> vector<8x8xf32>
    %cst_104 = arith.constant dense<0.000000e+00> : vector<8x8xf32>
    %329 = tpu.matmul %325, %328, %cst_104 {dimension_numbers = #tpu.dot_dimension_numbers<[1], [0], [0], [1], [0, 0, 1, 1], [], []>} : vector<8x8xf32>, vector<8x8xf32>, vector<8x8xf32> -> vector<8x8xf32>
    %cst_105 = arith.constant dense<0xFF800000> : vector<8xf32>
    %330 = vector.multi_reduction <maximumf>, %329, %cst_105 [1] : vector<8x8xf32> to vector<8xf32>
    %331 = vector.shape_cast %330 : vector<8xf32> to vector<8x1xf32>
    %332 = vector.broadcast %331 : vector<8x1xf32> to vector<8x8xf32>
    %333 = arith.subf %329, %332 : vector<8x8xf32>
    %334 = math.exp %333 : vector<8x8xf32>
    %cst_106 = arith.constant dense<0.000000e+00> : vector<8xf32>
    %335 = vector.multi_reduction <add>, %334, %cst_106 [1] : vector<8x8xf32> to vector<8xf32>
    %336 = vector.shape_cast %335 : vector<8xf32> to vector<8x1xf32>
    %337 = tpu.reciprocal %336 {approx = true} : vector<8x1xf32> -> vector<8x1xf32>
    %338 = vector.broadcast %337 : vector<8x1xf32> to vector<8x8xf32>
    %339 = arith.mulf %334, %338 : vector<8x8xf32>
    %cst_107 = arith.constant dense<0.000000e+00> : vector<8x8xf32>
    %340 = tpu.matmul %339, %327, %cst_107 {dimension_numbers = #tpu.dot_dimension_numbers<[1], [0], [0], [1], [0, 0, 1, 1], [], []>} : vector<8x8xf32>, vector<8x8xf32>, vector<8x8xf32> -> vector<8x8xf32>
    %341 = vector.extract_strided_slice %3 {offsets = [8, 0], sizes = [8, 32], strides = [1, 1]} : vector<32x32xf32> to vector<8x32xf32>
    %cst_108 = arith.constant dense<0.000000e+00> : vector<8x32xf32>
    %342 = tpu.matmul %340, %341, %cst_108 {dimension_numbers = #tpu.dot_dimension_numbers<[1], [0], [0], [1], [0, 0, 1, 1], [], []>} : vector<8x8xf32>, vector<8x32xf32>, vector<8x32xf32> -> vector<8x32xf32>
    %343 = arith.addf %324, %342 : vector<8x32xf32>
    %344 = vector.extract_strided_slice %227 {offsets = [8, 16], sizes = [8, 8], strides = [1, 1]} : vector<16x96xf32> to vector<8x8xf32>
    %345 = vector.extract_strided_slice %227 {offsets = [8, 48], sizes = [8, 8], strides = [1, 1]} : vector<16x96xf32> to vector<8x8xf32>
    %346 = vector.extract_strided_slice %227 {offsets = [8, 80], sizes = [8, 8], strides = [1, 1]} : vector<16x96xf32> to vector<8x8xf32>
    %347 = tpu.transpose %345, [1, 0] : vector<8x8xf32> -> vector<8x8xf32>
    %cst_109 = arith.constant dense<0.000000e+00> : vector<8x8xf32>
    %348 = tpu.matmul %344, %347, %cst_109 {dimension_numbers = #tpu.dot_dimension_numbers<[1], [0], [0], [1], [0, 0, 1, 1], [], []>} : vector<8x8xf32>, vector<8x8xf32>, vector<8x8xf32> -> vector<8x8xf32>
    %cst_110 = arith.constant dense<0xFF800000> : vector<8xf32>
    %349 = vector.multi_reduction <maximumf>, %348, %cst_110 [1] : vector<8x8xf32> to vector<8xf32>
    %350 = vector.shape_cast %349 : vector<8xf32> to vector<8x1xf32>
    %351 = vector.broadcast %350 : vector<8x1xf32> to vector<8x8xf32>
    %352 = arith.subf %348, %351 : vector<8x8xf32>
    %353 = math.exp %352 : vector<8x8xf32>
    %cst_111 = arith.constant dense<0.000000e+00> : vector<8xf32>
    %354 = vector.multi_reduction <add>, %353, %cst_111 [1] : vector<8x8xf32> to vector<8xf32>
    %355 = vector.shape_cast %354 : vector<8xf32> to vector<8x1xf32>
    %356 = tpu.reciprocal %355 {approx = true} : vector<8x1xf32> -> vector<8x1xf32>
    %357 = vector.broadcast %356 : vector<8x1xf32> to vector<8x8xf32>
    %358 = arith.mulf %353, %357 : vector<8x8xf32>
    %cst_112 = arith.constant dense<0.000000e+00> : vector<8x8xf32>
    %359 = tpu.matmul %358, %346, %cst_112 {dimension_numbers = #tpu.dot_dimension_numbers<[1], [0], [0], [1], [0, 0, 1, 1], [], []>} : vector<8x8xf32>, vector<8x8xf32>, vector<8x8xf32> -> vector<8x8xf32>
    %360 = vector.extract_strided_slice %3 {offsets = [16, 0], sizes = [8, 32], strides = [1, 1]} : vector<32x32xf32> to vector<8x32xf32>
    %cst_113 = arith.constant dense<0.000000e+00> : vector<8x32xf32>
    %361 = tpu.matmul %359, %360, %cst_113 {dimension_numbers = #tpu.dot_dimension_numbers<[1], [0], [0], [1], [0, 0, 1, 1], [], []>} : vector<8x8xf32>, vector<8x32xf32>, vector<8x32xf32> -> vector<8x32xf32>
    %362 = arith.addf %343, %361 : vector<8x32xf32>
    %363 = vector.extract_strided_slice %227 {offsets = [8, 24], sizes = [8, 8], strides = [1, 1]} : vector<16x96xf32> to vector<8x8xf32>
    %364 = vector.extract_strided_slice %227 {offsets = [8, 56], sizes = [8, 8], strides = [1, 1]} : vector<16x96xf32> to vector<8x8xf32>
    %365 = vector.extract_strided_slice %227 {offsets = [8, 88], sizes = [8, 8], strides = [1, 1]} : vector<16x96xf32> to vector<8x8xf32>
    %366 = tpu.transpose %364, [1, 0] : vector<8x8xf32> -> vector<8x8xf32>
    %cst_114 = arith.constant dense<0.000000e+00> : vector<8x8xf32>
    %367 = tpu.matmul %363, %366, %cst_114 {dimension_numbers = #tpu.dot_dimension_numbers<[1], [0], [0], [1], [0, 0, 1, 1], [], []>} : vector<8x8xf32>, vector<8x8xf32>, vector<8x8xf32> -> vector<8x8xf32>
    %cst_115 = arith.constant dense<0xFF800000> : vector<8xf32>
    %368 = vector.multi_reduction <maximumf>, %367, %cst_115 [1] : vector<8x8xf32> to vector<8xf32>
    %369 = vector.shape_cast %368 : vector<8xf32> to vector<8x1xf32>
    %370 = vector.broadcast %369 : vector<8x1xf32> to vector<8x8xf32>
    %371 = arith.subf %367, %370 : vector<8x8xf32>
    %372 = math.exp %371 : vector<8x8xf32>
    %cst_116 = arith.constant dense<0.000000e+00> : vector<8xf32>
    %373 = vector.multi_reduction <add>, %372, %cst_116 [1] : vector<8x8xf32> to vector<8xf32>
    %374 = vector.shape_cast %373 : vector<8xf32> to vector<8x1xf32>
    %375 = tpu.reciprocal %374 {approx = true} : vector<8x1xf32> -> vector<8x1xf32>
    %376 = vector.broadcast %375 : vector<8x1xf32> to vector<8x8xf32>
    %377 = arith.mulf %372, %376 : vector<8x8xf32>
    %cst_117 = arith.constant dense<0.000000e+00> : vector<8x8xf32>
    %378 = tpu.matmul %377, %365, %cst_117 {dimension_numbers = #tpu.dot_dimension_numbers<[1], [0], [0], [1], [0, 0, 1, 1], [], []>} : vector<8x8xf32>, vector<8x8xf32>, vector<8x8xf32> -> vector<8x8xf32>
    %379 = vector.extract_strided_slice %3 {offsets = [24, 0], sizes = [8, 32], strides = [1, 1]} : vector<32x32xf32> to vector<8x32xf32>
    %cst_118 = arith.constant dense<0.000000e+00> : vector<8x32xf32>
    %380 = tpu.matmul %378, %379, %cst_118 {dimension_numbers = #tpu.dot_dimension_numbers<[1], [0], [0], [1], [0, 0, 1, 1], [], []>} : vector<8x8xf32>, vector<8x32xf32>, vector<8x32xf32> -> vector<8x32xf32>
    %381 = arith.addf %362, %380 : vector<8x32xf32>
    %382 = tpu.concatenate %304, %381 in 0 : vector<8x32xf32>, vector<8x32xf32> -> vector<16x32xf32>
    %383 = arith.addf %224, %382 : vector<16x32xf32>
    %cst_119 = arith.constant dense<0.000000e+00> : vector<16xf32>
    %384 = vector.multi_reduction <add>, %383, %cst_119 [1] : vector<16x32xf32> to vector<16xf32>
    %385 = vector.shape_cast %384 : vector<16xf32> to vector<16x1xf32>
    %cst_120 = arith.constant 3.200000e+01 : f32
    %386 = vector.broadcast %cst_120 : f32 to vector<16x1xf32>
    %387 = arith.divf %385, %386 : vector<16x1xf32>
    %388 = vector.broadcast %387 : vector<16x1xf32> to vector<16x32xf32>
    %389 = arith.subf %383, %388 : vector<16x32xf32>
    %390 = arith.mulf %389, %389 : vector<16x32xf32>
    %cst_121 = arith.constant dense<0.000000e+00> : vector<16xf32>
    %391 = vector.multi_reduction <add>, %390, %cst_121 [1] : vector<16x32xf32> to vector<16xf32>
    %392 = vector.shape_cast %391 : vector<16xf32> to vector<16x1xf32>
    %cst_122 = arith.constant 3.200000e+01 : f32
    %393 = vector.broadcast %cst_122 : f32 to vector<16x1xf32>
    %394 = arith.divf %392, %393 : vector<16x1xf32>
    %395 = vector.broadcast %387 : vector<16x1xf32> to vector<16x32xf32>
    %396 = arith.subf %383, %395 : vector<16x32xf32>
    %cst_123 = arith.constant 9.99999974E-6 : f32
    %397 = vector.broadcast %cst_123 : f32 to vector<16x1xf32>
    %398 = arith.addf %394, %397 : vector<16x1xf32>
    %399 = math.rsqrt %398 : vector<16x1xf32>
    %400 = vector.broadcast %399 : vector<16x1xf32> to vector<16x32xf32>
    %401 = arith.mulf %396, %400 : vector<16x32xf32>
    %402 = vector.broadcast %5 : vector<1x32xf32> to vector<16x32xf32>
    %403 = arith.mulf %401, %402 : vector<16x32xf32>
    %404 = vector.broadcast %6 : vector<1x32xf32> to vector<16x32xf32>
    %405 = arith.addf %403, %404 : vector<16x32xf32>
    %cst_124 = arith.constant dense<0.000000e+00> : vector<16x64xf32>
    %406 = tpu.matmul %405, %7, %cst_124 {dimension_numbers = #tpu.dot_dimension_numbers<[1], [0], [0], [1], [0, 0, 1, 1], [], []>} : vector<16x32xf32>, vector<32x64xf32>, vector<16x64xf32> -> vector<16x64xf32>
    %407 = vector.broadcast %8 : vector<1x64xf32> to vector<16x64xf32>
    %408 = arith.addf %406, %407 : vector<16x64xf32>
    %cst_125 = arith.constant 0.000000e+00 : f32
    %409 = vector.broadcast %cst_125 : f32 to vector<16x64xf32>
    %410 = arith.maximumf %408, %409 : vector<16x64xf32>
    %cst_126 = arith.constant dense<0.000000e+00> : vector<16x32xf32>
    %411 = tpu.matmul %410, %9, %cst_126 {dimension_numbers = #tpu.dot_dimension_numbers<[1], [0], [0], [1], [0, 0, 1, 1], [], []>} : vector<16x64xf32>, vector<64x32xf32>, vector<16x32xf32> -> vector<16x32xf32>
    %412 = vector.broadcast %10 : vector<1x32xf32> to vector<16x32xf32>
    %413 = arith.addf %411, %412 : vector<16x32xf32>
    %414 = arith.addf %405, %413 : vector<16x32xf32>
    %cst_127 = arith.constant dense<0.000000e+00> : vector<16xf32>
    %415 = vector.multi_reduction <add>, %414, %cst_127 [1] : vector<16x32xf32> to vector<16xf32>
    %416 = vector.shape_cast %415 : vector<16xf32> to vector<16x1xf32>
    %cst_128 = arith.constant 3.200000e+01 : f32
    %417 = vector.broadcast %cst_128 : f32 to vector<16x1xf32>
    %418 = arith.divf %416, %417 : vector<16x1xf32>
    %419 = vector.broadcast %418 : vector<16x1xf32> to vector<16x32xf32>
    %420 = arith.subf %414, %419 : vector<16x32xf32>
    %421 = arith.mulf %420, %420 : vector<16x32xf32>
    %cst_129 = arith.constant dense<0.000000e+00> : vector<16xf32>
    %422 = vector.multi_reduction <add>, %421, %cst_129 [1] : vector<16x32xf32> to vector<16xf32>
    %423 = vector.shape_cast %422 : vector<16xf32> to vector<16x1xf32>
    %cst_130 = arith.constant 3.200000e+01 : f32
    %424 = vector.broadcast %cst_130 : f32 to vector<16x1xf32>
    %425 = arith.divf %423, %424 : vector<16x1xf32>
    %426 = vector.broadcast %418 : vector<16x1xf32> to vector<16x32xf32>
    %427 = arith.subf %414, %426 : vector<16x32xf32>
    %cst_131 = arith.constant 9.99999974E-6 : f32
    %428 = vector.broadcast %cst_131 : f32 to vector<16x1xf32>
    %429 = arith.addf %425, %428 : vector<16x1xf32>
    %430 = math.rsqrt %429 : vector<16x1xf32>
    %431 = vector.broadcast %430 : vector<16x1xf32> to vector<16x32xf32>
    %432 = arith.mulf %427, %431 : vector<16x32xf32>
    %433 = vector.broadcast %11 : vector<1x32xf32> to vector<16x32xf32>
    %434 = arith.mulf %432, %433 : vector<16x32xf32>
    %435 = vector.broadcast %12 : vector<1x32xf32> to vector<16x32xf32>
    %436 = arith.addf %434, %435 : vector<16x32xf32>
    %c0_132 = arith.constant 0 : index
    %c0_133 = arith.constant 0 : index
    %437 = vector.load %arg13[%c0_132, %c0_133] : memref<16x32xf32, #tpu.memory_space<vmem>>, vector<16x32xf32>
    tpu.vector_store %arg13[%c0_132, %c0_133], %436 {strides = array<i32>} : memref<16x32xf32, #tpu.memory_space<vmem>>, vector<16x32xf32>,
    return
  }
}

</mosaic_0001>

<llo_original>
// kernel: tpu_custom_call.1
$region0: #{tpu_custom_call.1}
  #allocation0 [shape = 'u32[]', space=smem, size = 0x4, offset = 0x4, fixed_abs, tag = 'smem constant byte address 0x4 - core index']
  #allocation1 [shape = 'u32[144,128]{1,0:T(1,128)}', space=vmem, size = 0x12000, scoped, tag = 'internal scratch']
  %s0 = inlined_call_operand.hbm [shape: f32[16,32], index: 0, kind: input, shape index: {}]
  %s1 = inlined_call_operand.vmem [shape: f32[32,96], index: 1, kind: input, shape index: {}]
  %s2 = inlined_call_operand.vmem [shape: f32[1,96], index: 2, kind: input, shape index: {}]
  %s3 = inlined_call_operand.vmem [shape: f32[32,32], index: 3, kind: input, shape index: {}]
  %s4 = inlined_call_operand.vmem [shape: f32[1,32], index: 4, kind: input, shape index: {}]
  %s5 = inlined_call_operand.hbm [shape: f32[1,32], index: 5, kind: input, shape index: {}]
  %s6 = inlined_call_operand.hbm [shape: f32[1,32], index: 6, kind: input, shape index: {}]
  %s7 = inlined_call_operand.vmem [shape: f32[32,64], index: 7, kind: input, shape index: {}]
  %s8 = inlined_call_operand.hbm [shape: f32[1,64], index: 8, kind: input, shape index: {}]
  %s9 = inlined_call_operand.vmem [shape: f32[64,32], index: 9, kind: input, shape index: {}]
  %s10 = inlined_call_operand.vmem [shape: f32[1,32], index: 10, kind: input, shape index: {}]
  %s11 = inlined_call_operand.vmem [shape: f32[1,32], index: 11, kind: input, shape index: {}]
  %s12 = inlined_call_operand.vmem [shape: f32[1,32], index: 12, kind: input, shape index: {}]
  %s13 = inlined_call_operand.hbm [shape: f32[16,32], index: 13, kind: output, shape index: {}]
  %s14 = sld [smem:[#allocation0]]
  $region78: #{tpu_custom_call.1} parent=0
    _
  %s16 = ssub.s32 1, %s14
  %s17 = scalar_select 0, %s16, %s14
  $region1: #{tpu_custom_call.1} parent=0
    #allocation2 [shape = 'u8[8192]{0}', space=vmem, size = 0x2000, scoped, tag = 'input window, operand 0, single buffered']
    #allocation3 [shape = 's32[1]{0}', space=sflag, size = 0x4, scoped, tag = 'scoped memory for tpu_custom_call.1']
    #allocation4 [shape = 's32[1]{0}', space=sflag, size = 0x4, scoped, tag = 'scoped memory for tpu_custom_call.1']
    #allocation5 [shape = 'u8[512]{0}', space=vmem, size = 0x400, scoped, tag = 'input window, operand 5, single buffered']
    #allocation6 [shape = 's32[1]{0}', space=sflag, size = 0x4, scoped, tag = 'scoped memory for tpu_custom_call.1']
    #allocation7 [shape = 'u8[512]{0}', space=vmem, size = 0x400, scoped, tag = 'input window, operand 6, single buffered']
    #allocation8 [shape = 'u8[512]{0}', space=vmem, size = 0x400, scoped, tag = 'input window, operand 8, single buffered']
    #allocation9 [shape = 's32[1]{0}', space=sflag, size = 0x4, scoped, tag = 'scoped memory for tpu_custom_call.1']
    #allocation10 [shape = 'u8[8192]{0}', space=vmem, size = 0x2000, scoped, tag = 'output window, operand 0, single buffered']
    %18 = vsyncpa [#allocation3], 0
    %19 = vsyncpa [#allocation6], 0
    %20 = vsyncpa [#allocation9], 0
    %21 = vsyncpa [#allocation4], 0
    // Predicated region
    $region2: #{tpu_custom_call.1} parent=1 // pred_check
      _
    $region3: #{tpu_custom_call.1} parent=1 // pred_check_branch
      %23 = sbr.rel (0) target = $region5
    $region4: #{tpu_custom_call.1} parent=1 // pred_region
      %s25 = ssub.s32 256, 256
      %26 = vsyncadd [#allocation3], %s25
      %s27 = sshll.u32 [#allocation2], 4
      %s28 = int_to_ptr.vmem [resolvable:$true] %s27
      %33 = dma.hbm_to_vmem [thread:$0]  %s0, 256, %s28, [#allocation3], 128, 128, 8
    $region5: #{tpu_custom_call.1} parent=1 // pred_fallthru
      _
    // Predicated region
    $region6: #{tpu_custom_call.1} parent=1 // pred_check
      _
    $region7: #{tpu_custom_call.1} parent=1 // pred_check_branch
      %35 = sbr.rel (0) target = $region9
    $region8: #{tpu_custom_call.1} parent=1 // pred_region
      _
    $region9: #{tpu_custom_call.1} parent=1 // pred_fallthru
      _
    // Predicated region
    $region10: #{tpu_custom_call.1} parent=1 // pred_check
      _
    $region11: #{tpu_custom_call.1} parent=1 // pred_check_branch
      %37 = sbr.rel (0) target = $region13
    $region12: #{tpu_custom_call.1} parent=1 // pred_region
      _
    $region13: #{tpu_custom_call.1} parent=1 // pred_fallthru
      _
    // Predicated region
    $region14: #{tpu_custom_call.1} parent=1 // pred_check
      _
    $region15: #{tpu_custom_call.1} parent=1 // pred_check_branch
      %39 = sbr.rel (0) target = $region17
    $region16: #{tpu_custom_call.1} parent=1 // pred_region
      _
    $region17: #{tpu_custom_call.1} parent=1 // pred_fallthru
      _
    // Predicated region
    $region18: #{tpu_custom_call.1} parent=1 // pred_check
      _
    $region19: #{tpu_custom_call.1} parent=1 // pred_check_branch
      %41 = sbr.rel (0) target = $region21
    $region20: #{tpu_custom_call.1} parent=1 // pred_region
      _
    $region21: #{tpu_custom_call.1} parent=1 // pred_fallthru
      _
    // Predicated region
    $region22: #{tpu_custom_call.1} parent=1 // pred_check
      _
    $region23: #{tpu_custom_call.1} parent=1 // pred_check_branch
      %43 = sbr.rel (0) target = $region25
    $region24: #{tpu_custom_call.1} parent=1 // pred_region
      %s45 = ssub.s32 16, 16
      %46 = vsyncadd [#allocation6], %s45
      %s48 = sshll.u32 [#allocation5], 4
      %s49 = int_to_ptr.vmem [resolvable:$true] %s48
      %51 = dma.hbm_to_vmem [thread:$0]  %s5, 16, %s49, [#allocation6]
    $region25: #{tpu_custom_call.1} parent=1 // pred_fallthru
      _
    // Predicated region
    $region26: #{tpu_custom_call.1} parent=1 // pred_check
      _
    $region27: #{tpu_custom_call.1} parent=1 // pred_check_branch
      %53 = sbr.rel (0) target = $region29
    $region28: #{tpu_custom_call.1} parent=1 // pred_region
      %s55 = ssub.s32 16, 16
      %56 = vsyncadd [#allocation6], %s55
      %s58 = sshll.u32 [#allocation7], 4
      %s59 = int_to_ptr.vmem [resolvable:$true] %s58
      %61 = dma.hbm_to_vmem [thread:$0]  %s6, 16, %s59, [#allocation6]
    $region29: #{tpu_custom_call.1} parent=1 // pred_fallthru
      _
    // Predicated region
    $region30: #{tpu_custom_call.1} parent=1 // pred_check
      _
    $region31: #{tpu_custom_call.1} parent=1 // pred_check_branch
      %63 = sbr.rel (0) target = $region33
    $region32: #{tpu_custom_call.1} parent=1 // pred_region
      _
    $region33: #{tpu_custom_call.1} parent=1 // pred_fallthru
      _
    // Predicated region
    $region34: #{tpu_custom_call.1} parent=1 // pred_check
      _
    $region35: #{tpu_custom_call.1} parent=1 // pred_check_branch
      %65 = sbr.rel (0) target = $region37
    $region36: #{tpu_custom_call.1} parent=1 // pred_region
      %s67 = ssub.s32 16, 16
      %68 = vsyncadd [#allocation9], %s67
      %s70 = sshll.u32 [#allocation8], 4
      %s71 = int_to_ptr.vmem [resolvable:$true] %s70
      %73 = dma.hbm_to_vmem [thread:$0]  %s8, 16, %s71, [#allocation9]
    $region37: #{tpu_custom_call.1} parent=1 // pred_fallthru
      _
    // Predicated region
    $region38: #{tpu_custom_call.1} parent=1 // pred_check
      _
    $region39: #{tpu_custom_call.1} parent=1 // pred_check_branch
      %75 = sbr.rel (0) target = $region41
    $region40: #{tpu_custom_call.1} parent=1 // pred_region
      _
    $region41: #{tpu_custom_call.1} parent=1 // pred_fallthru
      _
    // Predicated region
    $region42: #{tpu_custom_call.1} parent=1 // pred_check
      _
    $region43: #{tpu_custom_call.1} parent=1 // pred_check_branch
      %77 = sbr.rel (0) target = $region45
    $region44: #{tpu_custom_call.1} parent=1 // pred_region
      _
    $region45: #{tpu_custom_call.1} parent=1 // pred_fallthru
      _
    // Predicated region
    $region46: #{tpu_custom_call.1} parent=1 // pred_check
      _
    $region47: #{tpu_custom_call.1} parent=1 // pred_check_branch
      %79 = sbr.rel (0) target = $region49
    $region48: #{tpu_custom_call.1} parent=1 // pred_region
      _
    $region49: #{tpu_custom_call.1} parent=1 // pred_fallthru
      _
    // Predicated region
    $region50: #{tpu_custom_call.1} parent=1 // pred_check
      _
    $region51: #{tpu_custom_call.1} parent=1 // pred_check_branch
      %81 = sbr.rel (0) target = $region53
    $region52: #{tpu_custom_call.1} parent=1 // pred_region
      _
    $region53: #{tpu_custom_call.1} parent=1 // pred_fallthru
      _
    // Predicated region
    $region54: #{tpu_custom_call.1} parent=1 // pred_check
      _
    $region55: #{tpu_custom_call.1} parent=1 // pred_check_branch
      %83 = sbr.rel (0) target = $region57
    $region56: #{tpu_custom_call.1} parent=1 // pred_region
      %84 = dma.done [#allocation3], 256
    $region57: #{tpu_custom_call.1} parent=1 // pred_fallthru
      _
    // Predicated region
    $region58: #{tpu_custom_call.1} parent=1 // pred_check
      _
    $region59: #{tpu_custom_call.1} parent=1 // pred_check_branch
      %86 = sbr.rel (0) target = $region61
    $region60: #{tpu_custom_call.1} parent=1 // pred_region
      %87 = dma.done [#allocation6], 16
    $region61: #{tpu_custom_call.1} parent=1 // pred_fallthru
      _
    // Predicated region
    $region62: #{tpu_custom_call.1} parent=1 // pred_check
      _
    $region63: #{tpu_custom_call.1} parent=1 // pred_check_branch
      %89 = sbr.rel (0) target = $region65
    $region64: #{tpu_custom_call.1} parent=1 // pred_region
      %90 = dma.done [#allocation6], 16
    $region65: #{tpu_custom_call.1} parent=1 // pred_fallthru
      _
    // Predicated region
    $region66: #{tpu_custom_call.1} parent=1 // pred_check
      _
    $region67: #{tpu_custom_call.1} parent=1 // pred_check_branch
      %92 = sbr.rel (0) target = $region69
    $region68: #{tpu_custom_call.1} parent=1 // pred_region
      %93 = dma.done [#allocation9], 16
    $region69: #{tpu_custom_call.1} parent=1 // pred_fallthru
      _
    %v94 = vld [vmem:[#allocation2] sm:$0xff]
    %v95 = vld [vmem:[#allocation2 + $0x8] sm:$0xff]
    %v96 = vld [vmem:[%s1] sm:$0xff]
    %v97 = vld [vmem:[%s1 + $0x8] sm:$0xff]
    %v98 = vld [vmem:[%s1 + $0x10] sm:$0xff]
    %v99 = vld [vmem:[%s1 + $0x18] sm:$0xff]
    %v100 = vld [vmem:[%s2] sm:$0x1]
    %v101 = vld [vmem:[%s3] sm:$0xff]
    %v102 = vld [vmem:[%s3 + $0x8] sm:$0xff]
    %v103 = vld [vmem:[%s3 + $0x10] sm:$0xff]
    %v104 = vld [vmem:[%s3 + $0x18] sm:$0xff]
    %v105 = vld [vmem:[%s4] sm:$0x1]
    %v106 = vld [vmem:[#allocation5] sm:$0x1]
    %v107 = vld [vmem:[#allocation7] sm:$0x1]
    %v108 = vld [vmem:[%s7] sm:$0xff]
    %v109 = vld [vmem:[%s7 + $0x8] sm:$0xff]
    %v110 = vld [vmem:[%s7 + $0x10] sm:$0xff]
    %v111 = vld [vmem:[%s7 + $0x18] sm:$0xff]
    %v112 = vld [vmem:[#allocation8] sm:$0x1]
    %v113 = vld [vmem:[%s9] sm:$0xff]
    %v114 = vld [vmem:[%s9 + $0x8] sm:$0xff]
    %v115 = vld [vmem:[%s9 + $0x10] sm:$0xff]
    %v116 = vld [vmem:[%s9 + $0x18] sm:$0xff]
    %v117 = vld [vmem:[%s9 + $0x20] sm:$0xff]
    %v118 = vld [vmem:[%s9 + $0x28] sm:$0xff]
    %v119 = vld [vmem:[%s9 + $0x30] sm:$0xff]
    %v120 = vld [vmem:[%s9 + $0x38] sm:$0xff]
    %v121 = vld [vmem:[%s10] sm:$0x1]
    %v122 = vld [vmem:[%s11] sm:$0x1]
    %v123 = vld [vmem:[%s12] sm:$0x1]
    %v125 = vlaneseq
    %v126 = vshrl.u32 %v125, 7
    %v127 = vsub.s32 0, %v126
    %v128 = vrot.slane %v100, %v127
    %vm130 = vcmask 261120
    %v132 = vsel %vm130, %v94, 0
    %v135 = vsel %vm130, %v95, 0
    %137 = vmatprep.subr.mxu0 0.0
    %138 = vmatpush1.msra.mxu0 %v96
    %139 = vmatprep.subr.mxu0 0.0
    %140 = vmatpush1.msra.mxu0 %v97
    %141 = vmatprep.subr.mxu0 0.0
    %142 = vmatpush1.msra.mxu0 %v98
    %143 = vmatprep.subr.mxu0 0.0
    %144 = vmatpush1.msra.mxu0 %v99
    %145 = vmatprep.subr.mxu0 0.0
    %146 = vmatpush1.msra.mxu0 0.0
    %147 = vmatprep.subr.mxu0 0.0
    %148 = vmatpush1.msra.mxu0 0.0
    %149 = vmatprep.subr.mxu0 0.0
    %150 = vmatpush1.msra.mxu0 0.0
    %151 = vmatprep.subr.mxu0 0.0
    %152 = vmatpush1.msra.mxu0 0.0
    %153 = vmatprep.subr.mxu0 0.0
    %154 = vmatpush1.msra.mxu0 0.0
    %155 = vmatprep.subr.mxu0 0.0
    %156 = vmatpush1.msra.mxu0 0.0
    %157 = vmatprep.subr.mxu0 0.0
    %158 = vmatpush1.msra.mxu0 0.0
    %159 = vmatprep.subr.mxu0 0.0
    %160 = vmatpush1.msra.mxu0 0.0
    %161 = vmatprep.subr.mxu0 0.0
    %162 = vmatpush1.msra.mxu0 0.0
    %163 = vmatprep.subr.mxu0 0.0
    %164 = vmatpush1.msra.mxu0 0.0
    %165 = vmatprep.subr.mxu0 0.0
    %166 = vmatpush1.msra.mxu0 0.0
    %167 = vmatprep.subr.mxu0 0.0
    %168 = vmatpush1.msra.mxu0 0.0
    %169 = vmatprep.subr.mxu0 0.0
    %170 = vmatpush1.msra.mxu0 0.0
    %171 = vmatprep.subr.mxu0 0.0
    %172 = vmatpush1.msra.mxu0 0.0
    %173 = vmatprep.subr.mxu0 0.0
    %174 = vmatpush1.msra.mxu0 0.0
    %175 = vmatprep.subr.mxu0 0.0
    %176 = vmatpush1.msra.mxu0 0.0
    %177 = vmatprep.subr.mxu0 0.0
    %178 = vmatpush1.msra.mxu0 0.0
    %179 = vmatprep.subr.mxu0 0.0
    %180 = vmatpush1.msra.mxu0 0.0
    %181 = vmatprep.subr.mxu0 0.0
    %182 = vmatpush1.msra.mxu0 0.0
    %183 = vmatprep.subr.mxu0 0.0
    %184 = vmatpush1.msra.mxu0 0.0
    %185 = vmatprep.subr.mxu0 0.0
    %186 = vmatpush1.msra.mxu0 0.0
    %187 = vmatprep.subr.mxu0 0.0
    %188 = vmatpush1.msra.mxu0 0.0
    %189 = vmatprep.subr.mxu0 0.0
    %190 = vmatpush1.msra.mxu0 0.0
    %191 = vmatprep.subr.mxu0 0.0
    %192 = vmatpush1.msra.mxu0 0.0
    %193 = vmatprep.subr.mxu0 0.0
    %194 = vmatpush1.msra.mxu0 0.0
    %195 = vmatprep.subr.mxu0 0.0
    %196 = vmatpush1.msra.mxu0 0.0
    %197 = vmatprep.subr.mxu0 0.0
    %198 = vmatpush1.msra.mxu0 0.0
    %199 = vmatprep.subr.mxu0 0.0
    %200 = vmatpush1.msra.mxu0 0.0
    %201 = vmatprep.mubr.f32.mxu0 0.0
    %202 = vmatmul.mubr.f32.gmra.mrb[0].mxu0 %v132
    %v203 = vpop.f32.mrb[0].mxu0
    %v204 = vadd.f32 %v128, %v203
    %v205 = vpop.f32.mrb[0].mxu0
    %206 = vmatprep.mubr.f32.mxu0 0.0
    %207 = vmatmul.mubr.f32.gmra.mrb[0].mxu0 %v135
    %v208 = vpop.f32.mrb[0].mxu0
    %v209 = vadd.f32 %v128, %v208
    %v210 = vpop.f32.mrb[0].mxu0
    %211 = vdwg.mxu0
    %213 = vrot.lane.b32.xlu0 %v204, 96
    %v214 = vpop.permute.xlu0 %213
    %vm215 = vcmask 64512
    %v216 = vsel %vm215, %v204, 0
    %v218 = vsel %vm215, %v214, 0
    %220 = vmatprep.subr.mxu0 0.0
    %221 = vmatpush1.xpose.msra.mxu0 %v218
    %222 = vmatprep.subr.mxu0 0.0
    %223 = vmatpush1.xpose.msra.mxu0 0.0
    %224 = vmatprep.subr.mxu0 0.0
    %225 = vmatpush1.xpose.msra.mxu0 0.0
    %226 = vmatprep.subr.mxu0 0.0
    %227 = vmatpush1.xpose.msra.mxu0 0.0
    %228 = vmatprep.subr.mxu0 0.0
    %229 = vmatpush1.xpose.msra.mxu0 0.0
    %230 = vmatprep.subr.mxu0 0.0
    %231 = vmatpush1.xpose.msra.mxu0 0.0
    %232 = vmatprep.subr.mxu0 0.0
    %233 = vmatpush1.xpose.msra.mxu0 0.0
    %234 = vmatprep.subr.mxu0 0.0
    %235 = vmatpush1.xpose.msra.mxu0 0.0
    %236 = vmatprep.subr.mxu0 0.0
    %237 = vmatpush1.xpose.msra.mxu0 0.0
    %238 = vmatprep.subr.mxu0 0.0
    %239 = vmatpush1.xpose.msra.mxu0 0.0
    %240 = vmatprep.subr.mxu0 0.0
    %241 = vmatpush1.xpose.msra.mxu0 0.0
    %242 = vmatprep.subr.mxu0 0.0
    %243 = vmatpush1.xpose.msra.mxu0 0.0
    %244 = vmatprep.subr.mxu0 0.0
    %245 = vmatpush1.xpose.msra.mxu0 0.0
    %246 = vmatprep.subr.mxu0 0.0
    %247 = vmatpush1.xpose.msra.mxu0 0.0
    %248 = vmatprep.subr.mxu0 0.0
    %249 = vmatpush1.xpose.msra.mxu0 0.0
    %250 = vmatprep.subr.mxu0 0.0
    %251 = vmatpush1.xpose.msra.mxu0 0.0
    %252 = vmatprep.subr.mxu0 0.0
    %253 = vmatpush1.xpose.msra.mxu0 0.0
    %254 = vmatprep.subr.mxu0 0.0
    %255 = vmatpush1.xpose.msra.mxu0 0.0
    %256 = vmatprep.subr.mxu0 0.0
    %257 = vmatpush1.xpose.msra.mxu0 0.0
    %258 = vmatprep.subr.mxu0 0.0
    %259 = vmatpush1.xpose.msra.mxu0 0.0
    %260 = vmatprep.subr.mxu0 0.0
    %261 = vmatpush1.xpose.msra.mxu0 0.0
    %262 = vmatprep.subr.mxu0 0.0
    %263 = vmatpush1.xpose.msra.mxu0 0.0
    %264 = vmatprep.subr.mxu0 0.0
    %265 = vmatpush1.xpose.msra.mxu0 0.0
    %266 = vmatprep.subr.mxu0 0.0
    %267 = vmatpush1.xpose.msra.mxu0 0.0
    %268 = vmatprep.subr.mxu0 0.0
    %269 = vmatpush1.xpose.msra.mxu0 0.0
    %270 = vmatprep.subr.mxu0 0.0
    %271 = vmatpush1.xpose.msra.mxu0 0.0
    %272 = vmatprep.subr.mxu0 0.0
    %273 = vmatpush1.xpose.msra.mxu0 0.0
    %274 = vmatprep.subr.mxu0 0.0
    %275 = vmatpush1.xpose.msra.mxu0 0.0
    %276 = vmatprep.subr.mxu0 0.0
    %277 = vmatpush1.xpose.msra.mxu0 0.0
    %278 = vmatprep.subr.mxu0 0.0
    %279 = vmatpush1.xpose.msra.mxu0 0.0
    %280 = vmatprep.subr.mxu0 0.0
    %281 = vmatpush1.xpose.msra.mxu0 0.0
    %282 = vmatprep.subr.mxu0 0.0
    %283 = vmatpush1.xpose.msra.mxu0 0.0
    %284 = vmatprep.mubr.f32.mxu0 0.0
    %285 = vmatmul.mubr.f32.gmra.mrb[0].mxu0 %v216
    %v286 = vpop.f32.mrb[0].mxu0
    %v287 = vadd.f32 0.0, %v286
    %v288 = vpop.f32.mrb[0].mxu0
    %289 = vdwg.mxu0
    %v290 = vsel %vm215, %v287, -inf
    %291 = vmax.xlane.f32.xlu0 %v290
    %v292 = vpop.xlane.xlu0 %291
    %v293 = vsub.f32 %v287, %v292
    %v294 = vmul.f32 %v293, 1.442695
    %v295 = vpow.pop %v294
    %v296 = vsel %vm215, %v295, 0.0
    %297 = vadd.xlane.f32.xlu0 %v296
    %v298 = vpop.xlane.xlu0 %297
    %v299 = vrcp.pop %v298
    %v300 = vmul.f32 %v295, %v299
    %301 = vrot.lane.b32.xlu0 %v204, 64
    %v302 = vpop.permute.xlu0 %301
    %v305 = vsel %vm215, %v300, 0
    %307 = vmatprep.subr.mxu0 0.0
    %308 = vmatpush1.msra.mxu0 %v302
    %309 = vmatprep.subr.mxu0 0.0
    %310 = vmatpush1.msra.mxu0 0.0
    %311 = vmatprep.subr.mxu0 0.0
    %312 = vmatpush1.msra.mxu0 0.0
    %313 = vmatprep.subr.mxu0 0.0
    %314 = vmatpush1.msra.mxu0 0.0
    %315 = vmatprep.subr.mxu0 0.0
    %316 = vmatpush1.msra.mxu0 0.0
    %317 = vmatprep.subr.mxu0 0.0
    %318 = vmatpush1.msra.mxu0 0.0
    %319 = vmatprep.subr.mxu0 0.0
    %320 = vmatpush1.msra.mxu0 0.0
    %321 = vmatprep.subr.mxu0 0.0
    %322 = vmatpush1.msra.mxu0 0.0
    %323 = vmatprep.subr.mxu0 0.0
    %324 = vmatpush1.msra.mxu0 0.0
    %325 = vmatprep.subr.mxu0 0.0
    %326 = vmatpush1.msra.mxu0 0.0
    %327 = vmatprep.subr.mxu0 0.0
    %328 = vmatpush1.msra.mxu0 0.0
    %329 = vmatprep.subr.mxu0 0.0
    %330 = vmatpush1.msra.mxu0 0.0
    %331 = vmatprep.subr.mxu0 0.0
    %332 = vmatpush1.msra.mxu0 0.0
    %333 = vmatprep.subr.mxu0 0.0
    %334 = vmatpush1.msra.mxu0 0.0
    %335 = vmatprep.subr.mxu0 0.0
    %336 = vmatpush1.msra.mxu0 0.0
    %337 = vmatprep.subr.mxu0 0.0
    %338 = vmatpush1.msra.mxu0 0.0
    %339 = vmatprep.subr.mxu0 0.0
    %340 = vmatpush1.msra.mxu0 0.0
    %341 = vmatprep.subr.mxu0 0.0
    %342 = vmatpush1.msra.mxu0 0.0
    %343 = vmatprep.subr.mxu0 0.0
    %344 = vmatpush1.msra.mxu0 0.0
    %345 = vmatprep.subr.mxu0 0.0
    %346 = vmatpush1.msra.mxu0 0.0
    %347 = vmatprep.subr.mxu0 0.0
    %348 = vmatpush1.msra.mxu0 0.0
    %349 = vmatprep.subr.mxu0 0.0
    %350 = vmatpush1.msra.mxu0 0.0
    %351 = vmatprep.subr.mxu0 0.0
    %352 = vmatpush1.msra.mxu0 0.0
    %353 = vmatprep.subr.mxu0 0.0
    %354 = vmatpush1.msra.mxu0 0.0
    %355 = vmatprep.subr.mxu0 0.0
    %356 = vmatpush1.msra.mxu0 0.0
    %357 = vmatprep.subr.mxu0 0.0
    %358 = vmatpush1.msra.mxu0 0.0
    %359 = vmatprep.subr.mxu0 0.0
    %360 = vmatpush1.msra.mxu0 0.0
    %361 = vmatprep.subr.mxu0 0.0
    %362 = vmatpush1.msra.mxu0 0.0
    %363 = vmatprep.subr.mxu0 0.0
    %364 = vmatpush1.msra.mxu0 0.0
    %365 = vmatprep.subr.mxu0 0.0
    %366 = vmatpush1.msra.mxu0 0.0
    %367 = vmatprep.subr.mxu0 0.0
    %368 = vmatpush1.msra.mxu0 0.0
    %369 = vmatprep.subr.mxu0 0.0
    %370 = vmatpush1.msra.mxu0 0.0
    %371 = vmatprep.mubr.f32.mxu0 0.0
    %372 = vmatmul.mubr.f32.gmra.mrb[0].mxu0 %v305
    %v373 = vpop.f32.mrb[0].mxu0
    %v374 = vadd.f32 0.0, %v373
    %v375 = vpop.f32.mrb[0].mxu0
    %376 = vdwg.mxu0
    %v378 = vsel %vm215, %v374, 0
    %380 = vmatprep.subr.mxu0 0.0
    %381 = vmatpush1.msra.mxu0 %v101
    %382 = vmatprep.subr.mxu0 0.0
    %383 = vmatpush1.msra.mxu0 0.0
    %384 = vmatprep.subr.mxu0 0.0
    %385 = vmatpush1.msra.mxu0 0.0
    %386 = vmatprep.subr.mxu0 0.0
    %387 = vmatpush1.msra.mxu0 0.0
    %388 = vmatprep.subr.mxu0 0.0
    %389 = vmatpush1.msra.mxu0 0.0
    %390 = vmatprep.subr.mxu0 0.0
    %391 = vmatpush1.msra.mxu0 0.0
    %392 = vmatprep.subr.mxu0 0.0
    %393 = vmatpush1.msra.mxu0 0.0
    %394 = vmatprep.subr.mxu0 0.0
    %395 = vmatpush1.msra.mxu0 0.0
    %396 = vmatprep.subr.mxu0 0.0
    %397 = vmatpush1.msra.mxu0 0.0
    %398 = vmatprep.subr.mxu0 0.0
    %399 = vmatpush1.msra.mxu0 0.0
    %400 = vmatprep.subr.mxu0 0.0
    %401 = vmatpush1.msra.mxu0 0.0
    %402 = vmatprep.subr.mxu0 0.0
    %403 = vmatpush1.msra.mxu0 0.0
    %404 = vmatprep.subr.mxu0 0.0
    %405 = vmatpush1.msra.mxu0 0.0
    %406 = vmatprep.subr.mxu0 0.0
    %407 = vmatpush1.msra.mxu0 0.0
    %408 = vmatprep.subr.mxu0 0.0
    %409 = vmatpush1.msra.mxu0 0.0
    %410 = vmatprep.subr.mxu0 0.0
    %411 = vmatpush1.msra.mxu0 0.0
    %412 = vmatprep.subr.mxu0 0.0
    %413 = vmatpush1.msra.mxu0 0.0
    %414 = vmatprep.subr.mxu0 0.0
    %415 = vmatpush1.msra.mxu0 0.0
    %416 = vmatprep.subr.mxu0 0.0
    %417 = vmatpush1.msra.mxu0 0.0
    %418 = vmatprep.subr.mxu0 0.0
    %419 = vmatpush1.msra.mxu0 0.0
    %420 = vmatprep.subr.mxu0 0.0
    %421 = vmatpush1.msra.mxu0 0.0
    %422 = vmatprep.subr.mxu0 0.0
    %423 = vmatpush1.msra.mxu0 0.0
    %424 = vmatprep.subr.mxu0 0.0
    %425 = vmatpush1.msra.mxu0 0.0
    %426 = vmatprep.subr.mxu0 0.0
    %427 = vmatpush1.msra.mxu0 0.0
    %428 = vmatprep.subr.mxu0 0.0
    %429 = vmatpush1.msra.mxu0 0.0
    %430 = vmatprep.subr.mxu0 0.0
    %431 = vmatpush1.msra.mxu0 0.0
    %432 = vmatprep.subr.mxu0 0.0
    %433 = vmatpush1.msra.mxu0 0.0
    %434 = vmatprep.subr.mxu0 0.0
    %435 = vmatpush1.msra.mxu0 0.0
    %436 = vmatprep.subr.mxu0 0.0
    %437 = vmatpush1.msra.mxu0 0.0
    %438 = vmatprep.subr.mxu0 0.0
    %439 = vmatpush1.msra.mxu0 0.0
    %440 = vmatprep.subr.mxu0 0.0
    %441 = vmatpush1.msra.mxu0 0.0
    %442 = vmatprep.subr.mxu0 0.0
    %443 = vmatpush1.msra.mxu0 0.0
    %444 = vmatprep.mubr.f32.mxu0 0.0
    %445 = vmatmul.mubr.f32.gmra.mrb[0].mxu0 %v378
    %v446 = vpop.f32.mrb[0].mxu0
    %v447 = vadd.f32 0.0, %v446
    %v448 = vpop.f32.mrb[0].mxu0
    %449 = vdwg.mxu0
    %v451 = vlaneseq
    %v452 = vshrl.u32 %v451, 7
    %v453 = vsub.s32 0, %v452
    %v454 = vrot.slane %v105, %v453
    %v456 = vadd.f32 %v454, %v447
    %457 = vrot.lane.b32.xlu0 %v204, 120
    %v458 = vpop.permute.xlu0 %457
    %459 = vrot.lane.b32.xlu0 %v204, 88
    %v460 = vpop.permute.xlu0 %459
    %v461 = vsel %vm215, %v458, 0
    %v463 = vsel %vm215, %v460, 0
    %465 = vmatprep.subr.mxu0 0.0
    %466 = vmatpush1.xpose.msra.mxu0 %v463
    %467 = vmatprep.subr.mxu0 0.0
    %468 = vmatpush1.xpose.msra.mxu0 0.0
    %469 = vmatprep.subr.mxu0 0.0
    %470 = vmatpush1.xpose.msra.mxu0 0.0
    %471 = vmatprep.subr.mxu0 0.0
    %472 = vmatpush1.xpose.msra.mxu0 0.0
    %473 = vmatprep.subr.mxu0 0.0
    %474 = vmatpush1.xpose.msra.mxu0 0.0
    %475 = vmatprep.subr.mxu0 0.0
    %476 = vmatpush1.xpose.msra.mxu0 0.0
    %477 = vmatprep.subr.mxu0 0.0
    %478 = vmatpush1.xpose.msra.mxu0 0.0
    %479 = vmatprep.subr.mxu0 0.0
    %480 = vmatpush1.xpose.msra.mxu0 0.0
    %481 = vmatprep.subr.mxu0 0.0
    %482 = vmatpush1.xpose.msra.mxu0 0.0
    %483 = vmatprep.subr.mxu0 0.0
    %484 = vmatpush1.xpose.msra.mxu0 0.0
    %485 = vmatprep.subr.mxu0 0.0
    %486 = vmatpush1.xpose.msra.mxu0 0.0
    %487 = vmatprep.subr.mxu0 0.0
    %488 = vmatpush1.xpose.msra.mxu0 0.0
    %489 = vmatprep.subr.mxu0 0.0
    %490 = vmatpush1.xpose.msra.mxu0 0.0
    %491 = vmatprep.subr.mxu0 0.0
    %492 = vmatpush1.xpose.msra.mxu0 0.0
    %493 = vmatprep.subr.mxu0 0.0
    %494 = vmatpush1.xpose.msra.mxu0 0.0
    %495 = vmatprep.subr.mxu0 0.0
    %496 = vmatpush1.xpose.msra.mxu0 0.0
    %497 = vmatprep.subr.mxu0 0.0
    %498 = vmatpush1.xpose.msra.mxu0 0.0
    %499 = vmatprep.subr.mxu0 0.0
    %500 = vmatpush1.xpose.msra.mxu0 0.0
    %501 = vmatprep.subr.mxu0 0.0
    %502 = vmatpush1.xpose.msra.mxu0 0.0
    %503 = vmatprep.subr.mxu0 0.0
    %504 = vmatpush1.xpose.msra.mxu0 0.0
    %505 = vmatprep.subr.mxu0 0.0
    %506 = vmatpush1.xpose.msra.mxu0 0.0
    %507 = vmatprep.subr.mxu0 0.0
    %508 = vmatpush1.xpose.msra.mxu0 0.0
    %509 = vmatprep.subr.mxu0 0.0
    %510 = vmatpush1.xpose.msra.mxu0 0.0
    %511 = vmatprep.subr.mxu0 0.0
    %512 = vmatpush1.xpose.msra.mxu0 0.0
    %513 = vmatprep.subr.mxu0 0.0
    %514 = vmatpush1.xpose.msra.mxu0 0.0
    %515 = vmatprep.subr.mxu0 0.0
    %516 = vmatpush1.xpose.msra.mxu0 0.0
    %517 = vmatprep.subr.mxu0 0.0
    %518 = vmatpush1.xpose.msra.mxu0 0.0
    %519 = vmatprep.subr.mxu0 0.0
    %520 = vmatpush1.xpose.msra.mxu0 0.0
    %521 = vmatprep.subr.mxu0 0.0
    %522 = vmatpush1.xpose.msra.mxu0 0.0
    %523 = vmatprep.subr.mxu0 0.0
    %524 = vmatpush1.xpose.msra.mxu0 0.0
    %525 = vmatprep.subr.mxu0 0.0
    %526 = vmatpush1.xpose.msra.mxu0 0.0
    %527 = vmatprep.subr.mxu0 0.0
    %528 = vmatpush1.xpose.msra.mxu0 0.0
    %529 = vmatprep.mubr.f32.mxu0 0.0
    %530 = vmatmul.mubr.f32.gmra.mrb[0].mxu0 %v461
    %v531 = vpop.f32.mrb[0].mxu0
    %v532 = vadd.f32 0.0, %v531
    %v533 = vpop.f32.mrb[0].mxu0
    %534 = vdwg.mxu0
    %v535 = vsel %vm215, %v532, -inf
    %536 = vmax.xlane.f32.xlu0 %v535
    %v537 = vpop.xlane.xlu0 %536
    %v538 = vsub.f32 %v532, %v537
    %v539 = vmul.f32 %v538, 1.442695
    %v540 = vpow.pop %v539
    %v541 = vsel %vm215, %v540, 0.0
    %542 = vadd.xlane.f32.xlu0 %v541
    %v543 = vpop.xlane.xlu0 %542
    %v544 = vrcp.pop %v543
    %v545 = vmul.f32 %v540, %v544
    %546 = vrot.lane.b32.xlu0 %v204, 56
    %v547 = vpop.permute.xlu0 %546
    %v550 = vsel %vm215, %v545, 0
    %552 = vmatprep.subr.mxu0 0.0
    %553 = vmatpush1.msra.mxu0 %v547
    %554 = vmatprep.subr.mxu0 0.0
    %555 = vmatpush1.msra.mxu0 0.0
    %556 = vmatprep.subr.mxu0 0.0
    %557 = vmatpush1.msra.mxu0 0.0
    %558 = vmatprep.subr.mxu0 0.0
    %559 = vmatpush1.msra.mxu0 0.0
    %560 = vmatprep.subr.mxu0 0.0
    %561 = vmatpush1.msra.mxu0 0.0
    %562 = vmatprep.subr.mxu0 0.0
    %563 = vmatpush1.msra.mxu0 0.0
    %564 = vmatprep.subr.mxu0 0.0
    %565 = vmatpush1.msra.mxu0 0.0
    %566 = vmatprep.subr.mxu0 0.0
    %567 = vmatpush1.msra.mxu0 0.0
    %568 = vmatprep.subr.mxu0 0.0
    %569 = vmatpush1.msra.mxu0 0.0
    %570 = vmatprep.subr.mxu0 0.0
    %571 = vmatpush1.msra.mxu0 0.0
    %572 = vmatprep.subr.mxu0 0.0
    %573 = vmatpush1.msra.mxu0 0.0
    %574 = vmatprep.subr.mxu0 0.0
    %575 = vmatpush1.msra.mxu0 0.0
    %576 = vmatprep.subr.mxu0 0.0
    %577 = vmatpush1.msra.mxu0 0.0
    %578 = vmatprep.subr.mxu0 0.0
    %579 = vmatpush1.msra.mxu0 0.0
    %580 = vmatprep.subr.mxu0 0.0
    %581 = vmatpush1.msra.mxu0 0.0
    %582 = vmatprep.subr.mxu0 0.0
    %583 = vmatpush1.msra.mxu0 0.0
    %584 = vmatprep.subr.mxu0 0.0
    %585 = vmatpush1.msra.mxu0 0.0
    %586 = vmatprep.subr.mxu0 0.0
    %587 = vmatpush1.msra.mxu0 0.0
    %588 = vmatprep.subr.mxu0 0.0
    %589 = vmatpush1.msra.mxu0 0.0
    %590 = vmatprep.subr.mxu0 0.0
    %591 = vmatpush1.msra.mxu0 0.0
    %592 = vmatprep.subr.mxu0 0.0
    %593 = vmatpush1.msra.mxu0 0.0
    %594 = vmatprep.subr.mxu0 0.0
    %595 = vmatpush1.msra.mxu0 0.0
    %596 = vmatprep.subr.mxu0 0.0
    %597 = vmatpush1.msra.mxu0 0.0
    %598 = vmatprep.subr.mxu0 0.0
    %599 = vmatpush1.msra.mxu0 0.0
    %600 = vmatprep.subr.mxu0 0.0
    %601 = vmatpush1.msra.mxu0 0.0
    %602 = vmatprep.subr.mxu0 0.0
    %603 = vmatpush1.msra.mxu0 0.0
    %604 = vmatprep.subr.mxu0 0.0
    %605 = vmatpush1.msra.mxu0 0.0
    %606 = vmatprep.subr.mxu0 0.0
    %607 = vmatpush1.msra.mxu0 0.0
    %608 = vmatprep.subr.mxu0 0.0
    %609 = vmatpush1.msra.mxu0 0.0
    %610 = vmatprep.subr.mxu0 0.0
    %611 = vmatpush1.msra.mxu0 0.0
    %612 = vmatprep.subr.mxu0 0.0
    %613 = vmatpush1.msra.mxu0 0.0
    %614 = vmatprep.subr.mxu0 0.0
    %615 = vmatpush1.msra.mxu0 0.0
    %616 = vmatprep.mubr.f32.mxu0 0.0
    %617 = vmatmul.mubr.f32.gmra.mrb[0].mxu0 %v550
    %v618 = vpop.f32.mrb[0].mxu0
    %v619 = vadd.f32 0.0, %v618
    %v620 = vpop.f32.mrb[0].mxu0
    %621 = vdwg.mxu0
    %v623 = vsel %vm215, %v619, 0
    %625 = vmatprep.subr.mxu0 0.0
    %626 = vmatpush1.msra.mxu0 %v102
    %627 = vmatprep.subr.mxu0 0.0
    %628 = vmatpush1.msra.mxu0 0.0
    %629 = vmatprep.subr.mxu0 0.0
    %630 = vmatpush1.msra.mxu0 0.0
    %631 = vmatprep.subr.mxu0 0.0
    %632 = vmatpush1.msra.mxu0 0.0
    %633 = vmatprep.subr.mxu0 0.0
    %634 = vmatpush1.msra.mxu0 0.0
    %635 = vmatprep.subr.mxu0 0.0
    %636 = vmatpush1.msra.mxu0 0.0
    %637 = vmatprep.subr.mxu0 0.0
    %638 = vmatpush1.msra.mxu0 0.0
    %639 = vmatprep.subr.mxu0 0.0
    %640 = vmatpush1.msra.mxu0 0.0
    %641 = vmatprep.subr.mxu0 0.0
    %642 = vmatpush1.msra.mxu0 0.0
    %643 = vmatprep.subr.mxu0 0.0
    %644 = vmatpush1.msra.mxu0 0.0
    %645 = vmatprep.subr.mxu0 0.0
    %646 = vmatpush1.msra.mxu0 0.0
    %647 = vmatprep.subr.mxu0 0.0
    %648 = vmatpush1.msra.mxu0 0.0
    %649 = vmatprep.subr.mxu0 0.0
    %650 = vmatpush1.msra.mxu0 0.0
    %651 = vmatprep.subr.mxu0 0.0
    %652 = vmatpush1.msra.mxu0 0.0
    %653 = vmatprep.subr.mxu0 0.0
    %654 = vmatpush1.msra.mxu0 0.0
    %655 = vmatprep.subr.mxu0 0.0
    %656 = vmatpush1.msra.mxu0 0.0
    %657 = vmatprep.subr.mxu0 0.0
    %658 = vmatpush1.msra.mxu0 0.0
    %659 = vmatprep.subr.mxu0 0.0
    %660 = vmatpush1.msra.mxu0 0.0
    %661 = vmatprep.subr.mxu0 0.0
    %662 = vmatpush1.msra.mxu0 0.0
    %663 = vmatprep.subr.mxu0 0.0
    %664 = vmatpush1.msra.mxu0 0.0
    %665 = vmatprep.subr.mxu0 0.0
    %666 = vmatpush1.msra.mxu0 0.0
    %667 = vmatprep.subr.mxu0 0.0
    %668 = vmatpush1.msra.mxu0 0.0
    %669 = vmatprep.subr.mxu0 0.0
    %670 = vmatpush1.msra.mxu0 0.0
    %671 = vmatprep.subr.mxu0 0.0
    %672 = vmatpush1.msra.mxu0 0.0
    %673 = vmatprep.subr.mxu0 0.0
    %674 = vmatpush1.msra.mxu0 0.0
    %675 = vmatprep.subr.mxu0 0.0
    %676 = vmatpush1.msra.mxu0 0.0
    %677 = vmatprep.subr.mxu0 0.0
    %678 = vmatpush1.msra.mxu0 0.0
    %679 = vmatprep.subr.mxu0 0.0
    %680 = vmatpush1.msra.mxu0 0.0
    %681 = vmatprep.subr.mxu0 0.0
    %682 = vmatpush1.msra.mxu0 0.0
    %683 = vmatprep.subr.mxu0 0.0
    %684 = vmatpush1.msra.mxu0 0.0
    %685 = vmatprep.subr.mxu0 0.0
    %686 = vmatpush1.msra.mxu0 0.0
    %687 = vmatprep.subr.mxu0 0.0
    %688 = vmatpush1.msra.mxu0 0.0
    %689 = vmatprep.mubr.f32.mxu0 0.0
    %690 = vmatmul.mubr.f32.gmra.mrb[0].mxu0 %v623
    %v691 = vpop.f32.mrb[0].mxu0
    %v692 = vadd.f32 0.0, %v691
    %v693 = vpop.f32.mrb[0].mxu0
    %694 = vdwg.mxu0
    %v695 = vadd.f32 %v456, %v692
    %696 = vrot.lane.b32.xlu0 %v204, 112
    %v697 = vpop.permute.xlu0 %696
    %698 = vrot.lane.b32.xlu0 %v204, 80
    %v699 = vpop.permute.xlu0 %698
    %v700 = vsel %vm215, %v697, 0
    %v702 = vsel %vm215, %v699, 0
    %704 = vmatprep.subr.mxu0 0.0
    %705 = vmatpush1.xpose.msra.mxu0 %v702
    %706 = vmatprep.subr.mxu0 0.0
    %707 = vmatpush1.xpose.msra.mxu0 0.0
    %708 = vmatprep.subr.mxu0 0.0
    %709 = vmatpush1.xpose.msra.mxu0 0.0
    %710 = vmatprep.subr.mxu0 0.0
    %711 = vmatpush1.xpose.msra.mxu0 0.0
    %712 = vmatprep.subr.mxu0 0.0
    %713 = vmatpush1.xpose.msra.mxu0 0.0
    %714 = vmatprep.subr.mxu0 0.0
    %715 = vmatpush1.xpose.msra.mxu0 0.0
    %716 = vmatprep.subr.mxu0 0.0
    %717 = vmatpush1.xpose.msra.mxu0 0.0
    %718 = vmatprep.subr.mxu0 0.0
    %719 = vmatpush1.xpose.msra.mxu0 0.0
    %720 = vmatprep.subr.mxu0 0.0
    %721 = vmatpush1.xpose.msra.mxu0 0.0
    %722 = vmatprep.subr.mxu0 0.0
    %723 = vmatpush1.xpose.msra.mxu0 0.0
    %724 = vmatprep.subr.mxu0 0.0
    %725 = vmatpush1.xpose.msra.mxu0 0.0
    %726 = vmatprep.subr.mxu0 0.0
    %727 = vmatpush1.xpose.msra.mxu0 0.0
    %728 = vmatprep.subr.mxu0 0.0
    %729 = vmatpush1.xpose.msra.mxu0 0.0
    %730 = vmatprep.subr.mxu0 0.0
    %731 = vmatpush1.xpose.msra.mxu0 0.0
    %732 = vmatprep.subr.mxu0 0.0
    %733 = vmatpush1.xpose.msra.mxu0 0.0
    %734 = vmatprep.subr.mxu0 0.0
    %735 = vmatpush1.xpose.msra.mxu0 0.0
    %736 = vmatprep.subr.mxu0 0.0
    %737 = vmatpush1.xpose.msra.mxu0 0.0
    %738 = vmatprep.subr.mxu0 0.0
    %739 = vmatpush1.xpose.msra.mxu0 0.0
    %740 = vmatprep.subr.mxu0 0.0
    %741 = vmatpush1.xpose.msra.mxu0 0.0
    %742 = vmatprep.subr.mxu0 0.0
    %743 = vmatpush1.xpose.msra.mxu0 0.0
    %744 = vmatprep.subr.mxu0 0.0
    %745 = vmatpush1.xpose.msra.mxu0 0.0
    %746 = vmatprep.subr.mxu0 0.0
    %747 = vmatpush1.xpose.msra.mxu0 0.0
    %748 = vmatprep.subr.mxu0 0.0
    %749 = vmatpush1.xpose.msra.mxu0 0.0
    %750 = vmatprep.subr.mxu0 0.0
    %751 = vmatpush1.xpose.msra.mxu0 0.0
    %752 = vmatprep.subr.mxu0 0.0
    %753 = vmatpush1.xpose.msra.mxu0 0.0
    %754 = vmatprep.subr.mxu0 0.0
    %755 = vmatpush1.xpose.msra.mxu0 0.0
    %756 = vmatprep.subr.mxu0 0.0
    %757 = vmatpush1.xpose.msra.mxu0 0.0
    %758 = vmatprep.subr.mxu0 0.0
    %759 = vmatpush1.xpose.msra.mxu0 0.0
    %760 = vmatprep.subr.mxu0 0.0
    %761 = vmatpush1.xpose.msra.mxu0 0.0
    %762 = vmatprep.subr.mxu0 0.0
    %763 = vmatpush1.xpose.msra.mxu0 0.0
    %764 = vmatprep.subr.mxu0 0.0
    %765 = vmatpush1.xpose.msra.mxu0 0.0
    %766 = vmatprep.subr.mxu0 0.0
    %767 = vmatpush1.xpose.msra.mxu0 0.0
    %768 = vmatprep.mubr.f32.mxu0 0.0
    %769 = vmatmul.mubr.f32.gmra.mrb[0].mxu0 %v700
    %v770 = vpop.f32.mrb[0].mxu0
    %v771 = vadd.f32 0.0, %v770
    %v772 = vpop.f32.mrb[0].mxu0
    %773 = vdwg.mxu0
    %v774 = vsel %vm215, %v771, -inf
    %775 = vmax.xlane.f32.xlu0 %v774
    %v776 = vpop.xlane.xlu0 %775
    %v777 = vsub.f32 %v771, %v776
    %v778 = vmul.f32 %v777, 1.442695
    %v779 = vpow.pop %v778
    %v780 = vsel %vm215, %v779, 0.0
    %781 = vadd.xlane.f32.xlu0 %v780
    %v782 = vpop.xlane.xlu0 %781
    %v783 = vrcp.pop %v782
    %v784 = vmul.f32 %v779, %v783
    %785 = vrot.lane.b32.xlu0 %v204, 48
    %v786 = vpop.permute.xlu0 %785
    %v789 = vsel %vm215, %v784, 0
    %791 = vmatprep.subr.mxu0 0.0
    %792 = vmatpush1.msra.mxu0 %v786
    %793 = vmatprep.subr.mxu0 0.0
    %794 = vmatpush1.msra.mxu0 0.0
    %795 = vmatprep.subr.mxu0 0.0
    %796 = vmatpush1.msra.mxu0 0.0
    %797 = vmatprep.subr.mxu0 0.0
    %798 = vmatpush1.msra.mxu0 0.0
    %799 = vmatprep.subr.mxu0 0.0
    %800 = vmatpush1.msra.mxu0 0.0
    %801 = vmatprep.subr.mxu0 0.0
    %802 = vmatpush1.msra.mxu0 0.0
    %803 = vmatprep.subr.mxu0 0.0
    %804 = vmatpush1.msra.mxu0 0.0
    %805 = vmatprep.subr.mxu0 0.0
    %806 = vmatpush1.msra.mxu0 0.0
    %807 = vmatprep.subr.mxu0 0.0
    %808 = vmatpush1.msra.mxu0 0.0
    %809 = vmatprep.subr.mxu0 0.0
    %810 = vmatpush1.msra.mxu0 0.0
    %811 = vmatprep.subr.mxu0 0.0
    %812 = vmatpush1.msra.mxu0 0.0
    %813 = vmatprep.subr.mxu0 0.0
    %814 = vmatpush1.msra.mxu0 0.0
    %815 = vmatprep.subr.mxu0 0.0
    %816 = vmatpush1.msra.mxu0 0.0
    %817 = vmatprep.subr.mxu0 0.0
    %818 = vmatpush1.msra.mxu0 0.0
    %819 = vmatprep.subr.mxu0 0.0
    %820 = vmatpush1.msra.mxu0 0.0
    %821 = vmatprep.subr.mxu0 0.0
    %822 = vmatpush1.msra.mxu0 0.0
    %823 = vmatprep.subr.mxu0 0.0
    %824 = vmatpush1.msra.mxu0 0.0
    %825 = vmatprep.subr.mxu0 0.0
    %826 = vmatpush1.msra.mxu0 0.0
    %827 = vmatprep.subr.mxu0 0.0
    %828 = vmatpush1.msra.mxu0 0.0
    %829 = vmatprep.subr.mxu0 0.0
    %830 = vmatpush1.msra.mxu0 0.0
    %831 = vmatprep.subr.mxu0 0.0
    %832 = vmatpush1.msra.mxu0 0.0
    %833 = vmatprep.subr.mxu0 0.0
    %834 = vmatpush1.msra.mxu0 0.0
    %835 = vmatprep.subr.mxu0 0.0
    %836 = vmatpush1.msra.mxu0 0.0
    %837 = vmatprep.subr.mxu0 0.0
    %838 = vmatpush1.msra.mxu0 0.0
    %839 = vmatprep.subr.mxu0 0.0
    %840 = vmatpush1.msra.mxu0 0.0
    %841 = vmatprep.subr.mxu0 0.0
    %842 = vmatpush1.msra.mxu0 0.0
    %843 = vmatprep.subr.mxu0 0.0
    %844 = vmatpush1.msra.mxu0 0.0
    %845 = vmatprep.subr.mxu0 0.0
    %846 = vmatpush1.msra.mxu0 0.0
    %847 = vmatprep.subr.mxu0 0.0
    %848 = vmatpush1.msra.mxu0 0.0
    %849 = vmatprep.subr.mxu0 0.0
    %850 = vmatpush1.msra.mxu0 0.0
    %851 = vmatprep.subr.mxu0 0.0
    %852 = vmatpush1.msra.mxu0 0.0
    %853 = vmatprep.subr.mxu0 0.0
    %854 = vmatpush1.msra.mxu0 0.0
    %855 = vmatprep.mubr.f32.mxu0 0.0
    %856 = vmatmul.mubr.f32.gmra.mrb[0].mxu0 %v789
    %v857 = vpop.f32.mrb[0].mxu0
    %v858 = vadd.f32 0.0, %v857
    %v859 = vpop.f32.mrb[0].mxu0
    %860 = vdwg.mxu0
    %v862 = vsel %vm215, %v858, 0
    %864 = vmatprep.subr.mxu0 0.0
    %865 = vmatpush1.msra.mxu0 %v103
    %866 = vmatprep.subr.mxu0 0.0
    %867 = vmatpush1.msra.mxu0 0.0
    %868 = vmatprep.subr.mxu0 0.0
    %869 = vmatpush1.msra.mxu0 0.0
    %870 = vmatprep.subr.mxu0 0.0
    %871 = vmatpush1.msra.mxu0 0.0
    %872 = vmatprep.subr.mxu0 0.0
    %873 = vmatpush1.msra.mxu0 0.0
    %874 = vmatprep.subr.mxu0 0.0
    %875 = vmatpush1.msra.mxu0 0.0
    %876 = vmatprep.subr.mxu0 0.0
    %877 = vmatpush1.msra.mxu0 0.0
    %878 = vmatprep.subr.mxu0 0.0
    %879 = vmatpush1.msra.mxu0 0.0
    %880 = vmatprep.subr.mxu0 0.0
    %881 = vmatpush1.msra.mxu0 0.0
    %882 = vmatprep.subr.mxu0 0.0
    %883 = vmatpush1.msra.mxu0 0.0
    %884 = vmatprep.subr.mxu0 0.0
    %885 = vmatpush1.msra.mxu0 0.0
    %886 = vmatprep.subr.mxu0 0.0
    %887 = vmatpush1.msra.mxu0 0.0
    %888 = vmatprep.subr.mxu0 0.0
    %889 = vmatpush1.msra.mxu0 0.0
    %890 = vmatprep.subr.mxu0 0.0
    %891 = vmatpush1.msra.mxu0 0.0
    %892 = vmatprep.subr.mxu0 0.0
    %893 = vmatpush1.msra.mxu0 0.0
    %894 = vmatprep.subr.mxu0 0.0
    %895 = vmatpush1.msra.mxu0 0.0
    %896 = vmatprep.subr.mxu0 0.0
    %897 = vmatpush1.msra.mxu0 0.0
    %898 = vmatprep.subr.mxu0 0.0
    %899 = vmatpush1.msra.mxu0 0.0
    %900 = vmatprep.subr.mxu0 0.0
    %901 = vmatpush1.msra.mxu0 0.0
    %902 = vmatprep.subr.mxu0 0.0
    %903 = vmatpush1.msra.mxu0 0.0
    %904 = vmatprep.subr.mxu0 0.0
    %905 = vmatpush1.msra.mxu0 0.0
    %906 = vmatprep.subr.mxu0 0.0
    %907 = vmatpush1.msra.mxu0 0.0
    %908 = vmatprep.subr.mxu0 0.0
    %909 = vmatpush1.msra.mxu0 0.0
    %910 = vmatprep.subr.mxu0 0.0
    %911 = vmatpush1.msra.mxu0 0.0
    %912 = vmatprep.subr.mxu0 0.0
    %913 = vmatpush1.msra.mxu0 0.0
    %914 = vmatprep.subr.mxu0 0.0
    %915 = vmatpush1.msra.mxu0 0.0
    %916 = vmatprep.subr.mxu0 0.0
    %917 = vmatpush1.msra.mxu0 0.0
    %918 = vmatprep.subr.mxu0 0.0
    %919 = vmatpush1.msra.mxu0 0.0
    %920 = vmatprep.subr.mxu0 0.0
    %921 = vmatpush1.msra.mxu0 0.0
    %922 = vmatprep.subr.mxu0 0.0
    %923 = vmatpush1.msra.mxu0 0.0
    %924 = vmatprep.subr.mxu0 0.0
    %925 = vmatpush1.msra.mxu0 0.0
    %926 = vmatprep.subr.mxu0 0.0
    %927 = vmatpush1.msra.mxu0 0.0
    %928 = vmatprep.mubr.f32.mxu0 0.0
    %929 = vmatmul.mubr.f32.gmra.mrb[0].mxu0 %v862
    %v930 = vpop.f32.mrb[0].mxu0
    %v931 = vadd.f32 0.0, %v930
    %v932 = vpop.f32.mrb[0].mxu0
    %933 = vdwg.mxu0
    %v934 = vadd.f32 %v695, %v931
    %935 = vrot.lane.b32.xlu0 %v204, 104
    %v936 = vpop.permute.xlu0 %935
    %937 = vrot.lane.b32.xlu0 %v204, 72
    %v938 = vpop.permute.xlu0 %937
    %v939 = vsel %vm215, %v936, 0
    %v941 = vsel %vm215, %v938, 0
    %943 = vmatprep.subr.mxu0 0.0
    %944 = vmatpush1.xpose.msra.mxu0 %v941
    %945 = vmatprep.subr.mxu0 0.0
    %946 = vmatpush1.xpose.msra.mxu0 0.0
    %947 = vmatprep.subr.mxu0 0.0
    %948 = vmatpush1.xpose.msra.mxu0 0.0
    %949 = vmatprep.subr.mxu0 0.0
    %950 = vmatpush1.xpose.msra.mxu0 0.0
    %951 = vmatprep.subr.mxu0 0.0
    %952 = vmatpush1.xpose.msra.mxu0 0.0
    %953 = vmatprep.subr.mxu0 0.0
    %954 = vmatpush1.xpose.msra.mxu0 0.0
    %955 = vmatprep.subr.mxu0 0.0
    %956 = vmatpush1.xpose.msra.mxu0 0.0
    %957 = vmatprep.subr.mxu0 0.0
    %958 = vmatpush1.xpose.msra.mxu0 0.0
    %959 = vmatprep.subr.mxu0 0.0
    %960 = vmatpush1.xpose.msra.mxu0 0.0
    %961 = vmatprep.subr.mxu0 0.0
    %962 = vmatpush1.xpose.msra.mxu0 0.0
    %963 = vmatprep.subr.mxu0 0.0
    %964 = vmatpush1.xpose.msra.mxu0 0.0
    %965 = vmatprep.subr.mxu0 0.0
    %966 = vmatpush1.xpose.msra.mxu0 0.0
    %967 = vmatprep.subr.mxu0 0.0
    %968 = vmatpush1.xpose.msra.mxu0 0.0
    %969 = vmatprep.subr.mxu0 0.0
    %970 = vmatpush1.xpose.msra.mxu0 0.0
    %971 = vmatprep.subr.mxu0 0.0
    %972 = vmatpush1.xpose.msra.mxu0 0.0
    %973 = vmatprep.subr.mxu0 0.0
    %974 = vmatpush1.xpose.msra.mxu0 0.0
    %975 = vmatprep.subr.mxu0 0.0
    %976 = vmatpush1.xpose.msra.mxu0 0.0
    %977 = vmatprep.subr.mxu0 0.0
    %978 = vmatpush1.xpose.msra.mxu0 0.0
    %979 = vmatprep.subr.mxu0 0.0
    %980 = vmatpush1.xpose.msra.mxu0 0.0
    %981 = vmatprep.subr.mxu0 0.0
    %982 = vmatpush1.xpose.msra.mxu0 0.0
    %983 = vmatprep.subr.mxu0 0.0
    %984 = vmatpush1.xpose.msra.mxu0 0.0
    %985 = vmatprep.subr.mxu0 0.0
    %986 = vmatpush1.xpose.msra.mxu0 0.0
    %987 = vmatprep.subr.mxu0 0.0
    %988 = vmatpush1.xpose.msra.mxu0 0.0
    %989 = vmatprep.subr.mxu0 0.0
    %990 = vmatpush1.xpose.msra.mxu0 0.0
    %991 = vmatprep.subr.mxu0 0.0
    %992 = vmatpush1.xpose.msra.mxu0 0.0
    %993 = vmatprep.subr.mxu0 0.0
    %994 = vmatpush1.xpose.msra.mxu0 0.0
    %995 = vmatprep.subr.mxu0 0.0
    %996 = vmatpush1.xpose.msra.mxu0 0.0
    %997 = vmatprep.subr.mxu0 0.0
    %998 = vmatpush1.xpose.msra.mxu0 0.0
    %999 = vmatprep.subr.mxu0 0.0
    %1000 = vmatpush1.xpose.msra.mxu0 0.0
    %1001 = vmatprep.subr.mxu0 0.0
    %1002 = vmatpush1.xpose.msra.mxu0 0.0
    %1003 = vmatprep.subr.mxu0 0.0
    %1004 = vmatpush1.xpose.msra.mxu0 0.0
    %1005 = vmatprep.subr.mxu0 0.0
    %1006 = vmatpush1.xpose.msra.mxu0 0.0
    %1007 = vmatprep.mubr.f32.mxu0 0.0
    %1008 = vmatmul.mubr.f32.gmra.mrb[0].mxu0 %v939
    %v1009 = vpop.f32.mrb[0].mxu0
    %v1010 = vadd.f32 0.0, %v1009
    %v1011 = vpop.f32.mrb[0].mxu0
    %1012 = vdwg.mxu0
    %v1013 = vsel %vm215, %v1010, -inf
    %1014 = vmax.xlane.f32.xlu0 %v1013
    %v1015 = vpop.xlane.xlu0 %1014
    %v1016 = vsub.f32 %v1010, %v1015
    %v1017 = vmul.f32 %v1016, 1.442695
    %v1018 = vpow.pop %v1017
    %v1019 = vsel %vm215, %v1018, 0.0
    %1020 = vadd.xlane.f32.xlu0 %v1019
    %v1021 = vpop.xlane.xlu0 %1020
    %v1022 = vrcp.pop %v1021
    %v1023 = vmul.f32 %v1018, %v1022
    %1024 = vrot.lane.b32.xlu0 %v204, 40
    %v1025 = vpop.permute.xlu0 %1024
    %v1028 = vsel %vm215, %v1023, 0
    %1030 = vmatprep.subr.mxu0 0.0
    %1031 = vmatpush1.msra.mxu0 %v1025
    %1032 = vmatprep.subr.mxu0 0.0
    %1033 = vmatpush1.msra.mxu0 0.0
    %1034 = vmatprep.subr.mxu0 0.0
    %1035 = vmatpush1.msra.mxu0 0.0
    %1036 = vmatprep.subr.mxu0 0.0
    %1037 = vmatpush1.msra.mxu0 0.0
    %1038 = vmatprep.subr.mxu0 0.0
    %1039 = vmatpush1.msra.mxu0 0.0
    %1040 = vmatprep.subr.mxu0 0.0
    %1041 = vmatpush1.msra.mxu0 0.0
    %1042 = vmatprep.subr.mxu0 0.0
    %1043 = vmatpush1.msra.mxu0 0.0
    %1044 = vmatprep.subr.mxu0 0.0
    %1045 = vmatpush1.msra.mxu0 0.0
    %1046 = vmatprep.subr.mxu0 0.0
    %1047 = vmatpush1.msra.mxu0 0.0
    %1048 = vmatprep.subr.mxu0 0.0
    %1049 = vmatpush1.msra.mxu0 0.0
    %1050 = vmatprep.subr.mxu0 0.0
    %1051 = vmatpush1.msra.mxu0 0.0
    %1052 = vmatprep.subr.mxu0 0.0
    %1053 = vmatpush1.msra.mxu0 0.0
    %1054 = vmatprep.subr.mxu0 0.0
    %1055 = vmatpush1.msra.mxu0 0.0
    %1056 = vmatprep.subr.mxu0 0.0
    %1057 = vmatpush1.msra.mxu0 0.0
    %1058 = vmatprep.subr.mxu0 0.0
    %1059 = vmatpush1.msra.mxu0 0.0
    %1060 = vmatprep.subr.mxu0 0.0
    %1061 = vmatpush1.msra.mxu0 0.0
    %1062 = vmatprep.subr.mxu0 0.0
    %1063 = vmatpush1.msra.mxu0 0.0
    %1064 = vmatprep.subr.mxu0 0.0
    %1065 = vmatpush1.msra.mxu0 0.0
    %1066 = vmatprep.subr.mxu0 0.0
    %1067 = vmatpush1.msra.mxu0 0.0
    %1068 = vmatprep.subr.mxu0 0.0
    %1069 = vmatpush1.msra.mxu0 0.0
    %1070 = vmatprep.subr.mxu0 0.0
    %1071 = vmatpush1.msra.mxu0 0.0
    %1072 = vmatprep.subr.mxu0 0.0
    %1073 = vmatpush1.msra.mxu0 0.0
    %1074 = vmatprep.subr.mxu0 0.0
    %1075 = vmatpush1.msra.mxu0 0.0
    %1076 = vmatprep.subr.mxu0 0.0
    %1077 = vmatpush1.msra.mxu0 0.0
    %1078 = vmatprep.subr.mxu0 0.0
    %1079 = vmatpush1.msra.mxu0 0.0
    %1080 = vmatprep.subr.mxu0 0.0
    %1081 = vmatpush1.msra.mxu0 0.0
    %1082 = vmatprep.subr.mxu0 0.0
    %1083 = vmatpush1.msra.mxu0 0.0
    %1084 = vmatprep.subr.mxu0 0.0
    %1085 = vmatpush1.msra.mxu0 0.0
    %1086 = vmatprep.subr.mxu0 0.0
    %1087 = vmatpush1.msra.mxu0 0.0
    %1088 = vmatprep.subr.mxu0 0.0
    %1089 = vmatpush1.msra.mxu0 0.0
    %1090 = vmatprep.subr.mxu0 0.0
    %1091 = vmatpush1.msra.mxu0 0.0
    %1092 = vmatprep.subr.mxu0 0.0
    %1093 = vmatpush1.msra.mxu0 0.0
    %1094 = vmatprep.mubr.f32.mxu0 0.0
    %1095 = vmatmul.mubr.f32.gmra.mrb[0].mxu0 %v1028
    %v1096 = vpop.f32.mrb[0].mxu0
    %v1097 = vadd.f32 0.0, %v1096
    %v1098 = vpop.f32.mrb[0].mxu0
    %1099 = vdwg.mxu0
    %v1101 = vsel %vm215, %v1097, 0
    %1103 = vmatprep.subr.mxu0 0.0
    %1104 = vmatpush1.msra.mxu0 %v104
    %1105 = vmatprep.subr.mxu0 0.0
    %1106 = vmatpush1.msra.mxu0 0.0
    %1107 = vmatprep.subr.mxu0 0.0
    %1108 = vmatpush1.msra.mxu0 0.0
    %1109 = vmatprep.subr.mxu0 0.0
    %1110 = vmatpush1.msra.mxu0 0.0
    %1111 = vmatprep.subr.mxu0 0.0
    %1112 = vmatpush1.msra.mxu0 0.0
    %1113 = vmatprep.subr.mxu0 0.0
    %1114 = vmatpush1.msra.mxu0 0.0
    %1115 = vmatprep.subr.mxu0 0.0
    %1116 = vmatpush1.msra.mxu0 0.0
    %1117 = vmatprep.subr.mxu0 0.0
    %1118 = vmatpush1.msra.mxu0 0.0
    %1119 = vmatprep.subr.mxu0 0.0
    %1120 = vmatpush1.msra.mxu0 0.0
    %1121 = vmatprep.subr.mxu0 0.0
    %1122 = vmatpush1.msra.mxu0 0.0
    %1123 = vmatprep.subr.mxu0 0.0
    %1124 = vmatpush1.msra.mxu0 0.0
    %1125 = vmatprep.subr.mxu0 0.0
    %1126 = vmatpush1.msra.mxu0 0.0
    %1127 = vmatprep.subr.mxu0 0.0
    %1128 = vmatpush1.msra.mxu0 0.0
    %1129 = vmatprep.subr.mxu0 0.0
    %1130 = vmatpush1.msra.mxu0 0.0
    %1131 = vmatprep.subr.mxu0 0.0
    %1132 = vmatpush1.msra.mxu0 0.0
    %1133 = vmatprep.subr.mxu0 0.0
    %1134 = vmatpush1.msra.mxu0 0.0
    %1135 = vmatprep.subr.mxu0 0.0
    %1136 = vmatpush1.msra.mxu0 0.0
    %1137 = vmatprep.subr.mxu0 0.0
    %1138 = vmatpush1.msra.mxu0 0.0
    %1139 = vmatprep.subr.mxu0 0.0
    %1140 = vmatpush1.msra.mxu0 0.0
    %1141 = vmatprep.subr.mxu0 0.0
    %1142 = vmatpush1.msra.mxu0 0.0
    %1143 = vmatprep.subr.mxu0 0.0
    %1144 = vmatpush1.msra.mxu0 0.0
    %1145 = vmatprep.subr.mxu0 0.0
    %1146 = vmatpush1.msra.mxu0 0.0
    %1147 = vmatprep.subr.mxu0 0.0
    %1148 = vmatpush1.msra.mxu0 0.0
    %1149 = vmatprep.subr.mxu0 0.0
    %1150 = vmatpush1.msra.mxu0 0.0
    %1151 = vmatprep.subr.mxu0 0.0
    %1152 = vmatpush1.msra.mxu0 0.0
    %1153 = vmatprep.subr.mxu0 0.0
    %1154 = vmatpush1.msra.mxu0 0.0
    %1155 = vmatprep.subr.mxu0 0.0
    %1156 = vmatpush1.msra.mxu0 0.0
    %1157 = vmatprep.subr.mxu0 0.0
    %1158 = vmatpush1.msra.mxu0 0.0
    %1159 = vmatprep.subr.mxu0 0.0
    %1160 = vmatpush1.msra.mxu0 0.0
    %1161 = vmatprep.subr.mxu0 0.0
    %1162 = vmatpush1.msra.mxu0 0.0
    %1163 = vmatprep.subr.mxu0 0.0
    %1164 = vmatpush1.msra.mxu0 0.0
    %1165 = vmatprep.subr.mxu0 0.0
    %1166 = vmatpush1.msra.mxu0 0.0
    %1167 = vmatprep.mubr.f32.mxu0 0.0
    %1168 = vmatmul.mubr.f32.gmra.mrb[0].mxu0 %v1101
    %v1169 = vpop.f32.mrb[0].mxu0
    %v1170 = vadd.f32 0.0, %v1169
    %v1171 = vpop.f32.mrb[0].mxu0
    %1172 = vdwg.mxu0
    %v1173 = vadd.f32 %v934, %v1170
    %1175 = vrot.lane.b32.xlu0 %v209, 96
    %v1176 = vpop.permute.xlu0 %1175
    %v1177 = vsel %vm215, %v209, 0
    %v1179 = vsel %vm215, %v1176, 0
    %1181 = vmatprep.subr.mxu0 0.0
    %1182 = vmatpush1.xpose.msra.mxu0 %v1179
    %1183 = vmatprep.subr.mxu0 0.0
    %1184 = vmatpush1.xpose.msra.mxu0 0.0
    %1185 = vmatprep.subr.mxu0 0.0
    %1186 = vmatpush1.xpose.msra.mxu0 0.0
    %1187 = vmatprep.subr.mxu0 0.0
    %1188 = vmatpush1.xpose.msra.mxu0 0.0
    %1189 = vmatprep.subr.mxu0 0.0
    %1190 = vmatpush1.xpose.msra.mxu0 0.0
    %1191 = vmatprep.subr.mxu0 0.0
    %1192 = vmatpush1.xpose.msra.mxu0 0.0
    %1193 = vmatprep.subr.mxu0 0.0
    %1194 = vmatpush1.xpose.msra.mxu0 0.0
    %1195 = vmatprep.subr.mxu0 0.0
    %1196 = vmatpush1.xpose.msra.mxu0 0.0
    %1197 = vmatprep.subr.mxu0 0.0
    %1198 = vmatpush1.xpose.msra.mxu0 0.0
    %1199 = vmatprep.subr.mxu0 0.0
    %1200 = vmatpush1.xpose.msra.mxu0 0.0
    %1201 = vmatprep.subr.mxu0 0.0
    %1202 = vmatpush1.xpose.msra.mxu0 0.0
    %1203 = vmatprep.subr.mxu0 0.0
    %1204 = vmatpush1.xpose.msra.mxu0 0.0
    %1205 = vmatprep.subr.mxu0 0.0
    %1206 = vmatpush1.xpose.msra.mxu0 0.0
    %1207 = vmatprep.subr.mxu0 0.0
    %1208 = vmatpush1.xpose.msra.mxu0 0.0
    %1209 = vmatprep.subr.mxu0 0.0
    %1210 = vmatpush1.xpose.msra.mxu0 0.0
    %1211 = vmatprep.subr.mxu0 0.0
    %1212 = vmatpush1.xpose.msra.mxu0 0.0
    %1213 = vmatprep.subr.mxu0 0.0
    %1214 = vmatpush1.xpose.msra.mxu0 0.0
    %1215 = vmatprep.subr.mxu0 0.0
    %1216 = vmatpush1.xpose.msra.mxu0 0.0
    %1217 = vmatprep.subr.mxu0 0.0
    %1218 = vmatpush1.xpose.msra.mxu0 0.0
    %1219 = vmatprep.subr.mxu0 0.0
    %1220 = vmatpush1.xpose.msra.mxu0 0.0
    %1221 = vmatprep.subr.mxu0 0.0
    %1222 = vmatpush1.xpose.msra.mxu0 0.0
    %1223 = vmatprep.subr.mxu0 0.0
    %1224 = vmatpush1.xpose.msra.mxu0 0.0
    %1225 = vmatprep.subr.mxu0 0.0
    %1226 = vmatpush1.xpose.msra.mxu0 0.0
    %1227 = vmatprep.subr.mxu0 0.0
    %1228 = vmatpush1.xpose.msra.mxu0 0.0
    %1229 = vmatprep.subr.mxu0 0.0
    %1230 = vmatpush1.xpose.msra.mxu0 0.0
    %1231 = vmatprep.subr.mxu0 0.0
    %1232 = vmatpush1.xpose.msra.mxu0 0.0
    %1233 = vmatprep.subr.mxu0 0.0
    %1234 = vmatpush1.xpose.msra.mxu0 0.0
    %1235 = vmatprep.subr.mxu0 0.0
    %1236 = vmatpush1.xpose.msra.mxu0 0.0
    %1237 = vmatprep.subr.mxu0 0.0
    %1238 = vmatpush1.xpose.msra.mxu0 0.0
    %1239 = vmatprep.subr.mxu0 0.0
    %1240 = vmatpush1.xpose.msra.mxu0 0.0
    %1241 = vmatprep.subr.mxu0 0.0
    %1242 = vmatpush1.xpose.msra.mxu0 0.0
    %1243 = vmatprep.subr.mxu0 0.0
    %1244 = vmatpush1.xpose.msra.mxu0 0.0
    %1245 = vmatprep.mubr.f32.mxu0 0.0
    %1246 = vmatmul.mubr.f32.gmra.mrb[0].mxu0 %v1177
    %v1247 = vpop.f32.mrb[0].mxu0
    %v1248 = vadd.f32 0.0, %v1247
    %v1249 = vpop.f32.mrb[0].mxu0
    %1250 = vdwg.mxu0
    %v1251 = vsel %vm215, %v1248, -inf
    %1252 = vmax.xlane.f32.xlu0 %v1251
    %v1253 = vpop.xlane.xlu0 %1252
    %v1254 = vsub.f32 %v1248, %v1253
    %v1255 = vmul.f32 %v1254, 1.442695
    %v1256 = vpow.pop %v1255
    %v1257 = vsel %vm215, %v1256, 0.0
    %1258 = vadd.xlane.f32.xlu0 %v1257
    %v1259 = vpop.xlane.xlu0 %1258
    %v1260 = vrcp.pop %v1259
    %v1261 = vmul.f32 %v1256, %v1260
    %1262 = vrot.lane.b32.xlu0 %v209, 64
    %v1263 = vpop.permute.xlu0 %1262
    %v1266 = vsel %vm215, %v1261, 0
    %1268 = vmatprep.subr.mxu0 0.0
    %1269 = vmatpush1.msra.mxu0 %v1263
    %1270 = vmatprep.subr.mxu0 0.0
    %1271 = vmatpush1.msra.mxu0 0.0
    %1272 = vmatprep.subr.mxu0 0.0
    %1273 = vmatpush1.msra.mxu0 0.0
    %1274 = vmatprep.subr.mxu0 0.0
    %1275 = vmatpush1.msra.mxu0 0.0
    %1276 = vmatprep.subr.mxu0 0.0
    %1277 = vmatpush1.msra.mxu0 0.0
    %1278 = vmatprep.subr.mxu0 0.0
    %1279 = vmatpush1.msra.mxu0 0.0
    %1280 = vmatprep.subr.mxu0 0.0
    %1281 = vmatpush1.msra.mxu0 0.0
    %1282 = vmatprep.subr.mxu0 0.0
    %1283 = vmatpush1.msra.mxu0 0.0
    %1284 = vmatprep.subr.mxu0 0.0
    %1285 = vmatpush1.msra.mxu0 0.0
    %1286 = vmatprep.subr.mxu0 0.0
    %1287 = vmatpush1.msra.mxu0 0.0
    %1288 = vmatprep.subr.mxu0 0.0
    %1289 = vmatpush1.msra.mxu0 0.0
    %1290 = vmatprep.subr.mxu0 0.0
    %1291 = vmatpush1.msra.mxu0 0.0
    %1292 = vmatprep.subr.mxu0 0.0
    %1293 = vmatpush1.msra.mxu0 0.0
    %1294 = vmatprep.subr.mxu0 0.0
    %1295 = vmatpush1.msra.mxu0 0.0
    %1296 = vmatprep.subr.mxu0 0.0
    %1297 = vmatpush1.msra.mxu0 0.0
    %1298 = vmatprep.subr.mxu0 0.0
    %1299 = vmatpush1.msra.mxu0 0.0
    %1300 = vmatprep.subr.mxu0 0.0
    %1301 = vmatpush1.msra.mxu0 0.0
    %1302 = vmatprep.subr.mxu0 0.0
    %1303 = vmatpush1.msra.mxu0 0.0
    %1304 = vmatprep.subr.mxu0 0.0
    %1305 = vmatpush1.msra.mxu0 0.0
    %1306 = vmatprep.subr.mxu0 0.0
    %1307 = vmatpush1.msra.mxu0 0.0
    %1308 = vmatprep.subr.mxu0 0.0
    %1309 = vmatpush1.msra.mxu0 0.0
    %1310 = vmatprep.subr.mxu0 0.0
    %1311 = vmatpush1.msra.mxu0 0.0
    %1312 = vmatprep.subr.mxu0 0.0
    %1313 = vmatpush1.msra.mxu0 0.0
    %1314 = vmatprep.subr.mxu0 0.0
    %1315 = vmatpush1.msra.mxu0 0.0
    %1316 = vmatprep.subr.mxu0 0.0
    %1317 = vmatpush1.msra.mxu0 0.0
    %1318 = vmatprep.subr.mxu0 0.0
    %1319 = vmatpush1.msra.mxu0 0.0
    %1320 = vmatprep.subr.mxu0 0.0
    %1321 = vmatpush1.msra.mxu0 0.0
    %1322 = vmatprep.subr.mxu0 0.0
    %1323 = vmatpush1.msra.mxu0 0.0
    %1324 = vmatprep.subr.mxu0 0.0
    %1325 = vmatpush1.msra.mxu0 0.0
    %1326 = vmatprep.subr.mxu0 0.0
    %1327 = vmatpush1.msra.mxu0 0.0
    %1328 = vmatprep.subr.mxu0 0.0
    %1329 = vmatpush1.msra.mxu0 0.0
    %1330 = vmatprep.subr.mxu0 0.0
    %1331 = vmatpush1.msra.mxu0 0.0
    %1332 = vmatprep.mubr.f32.mxu0 0.0
    %1333 = vmatmul.mubr.f32.gmra.mrb[0].mxu0 %v1266
    %v1334 = vpop.f32.mrb[0].mxu0
    %v1335 = vadd.f32 0.0, %v1334
    %v1336 = vpop.f32.mrb[0].mxu0
    %1337 = vdwg.mxu0
    %v1339 = vsel %vm215, %v1335, 0
    %1341 = vmatprep.subr.mxu0 0.0
    %1342 = vmatpush1.msra.mxu0 %v101
    %1343 = vmatprep.subr.mxu0 0.0
    %1344 = vmatpush1.msra.mxu0 0.0
    %1345 = vmatprep.subr.mxu0 0.0
    %1346 = vmatpush1.msra.mxu0 0.0
    %1347 = vmatprep.subr.mxu0 0.0
    %1348 = vmatpush1.msra.mxu0 0.0
    %1349 = vmatprep.subr.mxu0 0.0
    %1350 = vmatpush1.msra.mxu0 0.0
    %1351 = vmatprep.subr.mxu0 0.0
    %1352 = vmatpush1.msra.mxu0 0.0
    %1353 = vmatprep.subr.mxu0 0.0
    %1354 = vmatpush1.msra.mxu0 0.0
    %1355 = vmatprep.subr.mxu0 0.0
    %1356 = vmatpush1.msra.mxu0 0.0
    %1357 = vmatprep.subr.mxu0 0.0
    %1358 = vmatpush1.msra.mxu0 0.0
    %1359 = vmatprep.subr.mxu0 0.0
    %1360 = vmatpush1.msra.mxu0 0.0
    %1361 = vmatprep.subr.mxu0 0.0
    %1362 = vmatpush1.msra.mxu0 0.0
    %1363 = vmatprep.subr.mxu0 0.0
    %1364 = vmatpush1.msra.mxu0 0.0
    %1365 = vmatprep.subr.mxu0 0.0
    %1366 = vmatpush1.msra.mxu0 0.0
    %1367 = vmatprep.subr.mxu0 0.0
    %1368 = vmatpush1.msra.mxu0 0.0
    %1369 = vmatprep.subr.mxu0 0.0
    %1370 = vmatpush1.msra.mxu0 0.0
    %1371 = vmatprep.subr.mxu0 0.0
    %1372 = vmatpush1.msra.mxu0 0.0
    %1373 = vmatprep.subr.mxu0 0.0
    %1374 = vmatpush1.msra.mxu0 0.0
    %1375 = vmatprep.subr.mxu0 0.0
    %1376 = vmatpush1.msra.mxu0 0.0
    %1377 = vmatprep.subr.mxu0 0.0
    %1378 = vmatpush1.msra.mxu0 0.0
    %1379 = vmatprep.subr.mxu0 0.0
    %1380 = vmatpush1.msra.mxu0 0.0
    %1381 = vmatprep.subr.mxu0 0.0
    %1382 = vmatpush1.msra.mxu0 0.0
    %1383 = vmatprep.subr.mxu0 0.0
    %1384 = vmatpush1.msra.mxu0 0.0
    %1385 = vmatprep.subr.mxu0 0.0
    %1386 = vmatpush1.msra.mxu0 0.0
    %1387 = vmatprep.subr.mxu0 0.0
    %1388 = vmatpush1.msra.mxu0 0.0
    %1389 = vmatprep.subr.mxu0 0.0
    %1390 = vmatpush1.msra.mxu0 0.0
    %1391 = vmatprep.subr.mxu0 0.0
    %1392 = vmatpush1.msra.mxu0 0.0
    %1393 = vmatprep.subr.mxu0 0.0
    %1394 = vmatpush1.msra.mxu0 0.0
    %1395 = vmatprep.subr.mxu0 0.0
    %1396 = vmatpush1.msra.mxu0 0.0
    %1397 = vmatprep.subr.mxu0 0.0
    %1398 = vmatpush1.msra.mxu0 0.0
    %1399 = vmatprep.subr.mxu0 0.0
    %1400 = vmatpush1.msra.mxu0 0.0
    %1401 = vmatprep.subr.mxu0 0.0
    %1402 = vmatpush1.msra.mxu0 0.0
    %1403 = vmatprep.subr.mxu0 0.0
    %1404 = vmatpush1.msra.mxu0 0.0
    %1405 = vmatprep.mubr.f32.mxu0 0.0
    %1406 = vmatmul.mubr.f32.gmra.mrb[0].mxu0 %v1339
    %v1407 = vpop.f32.mrb[0].mxu0
    %v1408 = vadd.f32 0.0, %v1407
    %v1409 = vpop.f32.mrb[0].mxu0
    %1410 = vdwg.mxu0
    %v1411 = vadd.f32 %v454, %v1408
    %1412 = vrot.lane.b32.xlu0 %v209, 120
    %v1413 = vpop.permute.xlu0 %1412
    %1414 = vrot.lane.b32.xlu0 %v209, 88
    %v1415 = vpop.permute.xlu0 %1414
    %v1416 = vsel %vm215, %v1413, 0
    %v1418 = vsel %vm215, %v1415, 0
    %1420 = vmatprep.subr.mxu0 0.0
    %1421 = vmatpush1.xpose.msra.mxu0 %v1418
    %1422 = vmatprep.subr.mxu0 0.0
    %1423 = vmatpush1.xpose.msra.mxu0 0.0
    %1424 = vmatprep.subr.mxu0 0.0
    %1425 = vmatpush1.xpose.msra.mxu0 0.0
    %1426 = vmatprep.subr.mxu0 0.0
    %1427 = vmatpush1.xpose.msra.mxu0 0.0
    %1428 = vmatprep.subr.mxu0 0.0
    %1429 = vmatpush1.xpose.msra.mxu0 0.0
    %1430 = vmatprep.subr.mxu0 0.0
    %1431 = vmatpush1.xpose.msra.mxu0 0.0
    %1432 = vmatprep.subr.mxu0 0.0
    %1433 = vmatpush1.xpose.msra.mxu0 0.0
    %1434 = vmatprep.subr.mxu0 0.0
    %1435 = vmatpush1.xpose.msra.mxu0 0.0
    %1436 = vmatprep.subr.mxu0 0.0
    %1437 = vmatpush1.xpose.msra.mxu0 0.0
    %1438 = vmatprep.subr.mxu0 0.0
    %1439 = vmatpush1.xpose.msra.mxu0 0.0
    %1440 = vmatprep.subr.mxu0 0.0
    %1441 = vmatpush1.xpose.msra.mxu0 0.0
    %1442 = vmatprep.subr.mxu0 0.0
    %1443 = vmatpush1.xpose.msra.mxu0 0.0
    %1444 = vmatprep.subr.mxu0 0.0
    %1445 = vmatpush1.xpose.msra.mxu0 0.0
    %1446 = vmatprep.subr.mxu0 0.0
    %1447 = vmatpush1.xpose.msra.mxu0 0.0
    %1448 = vmatprep.subr.mxu0 0.0
    %1449 = vmatpush1.xpose.msra.mxu0 0.0
    %1450 = vmatprep.subr.mxu0 0.0
    %1451 = vmatpush1.xpose.msra.mxu0 0.0
    %1452 = vmatprep.subr.mxu0 0.0
    %1453 = vmatpush1.xpose.msra.mxu0 0.0
    %1454 = vmatprep.subr.mxu0 0.0
    %1455 = vmatpush1.xpose.msra.mxu0 0.0
    %1456 = vmatprep.subr.mxu0 0.0
    %1457 = vmatpush1.xpose.msra.mxu0 0.0
    %1458 = vmatprep.subr.mxu0 0.0
    %1459 = vmatpush1.xpose.msra.mxu0 0.0
    %1460 = vmatprep.subr.mxu0 0.0
    %1461 = vmatpush1.xpose.msra.mxu0 0.0
    %1462 = vmatprep.subr.mxu0 0.0
    %1463 = vmatpush1.xpose.msra.mxu0 0.0
    %1464 = vmatprep.subr.mxu0 0.0
    %1465 = vmatpush1.xpose.msra.mxu0 0.0
    %1466 = vmatprep.subr.mxu0 0.0
    %1467 = vmatpush1.xpose.msra.mxu0 0.0
    %1468 = vmatprep.subr.mxu0 0.0
    %1469 = vmatpush1.xpose.msra.mxu0 0.0
    %1470 = vmatprep.subr.mxu0 0.0
    %1471 = vmatpush1.xpose.msra.mxu0 0.0
    %1472 = vmatprep.subr.mxu0 0.0
    %1473 = vmatpush1.xpose.msra.mxu0 0.0
    %1474 = vmatprep.subr.mxu0 0.0
    %1475 = vmatpush1.xpose.msra.mxu0 0.0
    %1476 = vmatprep.subr.mxu0 0.0
    %1477 = vmatpush1.xpose.msra.mxu0 0.0
    %1478 = vmatprep.subr.mxu0 0.0
    %1479 = vmatpush1.xpose.msra.mxu0 0.0
    %1480 = vmatprep.subr.mxu0 0.0
    %1481 = vmatpush1.xpose.msra.mxu0 0.0
    %1482 = vmatprep.subr.mxu0 0.0
    %1483 = vmatpush1.xpose.msra.mxu0 0.0
    %1484 = vmatprep.mubr.f32.mxu0 0.0
    %1485 = vmatmul.mubr.f32.gmra.mrb[0].mxu0 %v1416
    %v1486 = vpop.f32.mrb[0].mxu0
    %v1487 = vadd.f32 0.0, %v1486
    %v1488 = vpop.f32.mrb[0].mxu0
    %1489 = vdwg.mxu0
    %v1490 = vsel %vm215, %v1487, -inf
    %1491 = vmax.xlane.f32.xlu0 %v1490
    %v1492 = vpop.xlane.xlu0 %1491
    %v1493 = vsub.f32 %v1487, %v1492
    %v1494 = vmul.f32 %v1493, 1.442695
    %v1495 = vpow.pop %v1494
    %v1496 = vsel %vm215, %v1495, 0.0
    %1497 = vadd.xlane.f32.xlu0 %v1496
    %v1498 = vpop.xlane.xlu0 %1497
    %v1499 = vrcp.pop %v1498
    %v1500 = vmul.f32 %v1495, %v1499
    %1501 = vrot.lane.b32.xlu0 %v209, 56
    %v1502 = vpop.permute.xlu0 %1501
    %v1505 = vsel %vm215, %v1500, 0
    %1507 = vmatprep.subr.mxu0 0.0
    %1508 = vmatpush1.msra.mxu0 %v1502
    %1509 = vmatprep.subr.mxu0 0.0
    %1510 = vmatpush1.msra.mxu0 0.0
    %1511 = vmatprep.subr.mxu0 0.0
    %1512 = vmatpush1.msra.mxu0 0.0
    %1513 = vmatprep.subr.mxu0 0.0
    %1514 = vmatpush1.msra.mxu0 0.0
    %1515 = vmatprep.subr.mxu0 0.0
    %1516 = vmatpush1.msra.mxu0 0.0
    %1517 = vmatprep.subr.mxu0 0.0
    %1518 = vmatpush1.msra.mxu0 0.0
    %1519 = vmatprep.subr.mxu0 0.0
    %1520 = vmatpush1.msra.mxu0 0.0
    %1521 = vmatprep.subr.mxu0 0.0
    %1522 = vmatpush1.msra.mxu0 0.0
    %1523 = vmatprep.subr.mxu0 0.0
    %1524 = vmatpush1.msra.mxu0 0.0
    %1525 = vmatprep.subr.mxu0 0.0
    %1526 = vmatpush1.msra.mxu0 0.0
    %1527 = vmatprep.subr.mxu0 0.0
    %1528 = vmatpush1.msra.mxu0 0.0
    %1529 = vmatprep.subr.mxu0 0.0
    %1530 = vmatpush1.msra.mxu0 0.0
    %1531 = vmatprep.subr.mxu0 0.0
    %1532 = vmatpush1.msra.mxu0 0.0
    %1533 = vmatprep.subr.mxu0 0.0
    %1534 = vmatpush1.msra.mxu0 0.0
    %1535 = vmatprep.subr.mxu0 0.0
    %1536 = vmatpush1.msra.mxu0 0.0
    %1537 = vmatprep.subr.mxu0 0.0
    %1538 = vmatpush1.msra.mxu0 0.0
    %1539 = vmatprep.subr.mxu0 0.0
    %1540 = vmatpush1.msra.mxu0 0.0
    %1541 = vmatprep.subr.mxu0 0.0
    %1542 = vmatpush1.msra.mxu0 0.0
    %1543 = vmatprep.subr.mxu0 0.0
    %1544 = vmatpush1.msra.mxu0 0.0
    %1545 = vmatprep.subr.mxu0 0.0
    %1546 = vmatpush1.msra.mxu0 0.0
    %1547 = vmatprep.subr.mxu0 0.0
    %1548 = vmatpush1.msra.mxu0 0.0
    %1549 = vmatprep.subr.mxu0 0.0
    %1550 = vmatpush1.msra.mxu0 0.0
    %1551 = vmatprep.subr.mxu0 0.0
    %1552 = vmatpush1.msra.mxu0 0.0
    %1553 = vmatprep.subr.mxu0 0.0
    %1554 = vmatpush1.msra.mxu0 0.0
    %1555 = vmatprep.subr.mxu0 0.0
    %1556 = vmatpush1.msra.mxu0 0.0
    %1557 = vmatprep.subr.mxu0 0.0
    %1558 = vmatpush1.msra.mxu0 0.0
    %1559 = vmatprep.subr.mxu0 0.0
    %1560 = vmatpush1.msra.mxu0 0.0
    %1561 = vmatprep.subr.mxu0 0.0
    %1562 = vmatpush1.msra.mxu0 0.0
    %1563 = vmatprep.subr.mxu0 0.0
    %1564 = vmatpush1.msra.mxu0 0.0
    %1565 = vmatprep.subr.mxu0 0.0
    %1566 = vmatpush1.msra.mxu0 0.0
    %1567 = vmatprep.subr.mxu0 0.0
    %1568 = vmatpush1.msra.mxu0 0.0
    %1569 = vmatprep.subr.mxu0 0.0
    %1570 = vmatpush1.msra.mxu0 0.0
    %1571 = vmatprep.mubr.f32.mxu0 0.0
    %1572 = vmatmul.mubr.f32.gmra.mrb[0].mxu0 %v1505
    %v1573 = vpop.f32.mrb[0].mxu0
    %v1574 = vadd.f32 0.0, %v1573
    %v1575 = vpop.f32.mrb[0].mxu0
    %1576 = vdwg.mxu0
    %v1578 = vsel %vm215, %v1574, 0
    %1580 = vmatprep.subr.mxu0 0.0
    %1581 = vmatpush1.msra.mxu0 %v102
    %1582 = vmatprep.subr.mxu0 0.0
    %1583 = vmatpush1.msra.mxu0 0.0
    %1584 = vmatprep.subr.mxu0 0.0
    %1585 = vmatpush1.msra.mxu0 0.0
    %1586 = vmatprep.subr.mxu0 0.0
    %1587 = vmatpush1.msra.mxu0 0.0
    %1588 = vmatprep.subr.mxu0 0.0
    %1589 = vmatpush1.msra.mxu0 0.0
    %1590 = vmatprep.subr.mxu0 0.0
    %1591 = vmatpush1.msra.mxu0 0.0
    %1592 = vmatprep.subr.mxu0 0.0
    %1593 = vmatpush1.msra.mxu0 0.0
    %1594 = vmatprep.subr.mxu0 0.0
    %1595 = vmatpush1.msra.mxu0 0.0
    %1596 = vmatprep.subr.mxu0 0.0
    %1597 = vmatpush1.msra.mxu0 0.0
    %1598 = vmatprep.subr.mxu0 0.0
    %1599 = vmatpush1.msra.mxu0 0.0
    %1600 = vmatprep.subr.mxu0 0.0
    %1601 = vmatpush1.msra.mxu0 0.0
    %1602 = vmatprep.subr.mxu0 0.0
    %1603 = vmatpush1.msra.mxu0 0.0
    %1604 = vmatprep.subr.mxu0 0.0
    %1605 = vmatpush1.msra.mxu0 0.0
    %1606 = vmatprep.subr.mxu0 0.0
    %1607 = vmatpush1.msra.mxu0 0.0
    %1608 = vmatprep.subr.mxu0 0.0
    %1609 = vmatpush1.msra.mxu0 0.0
    %1610 = vmatprep.subr.mxu0 0.0
    %1611 = vmatpush1.msra.mxu0 0.0
    %1612 = vmatprep.subr.mxu0 0.0
    %1613 = vmatpush1.msra.mxu0 0.0
    %1614 = vmatprep.subr.mxu0 0.0
    %1615 = vmatpush1.msra.mxu0 0.0
    %1616 = vmatprep.subr.mxu0 0.0
    %1617 = vmatpush1.msra.mxu0 0.0
    %1618 = vmatprep.subr.mxu0 0.0
    %1619 = vmatpush1.msra.mxu0 0.0
    %1620 = vmatprep.subr.mxu0 0.0
    %1621 = vmatpush1.msra.mxu0 0.0
    %1622 = vmatprep.subr.mxu0 0.0
    %1623 = vmatpush1.msra.mxu0 0.0
    %1624 = vmatprep.subr.mxu0 0.0
    %1625 = vmatpush1.msra.mxu0 0.0
    %1626 = vmatprep.subr.mxu0 0.0
    %1627 = vmatpush1.msra.mxu0 0.0
    %1628 = vmatprep.subr.mxu0 0.0
    %1629 = vmatpush1.msra.mxu0 0.0
    %1630 = vmatprep.subr.mxu0 0.0
    %1631 = vmatpush1.msra.mxu0 0.0
    %1632 = vmatprep.subr.mxu0 0.0
    %1633 = vmatpush1.msra.mxu0 0.0
    %1634 = vmatprep.subr.mxu0 0.0
    %1635 = vmatpush1.msra.mxu0 0.0
    %1636 = vmatprep.subr.mxu0 0.0
    %1637 = vmatpush1.msra.mxu0 0.0
    %1638 = vmatprep.subr.mxu0 0.0
    %1639 = vmatpush1.msra.mxu0 0.0
    %1640 = vmatprep.subr.mxu0 0.0
    %1641 = vmatpush1.msra.mxu0 0.0
    %1642 = vmatprep.subr.mxu0 0.0
    %1643 = vmatpush1.msra.mxu0 0.0
    %1644 = vmatprep.mubr.f32.mxu0 0.0
    %1645 = vmatmul.mubr.f32.gmra.mrb[0].mxu0 %v1578
    %v1646 = vpop.f32.mrb[0].mxu0
    %v1647 = vadd.f32 0.0, %v1646
    %v1648 = vpop.f32.mrb[0].mxu0
    %1649 = vdwg.mxu0
    %v1650 = vadd.f32 %v1411, %v1647
    %1651 = vrot.lane.b32.xlu0 %v209, 112
    %v1652 = vpop.permute.xlu0 %1651
    %1653 = vrot.lane.b32.xlu0 %v209, 80
    %v1654 = vpop.permute.xlu0 %1653
    %v1655 = vsel %vm215, %v1652, 0
    %v1657 = vsel %vm215, %v1654, 0
    %1659 = vmatprep.subr.mxu0 0.0
    %1660 = vmatpush1.xpose.msra.mxu0 %v1657
    %1661 = vmatprep.subr.mxu0 0.0
    %1662 = vmatpush1.xpose.msra.mxu0 0.0
    %1663 = vmatprep.subr.mxu0 0.0
    %1664 = vmatpush1.xpose.msra.mxu0 0.0
    %1665 = vmatprep.subr.mxu0 0.0
    %1666 = vmatpush1.xpose.msra.mxu0 0.0
    %1667 = vmatprep.subr.mxu0 0.0
    %1668 = vmatpush1.xpose.msra.mxu0 0.0
    %1669 = vmatprep.subr.mxu0 0.0
    %1670 = vmatpush1.xpose.msra.mxu0 0.0
    %1671 = vmatprep.subr.mxu0 0.0
    %1672 = vmatpush1.xpose.msra.mxu0 0.0
    %1673 = vmatprep.subr.mxu0 0.0
    %1674 = vmatpush1.xpose.msra.mxu0 0.0
    %1675 = vmatprep.subr.mxu0 0.0
    %1676 = vmatpush1.xpose.msra.mxu0 0.0
    %1677 = vmatprep.subr.mxu0 0.0
    %1678 = vmatpush1.xpose.msra.mxu0 0.0
    %1679 = vmatprep.subr.mxu0 0.0
    %1680 = vmatpush1.xpose.msra.mxu0 0.0
    %1681 = vmatprep.subr.mxu0 0.0
    %1682 = vmatpush1.xpose.msra.mxu0 0.0
    %1683 = vmatprep.subr.mxu0 0.0
    %1684 = vmatpush1.xpose.msra.mxu0 0.0
    %1685 = vmatprep.subr.mxu0 0.0
    %1686 = vmatpush1.xpose.msra.mxu0 0.0
    %1687 = vmatprep.subr.mxu0 0.0
    %1688 = vmatpush1.xpose.msra.mxu0 0.0
    %1689 = vmatprep.subr.mxu0 0.0
    %1690 = vmatpush1.xpose.msra.mxu0 0.0
    %1691 = vmatprep.subr.mxu0 0.0
    %1692 = vmatpush1.xpose.msra.mxu0 0.0
    %1693 = vmatprep.subr.mxu0 0.0
    %1694 = vmatpush1.xpose.msra.mxu0 0.0
    %1695 = vmatprep.subr.mxu0 0.0
    %1696 = vmatpush1.xpose.msra.mxu0 0.0
    %1697 = vmatprep.subr.mxu0 0.0
    %1698 = vmatpush1.xpose.msra.mxu0 0.0
    %1699 = vmatprep.subr.mxu0 0.0
    %1700 = vmatpush1.xpose.msra.mxu0 0.0
    %1701 = vmatprep.subr.mxu0 0.0
    %1702 = vmatpush1.xpose.msra.mxu0 0.0
    %1703 = vmatprep.subr.mxu0 0.0
    %1704 = vmatpush1.xpose.msra.mxu0 0.0
    %1705 = vmatprep.subr.mxu0 0.0
    %1706 = vmatpush1.xpose.msra.mxu0 0.0
    %1707 = vmatprep.subr.mxu0 0.0
    %1708 = vmatpush1.xpose.msra.mxu0 0.0
    %1709 = vmatprep.subr.mxu0 0.0
    %1710 = vmatpush1.xpose.msra.mxu0 0.0
    %1711 = vmatprep.subr.mxu0 0.0
    %1712 = vmatpush1.xpose.msra.mxu0 0.0
    %1713 = vmatprep.subr.mxu0 0.0
    %1714 = vmatpush1.xpose.msra.mxu0 0.0
    %1715 = vmatprep.subr.mxu0 0.0
    %1716 = vmatpush1.xpose.msra.mxu0 0.0
    %1717 = vmatprep.subr.mxu0 0.0
    %1718 = vmatpush1.xpose.msra.mxu0 0.0
    %1719 = vmatprep.subr.mxu0 0.0
    %1720 = vmatpush1.xpose.msra.mxu0 0.0
    %1721 = vmatprep.subr.mxu0 0.0
    %1722 = vmatpush1.xpose.msra.mxu0 0.0
    %1723 = vmatprep.mubr.f32.mxu0 0.0
    %1724 = vmatmul.mubr.f32.gmra.mrb[0].mxu0 %v1655
    %v1725 = vpop.f32.mrb[0].mxu0
    %v1726 = vadd.f32 0.0, %v1725
    %v1727 = vpop.f32.mrb[0].mxu0
    %1728 = vdwg.mxu0
    %v1729 = vsel %vm215, %v1726, -inf
    %1730 = vmax.xlane.f32.xlu0 %v1729
    %v1731 = vpop.xlane.xlu0 %1730
    %v1732 = vsub.f32 %v1726, %v1731
    %v1733 = vmul.f32 %v1732, 1.442695
    %v1734 = vpow.pop %v1733
    %v1735 = vsel %vm215, %v1734, 0.0
    %1736 = vadd.xlane.f32.xlu0 %v1735
    %v1737 = vpop.xlane.xlu0 %1736
    %v1738 = vrcp.pop %v1737
    %v1739 = vmul.f32 %v1734, %v1738
    %1740 = vrot.lane.b32.xlu0 %v209, 48
    %v1741 = vpop.permute.xlu0 %1740
    %v1744 = vsel %vm215, %v1739, 0
    %1746 = vmatprep.subr.mxu0 0.0
    %1747 = vmatpush1.msra.mxu0 %v1741
    %1748 = vmatprep.subr.mxu0 0.0
    %1749 = vmatpush1.msra.mxu0 0.0
    %1750 = vmatprep.subr.mxu0 0.0
    %1751 = vmatpush1.msra.mxu0 0.0
    %1752 = vmatprep.subr.mxu0 0.0
    %1753 = vmatpush1.msra.mxu0 0.0
    %1754 = vmatprep.subr.mxu0 0.0
    %1755 = vmatpush1.msra.mxu0 0.0
    %1756 = vmatprep.subr.mxu0 0.0
    %1757 = vmatpush1.msra.mxu0 0.0
    %1758 = vmatprep.subr.mxu0 0.0
    %1759 = vmatpush1.msra.mxu0 0.0
    %1760 = vmatprep.subr.mxu0 0.0
    %1761 = vmatpush1.msra.mxu0 0.0
    %1762 = vmatprep.subr.mxu0 0.0
    %1763 = vmatpush1.msra.mxu0 0.0
    %1764 = vmatprep.subr.mxu0 0.0
    %1765 = vmatpush1.msra.mxu0 0.0
    %1766 = vmatprep.subr.mxu0 0.0
    %1767 = vmatpush1.msra.mxu0 0.0
    %1768 = vmatprep.subr.mxu0 0.0
    %1769 = vmatpush1.msra.mxu0 0.0
    %1770 = vmatprep.subr.mxu0 0.0
    %1771 = vmatpush1.msra.mxu0 0.0
    %1772 = vmatprep.subr.mxu0 0.0
    %1773 = vmatpush1.msra.mxu0 0.0
    %1774 = vmatprep.subr.mxu0 0.0
    %1775 = vmatpush1.msra.mxu0 0.0
    %1776 = vmatprep.subr.mxu0 0.0
    %1777 = vmatpush1.msra.mxu0 0.0
    %1778 = vmatprep.subr.mxu0 0.0
    %1779 = vmatpush1.msra.mxu0 0.0
    %1780 = vmatprep.subr.mxu0 0.0
    %1781 = vmatpush1.msra.mxu0 0.0
    %1782 = vmatprep.subr.mxu0 0.0
    %1783 = vmatpush1.msra.mxu0 0.0
    %1784 = vmatprep.subr.mxu0 0.0
    %1785 = vmatpush1.msra.mxu0 0.0
    %1786 = vmatprep.subr.mxu0 0.0
    %1787 = vmatpush1.msra.mxu0 0.0
    %1788 = vmatprep.subr.mxu0 0.0
    %1789 = vmatpush1.msra.mxu0 0.0
    %1790 = vmatprep.subr.mxu0 0.0
    %1791 = vmatpush1.msra.mxu0 0.0
    %1792 = vmatprep.subr.mxu0 0.0
    %1793 = vmatpush1.msra.mxu0 0.0
    %1794 = vmatprep.subr.mxu0 0.0
    %1795 = vmatpush1.msra.mxu0 0.0
    %1796 = vmatprep.subr.mxu0 0.0
    %1797 = vmatpush1.msra.mxu0 0.0
    %1798 = vmatprep.subr.mxu0 0.0
    %1799 = vmatpush1.msra.mxu0 0.0
    %1800 = vmatprep.subr.mxu0 0.0
    %1801 = vmatpush1.msra.mxu0 0.0
    %1802 = vmatprep.subr.mxu0 0.0
    %1803 = vmatpush1.msra.mxu0 0.0
    %1804 = vmatprep.subr.mxu0 0.0
    %1805 = vmatpush1.msra.mxu0 0.0
    %1806 = vmatprep.subr.mxu0 0.0
    %1807 = vmatpush1.msra.mxu0 0.0
    %1808 = vmatprep.subr.mxu0 0.0
    %1809 = vmatpush1.msra.mxu0 0.0
    %1810 = vmatprep.mubr.f32.mxu0 0.0
    %1811 = vmatmul.mubr.f32.gmra.mrb[0].mxu0 %v1744
    %v1812 = vpop.f32.mrb[0].mxu0
    %v1813 = vadd.f32 0.0, %v1812
    %v1814 = vpop.f32.mrb[0].mxu0
    %1815 = vdwg.mxu0
    %v1817 = vsel %vm215, %v1813, 0
    %1819 = vmatprep.subr.mxu0 0.0
    %1820 = vmatpush1.msra.mxu0 %v103
    %1821 = vmatprep.subr.mxu0 0.0
    %1822 = vmatpush1.msra.mxu0 0.0
    %1823 = vmatprep.subr.mxu0 0.0
    %1824 = vmatpush1.msra.mxu0 0.0
    %1825 = vmatprep.subr.mxu0 0.0
    %1826 = vmatpush1.msra.mxu0 0.0
    %1827 = vmatprep.subr.mxu0 0.0
    %1828 = vmatpush1.msra.mxu0 0.0
    %1829 = vmatprep.subr.mxu0 0.0
    %1830 = vmatpush1.msra.mxu0 0.0
    %1831 = vmatprep.subr.mxu0 0.0
    %1832 = vmatpush1.msra.mxu0 0.0
    %1833 = vmatprep.subr.mxu0 0.0
    %1834 = vmatpush1.msra.mxu0 0.0
    %1835 = vmatprep.subr.mxu0 0.0
    %1836 = vmatpush1.msra.mxu0 0.0
    %1837 = vmatprep.subr.mxu0 0.0
    %1838 = vmatpush1.msra.mxu0 0.0
    %1839 = vmatprep.subr.mxu0 0.0
    %1840 = vmatpush1.msra.mxu0 0.0
    %1841 = vmatprep.subr.mxu0 0.0
    %1842 = vmatpush1.msra.mxu0 0.0
    %1843 = vmatprep.subr.mxu0 0.0
    %1844 = vmatpush1.msra.mxu0 0.0
    %1845 = vmatprep.subr.mxu0 0.0
    %1846 = vmatpush1.msra.mxu0 0.0
    %1847 = vmatprep.subr.mxu0 0.0
    %1848 = vmatpush1.msra.mxu0 0.0
    %1849 = vmatprep.subr.mxu0 0.0
    %1850 = vmatpush1.msra.mxu0 0.0
    %1851 = vmatprep.subr.mxu0 0.0
    %1852 = vmatpush1.msra.mxu0 0.0
    %1853 = vmatprep.subr.mxu0 0.0
    %1854 = vmatpush1.msra.mxu0 0.0
    %1855 = vmatprep.subr.mxu0 0.0
    %1856 = vmatpush1.msra.mxu0 0.0
    %1857 = vmatprep.subr.mxu0 0.0
    %1858 = vmatpush1.msra.mxu0 0.0
    %1859 = vmatprep.subr.mxu0 0.0
    %1860 = vmatpush1.msra.mxu0 0.0
    %1861 = vmatprep.subr.mxu0 0.0
    %1862 = vmatpush1.msra.mxu0 0.0
    %1863 = vmatprep.subr.mxu0 0.0
    %1864 = vmatpush1.msra.mxu0 0.0
    %1865 = vmatprep.subr.mxu0 0.0
    %1866 = vmatpush1.msra.mxu0 0.0
    %1867 = vmatprep.subr.mxu0 0.0
    %1868 = vmatpush1.msra.mxu0 0.0
    %1869 = vmatprep.subr.mxu0 0.0
    %1870 = vmatpush1.msra.mxu0 0.0
    %1871 = vmatprep.subr.mxu0 0.0
    %1872 = vmatpush1.msra.mxu0 0.0
    %1873 = vmatprep.subr.mxu0 0.0
    %1874 = vmatpush1.msra.mxu0 0.0
    %1875 = vmatprep.subr.mxu0 0.0
    %1876 = vmatpush1.msra.mxu0 0.0
    %1877 = vmatprep.subr.mxu0 0.0
    %1878 = vmatpush1.msra.mxu0 0.0
    %1879 = vmatprep.subr.mxu0 0.0
    %1880 = vmatpush1.msra.mxu0 0.0
    %1881 = vmatprep.subr.mxu0 0.0
    %1882 = vmatpush1.msra.mxu0 0.0
    %1883 = vmatprep.mubr.f32.mxu0 0.0
    %1884 = vmatmul.mubr.f32.gmra.mrb[0].mxu0 %v1817
    %v1885 = vpop.f32.mrb[0].mxu0
    %v1886 = vadd.f32 0.0, %v1885
    %v1887 = vpop.f32.mrb[0].mxu0
    %1888 = vdwg.mxu0
    %v1889 = vadd.f32 %v1650, %v1886
    %1890 = vrot.lane.b32.xlu0 %v209, 104
    %v1891 = vpop.permute.xlu0 %1890
    %1892 = vrot.lane.b32.xlu0 %v209, 72
    %v1893 = vpop.permute.xlu0 %1892
    %v1894 = vsel %vm215, %v1891, 0
    %v1896 = vsel %vm215, %v1893, 0
    %1898 = vmatprep.subr.mxu0 0.0
    %1899 = vmatpush1.xpose.msra.mxu0 %v1896
    %1900 = vmatprep.subr.mxu0 0.0
    %1901 = vmatpush1.xpose.msra.mxu0 0.0
    %1902 = vmatprep.subr.mxu0 0.0
    %1903 = vmatpush1.xpose.msra.mxu0 0.0
    %1904 = vmatprep.subr.mxu0 0.0
    %1905 = vmatpush1.xpose.msra.mxu0 0.0
    %1906 = vmatprep.subr.mxu0 0.0
    %1907 = vmatpush1.xpose.msra.mxu0 0.0
    %1908 = vmatprep.subr.mxu0 0.0
    %1909 = vmatpush1.xpose.msra.mxu0 0.0
    %1910 = vmatprep.subr.mxu0 0.0
    %1911 = vmatpush1.xpose.msra.mxu0 0.0
    %1912 = vmatprep.subr.mxu0 0.0
    %1913 = vmatpush1.xpose.msra.mxu0 0.0
    %1914 = vmatprep.subr.mxu0 0.0
    %1915 = vmatpush1.xpose.msra.mxu0 0.0
    %1916 = vmatprep.subr.mxu0 0.0
    %1917 = vmatpush1.xpose.msra.mxu0 0.0
    %1918 = vmatprep.subr.mxu0 0.0
    %1919 = vmatpush1.xpose.msra.mxu0 0.0
    %1920 = vmatprep.subr.mxu0 0.0
    %1921 = vmatpush1.xpose.msra.mxu0 0.0
    %1922 = vmatprep.subr.mxu0 0.0
    %1923 = vmatpush1.xpose.msra.mxu0 0.0
    %1924 = vmatprep.subr.mxu0 0.0
    %1925 = vmatpush1.xpose.msra.mxu0 0.0
    %1926 = vmatprep.subr.mxu0 0.0
    %1927 = vmatpush1.xpose.msra.mxu0 0.0
    %1928 = vmatprep.subr.mxu0 0.0
    %1929 = vmatpush1.xpose.msra.mxu0 0.0
    %1930 = vmatprep.subr.mxu0 0.0
    %1931 = vmatpush1.xpose.msra.mxu0 0.0
    %1932 = vmatprep.subr.mxu0 0.0
    %1933 = vmatpush1.xpose.msra.mxu0 0.0
    %1934 = vmatprep.subr.mxu0 0.0
    %1935 = vmatpush1.xpose.msra.mxu0 0.0
    %1936 = vmatprep.subr.mxu0 0.0
    %1937 = vmatpush1.xpose.msra.mxu0 0.0
    %1938 = vmatprep.subr.mxu0 0.0
    %1939 = vmatpush1.xpose.msra.mxu0 0.0
    %1940 = vmatprep.subr.mxu0 0.0
    %1941 = vmatpush1.xpose.msra.mxu0 0.0
    %1942 = vmatprep.subr.mxu0 0.0
    %1943 = vmatpush1.xpose.msra.mxu0 0.0
    %1944 = vmatprep.subr.mxu0 0.0
    %1945 = vmatpush1.xpose.msra.mxu0 0.0
    %1946 = vmatprep.subr.mxu0 0.0
    %1947 = vmatpush1.xpose.msra.mxu0 0.0
    %1948 = vmatprep.subr.mxu0 0.0
    %1949 = vmatpush1.xpose.msra.mxu0 0.0
    %1950 = vmatprep.subr.mxu0 0.0
    %1951 = vmatpush1.xpose.msra.mxu0 0.0
    %1952 = vmatprep.subr.mxu0 0.0
    %1953 = vmatpush1.xpose.msra.mxu0 0.0
    %1954 = vmatprep.subr.mxu0 0.0
    %1955 = vmatpush1.xpose.msra.mxu0 0.0
    %1956 = vmatprep.subr.mxu0 0.0
    %1957 = vmatpush1.xpose.msra.mxu0 0.0
    %1958 = vmatprep.subr.mxu0 0.0
    %1959 = vmatpush1.xpose.msra.mxu0 0.0
    %1960 = vmatprep.subr.mxu0 0.0
    %1961 = vmatpush1.xpose.msra.mxu0 0.0
    %1962 = vmatprep.mubr.f32.mxu0 0.0
    %1963 = vmatmul.mubr.f32.gmra.mrb[0].mxu0 %v1894
    %v1964 = vpop.f32.mrb[0].mxu0
    %v1965 = vadd.f32 0.0, %v1964
    %v1966 = vpop.f32.mrb[0].mxu0
    %1967 = vdwg.mxu0
    %v1968 = vsel %vm215, %v1965, -inf
    %1969 = vmax.xlane.f32.xlu0 %v1968
    %v1970 = vpop.xlane.xlu0 %1969
    %v1971 = vsub.f32 %v1965, %v1970
    %v1972 = vmul.f32 %v1971, 1.442695
    %v1973 = vpow.pop %v1972
    %v1974 = vsel %vm215, %v1973, 0.0
    %1975 = vadd.xlane.f32.xlu0 %v1974
    %v1976 = vpop.xlane.xlu0 %1975
    %v1977 = vrcp.pop %v1976
    %v1978 = vmul.f32 %v1973, %v1977
    %1979 = vrot.lane.b32.xlu0 %v209, 40
    %v1980 = vpop.permute.xlu0 %1979
    %v1983 = vsel %vm215, %v1978, 0
    %1985 = vmatprep.subr.mxu0 0.0
    %1986 = vmatpush1.msra.mxu0 %v1980
    %1987 = vmatprep.subr.mxu0 0.0
    %1988 = vmatpush1.msra.mxu0 0.0
    %1989 = vmatprep.subr.mxu0 0.0
    %1990 = vmatpush1.msra.mxu0 0.0
    %1991 = vmatprep.subr.mxu0 0.0
    %1992 = vmatpush1.msra.mxu0 0.0
    %1993 = vmatprep.subr.mxu0 0.0
    %1994 = vmatpush1.msra.mxu0 0.0
    %1995 = vmatprep.subr.mxu0 0.0
    %1996 = vmatpush1.msra.mxu0 0.0
    %1997 = vmatprep.subr.mxu0 0.0
    %1998 = vmatpush1.msra.mxu0 0.0
    %1999 = vmatprep.subr.mxu0 0.0
    %2000 = vmatpush1.msra.mxu0 0.0
    %2001 = vmatprep.subr.mxu0 0.0
    %2002 = vmatpush1.msra.mxu0 0.0
    %2003 = vmatprep.subr.mxu0 0.0
    %2004 = vmatpush1.msra.mxu0 0.0
    %2005 = vmatprep.subr.mxu0 0.0
    %2006 = vmatpush1.msra.mxu0 0.0
    %2007 = vmatprep.subr.mxu0 0.0
    %2008 = vmatpush1.msra.mxu0 0.0
    %2009 = vmatprep.subr.mxu0 0.0
    %2010 = vmatpush1.msra.mxu0 0.0
    %2011 = vmatprep.subr.mxu0 0.0
    %2012 = vmatpush1.msra.mxu0 0.0
    %2013 = vmatprep.subr.mxu0 0.0
    %2014 = vmatpush1.msra.mxu0 0.0
    %2015 = vmatprep.subr.mxu0 0.0
    %2016 = vmatpush1.msra.mxu0 0.0
    %2017 = vmatprep.subr.mxu0 0.0
    %2018 = vmatpush1.msra.mxu0 0.0
    %2019 = vmatprep.subr.mxu0 0.0
    %2020 = vmatpush1.msra.mxu0 0.0
    %2021 = vmatprep.subr.mxu0 0.0
    %2022 = vmatpush1.msra.mxu0 0.0
    %2023 = vmatprep.subr.mxu0 0.0
    %2024 = vmatpush1.msra.mxu0 0.0
    %2025 = vmatprep.subr.mxu0 0.0
    %2026 = vmatpush1.msra.mxu0 0.0
    %2027 = vmatprep.subr.mxu0 0.0
    %2028 = vmatpush1.msra.mxu0 0.0
    %2029 = vmatprep.subr.mxu0 0.0
    %2030 = vmatpush1.msra.mxu0 0.0
    %2031 = vmatprep.subr.mxu0 0.0
    %2032 = vmatpush1.msra.mxu0 0.0
    %2033 = vmatprep.subr.mxu0 0.0
    %2034 = vmatpush1.msra.mxu0 0.0
    %2035 = vmatprep.subr.mxu0 0.0
    %2036 = vmatpush1.msra.mxu0 0.0
    %2037 = vmatprep.subr.mxu0 0.0
    %2038 = vmatpush1.msra.mxu0 0.0
    %2039 = vmatprep.subr.mxu0 0.0
    %2040 = vmatpush1.msra.mxu0 0.0
    %2041 = vmatprep.subr.mxu0 0.0
    %2042 = vmatpush1.msra.mxu0 0.0
    %2043 = vmatprep.subr.mxu0 0.0
    %2044 = vmatpush1.msra.mxu0 0.0
    %2045 = vmatprep.subr.mxu0 0.0
    %2046 = vmatpush1.msra.mxu0 0.0
    %2047 = vmatprep.subr.mxu0 0.0
    %2048 = vmatpush1.msra.mxu0 0.0
    %2049 = vmatprep.mubr.f32.mxu0 0.0
    %2050 = vmatmul.mubr.f32.gmra.mrb[0].mxu0 %v1983
    %v2051 = vpop.f32.mrb[0].mxu0
    %v2052 = vadd.f32 0.0, %v2051
    %v2053 = vpop.f32.mrb[0].mxu0
    %2054 = vdwg.mxu0
    %v2056 = vsel %vm215, %v2052, 0
    %2058 = vmatprep.subr.mxu0 0.0
    %2059 = vmatpush1.msra.mxu0 %v104
    %2060 = vmatprep.subr.mxu0 0.0
    %2061 = vmatpush1.msra.mxu0 0.0
    %2062 = vmatprep.subr.mxu0 0.0
    %2063 = vmatpush1.msra.mxu0 0.0
    %2064 = vmatprep.subr.mxu0 0.0
    %2065 = vmatpush1.msra.mxu0 0.0
    %2066 = vmatprep.subr.mxu0 0.0
    %2067 = vmatpush1.msra.mxu0 0.0
    %2068 = vmatprep.subr.mxu0 0.0
    %2069 = vmatpush1.msra.mxu0 0.0
    %2070 = vmatprep.subr.mxu0 0.0
    %2071 = vmatpush1.msra.mxu0 0.0
    %2072 = vmatprep.subr.mxu0 0.0
    %2073 = vmatpush1.msra.mxu0 0.0
    %2074 = vmatprep.subr.mxu0 0.0
    %2075 = vmatpush1.msra.mxu0 0.0
    %2076 = vmatprep.subr.mxu0 0.0
    %2077 = vmatpush1.msra.mxu0 0.0
    %2078 = vmatprep.subr.mxu0 0.0
    %2079 = vmatpush1.msra.mxu0 0.0
    %2080 = vmatprep.subr.mxu0 0.0
    %2081 = vmatpush1.msra.mxu0 0.0
    %2082 = vmatprep.subr.mxu0 0.0
    %2083 = vmatpush1.msra.mxu0 0.0
    %2084 = vmatprep.subr.mxu0 0.0
    %2085 = vmatpush1.msra.mxu0 0.0
    %2086 = vmatprep.subr.mxu0 0.0
    %2087 = vmatpush1.msra.mxu0 0.0
    %2088 = vmatprep.subr.mxu0 0.0
    %2089 = vmatpush1.msra.mxu0 0.0
    %2090 = vmatprep.subr.mxu0 0.0
    %2091 = vmatpush1.msra.mxu0 0.0
    %2092 = vmatprep.subr.mxu0 0.0
    %2093 = vmatpush1.msra.mxu0 0.0
    %2094 = vmatprep.subr.mxu0 0.0
    %2095 = vmatpush1.msra.mxu0 0.0
    %2096 = vmatprep.subr.mxu0 0.0
    %2097 = vmatpush1.msra.mxu0 0.0
    %2098 = vmatprep.subr.mxu0 0.0
    %2099 = vmatpush1.msra.mxu0 0.0
    %2100 = vmatprep.subr.mxu0 0.0
    %2101 = vmatpush1.msra.mxu0 0.0
    %2102 = vmatprep.subr.mxu0 0.0
    %2103 = vmatpush1.msra.mxu0 0.0
    %2104 = vmatprep.subr.mxu0 0.0
    %2105 = vmatpush1.msra.mxu0 0.0
    %2106 = vmatprep.subr.mxu0 0.0
    %2107 = vmatpush1.msra.mxu0 0.0
    %2108 = vmatprep.subr.mxu0 0.0
    %2109 = vmatpush1.msra.mxu0 0.0
    %2110 = vmatprep.subr.mxu0 0.0
    %2111 = vmatpush1.msra.mxu0 0.0
    %2112 = vmatprep.subr.mxu0 0.0
    %2113 = vmatpush1.msra.mxu0 0.0
    %2114 = vmatprep.subr.mxu0 0.0
    %2115 = vmatpush1.msra.mxu0 0.0
    %2116 = vmatprep.subr.mxu0 0.0
    %2117 = vmatpush1.msra.mxu0 0.0
    %2118 = vmatprep.subr.mxu0 0.0
    %2119 = vmatpush1.msra.mxu0 0.0
    %2120 = vmatprep.subr.mxu0 0.0
    %2121 = vmatpush1.msra.mxu0 0.0
    %2122 = vmatprep.mubr.f32.mxu0 0.0
    %2123 = vmatmul.mubr.f32.gmra.mrb[0].mxu0 %v2056
    %v2124 = vpop.f32.mrb[0].mxu0
    %v2125 = vadd.f32 0.0, %v2124
    %v2126 = vpop.f32.mrb[0].mxu0
    %2127 = vdwg.mxu0
    %v2128 = vadd.f32 %v1889, %v2125
    %v2129 = vadd.f32 %v94, %v1173
    %v2130 = vadd.f32 %v95, %v2128
    %v2131 = vsel %vm130, %v2129, 0.0
    %2132 = vadd.xlane.f32.xlu0 %v2131
    %v2133 = vpop.xlane.xlu0 %2132
    %v2134 = vsel %vm130, %v2130, 0.0
    %2135 = vadd.xlane.f32.xlu0 %v2134
    %v2136 = vpop.xlane.xlu0 %2135
    %v2137 = vrcp.pop 32.0
    %v2138 = vmul.f32 %v2133, %v2137
    %v2139 = vmul.f32 %v2136, %v2137
    %v2140 = vsub.f32 %v2129, %v2138
    %v2141 = vsub.f32 %v2130, %v2139
    %v2142 = vmul.f32 %v2140, %v2140
    %v2143 = vmul.f32 %v2141, %v2141
    %v2144 = vsel %vm130, %v2142, 0.0
    %2145 = vadd.xlane.f32.xlu0 %v2144
    %v2146 = vpop.xlane.xlu0 %2145
    %v2147 = vsel %vm130, %v2143, 0.0
    %2148 = vadd.xlane.f32.xlu0 %v2147
    %v2149 = vpop.xlane.xlu0 %2148
    %v2150 = vmul.f32 %v2146, %v2137
    %v2151 = vmul.f32 %v2149, %v2137
    %v2152 = vadd.f32 %v2150, 1e-05
    %v2153 = vadd.f32 %v2151, 1e-05
    %v2154 = vrsqrt.pop %v2152
    %v2155 = vrsqrt.pop %v2153
    %v2156 = vmul.f32 %v2140, %v2154
    %v2157 = vmul.f32 %v2141, %v2155
    %v2159 = vlaneseq
    %v2160 = vshrl.u32 %v2159, 7
    %v2161 = vsub.s32 0, %v2160
    %v2162 = vrot.slane %v106, %v2161
    %v2164 = vmul.f32 %v2156, %v2162
    %v2165 = vmul.f32 %v2157, %v2162
    %v2167 = vlaneseq
    %v2168 = vshrl.u32 %v2167, 7
    %v2169 = vsub.s32 0, %v2168
    %v2170 = vrot.slane %v107, %v2169
    %v2172 = vadd.f32 %v2164, %v2170
    %v2173 = vadd.f32 %v2165, %v2170
    %v2175 = vlaneseq
    %v2176 = vshrl.u32 %v2175, 7
    %v2177 = vsub.s32 0, %v2176
    %v2178 = vrot.slane %v112, %v2177
    %v2181 = vsel %vm130, %v2172, 0
    %v2184 = vsel %vm130, %v2173, 0
    %2186 = vmatprep.subr.mxu0 0.0
    %2187 = vmatpush1.msra.mxu0 %v108
    %2188 = vmatprep.subr.mxu0 0.0
    %2189 = vmatpush1.msra.mxu0 %v109
    %2190 = vmatprep.subr.mxu0 0.0
    %2191 = vmatpush1.msra.mxu0 %v110
    %2192 = vmatprep.subr.mxu0 0.0
    %2193 = vmatpush1.msra.mxu0 %v111
    %2194 = vmatprep.subr.mxu0 0.0
    %2195 = vmatpush1.msra.mxu0 0.0
    %2196 = vmatprep.subr.mxu0 0.0
    %2197 = vmatpush1.msra.mxu0 0.0
    %2198 = vmatprep.subr.mxu0 0.0
    %2199 = vmatpush1.msra.mxu0 0.0
    %2200 = vmatprep.subr.mxu0 0.0
    %2201 = vmatpush1.msra.mxu0 0.0
    %2202 = vmatprep.subr.mxu0 0.0
    %2203 = vmatpush1.msra.mxu0 0.0
    %2204 = vmatprep.subr.mxu0 0.0
    %2205 = vmatpush1.msra.mxu0 0.0
    %2206 = vmatprep.subr.mxu0 0.0
    %2207 = vmatpush1.msra.mxu0 0.0
    %2208 = vmatprep.subr.mxu0 0.0
    %2209 = vmatpush1.msra.mxu0 0.0
    %2210 = vmatprep.subr.mxu0 0.0
    %2211 = vmatpush1.msra.mxu0 0.0
    %2212 = vmatprep.subr.mxu0 0.0
    %2213 = vmatpush1.msra.mxu0 0.0
    %2214 = vmatprep.subr.mxu0 0.0
    %2215 = vmatpush1.msra.mxu0 0.0
    %2216 = vmatprep.subr.mxu0 0.0
    %2217 = vmatpush1.msra.mxu0 0.0
    %2218 = vmatprep.subr.mxu0 0.0
    %2219 = vmatpush1.msra.mxu0 0.0
    %2220 = vmatprep.subr.mxu0 0.0
    %2221 = vmatpush1.msra.mxu0 0.0
    %2222 = vmatprep.subr.mxu0 0.0
    %2223 = vmatpush1.msra.mxu0 0.0
    %2224 = vmatprep.subr.mxu0 0.0
    %2225 = vmatpush1.msra.mxu0 0.0
    %2226 = vmatprep.subr.mxu0 0.0
    %2227 = vmatpush1.msra.mxu0 0.0
    %2228 = vmatprep.subr.mxu0 0.0
    %2229 = vmatpush1.msra.mxu0 0.0
    %2230 = vmatprep.subr.mxu0 0.0
    %2231 = vmatpush1.msra.mxu0 0.0
    %2232 = vmatprep.subr.mxu0 0.0
    %2233 = vmatpush1.msra.mxu0 0.0
    %2234 = vmatprep.subr.mxu0 0.0
    %2235 = vmatpush1.msra.mxu0 0.0
    %2236 = vmatprep.subr.mxu0 0.0
    %2237 = vmatpush1.msra.mxu0 0.0
    %2238 = vmatprep.subr.mxu0 0.0
    %2239 = vmatpush1.msra.mxu0 0.0
    %2240 = vmatprep.subr.mxu0 0.0
    %2241 = vmatpush1.msra.mxu0 0.0
    %2242 = vmatprep.subr.mxu0 0.0
    %2243 = vmatpush1.msra.mxu0 0.0
    %2244 = vmatprep.subr.mxu0 0.0
    %2245 = vmatpush1.msra.mxu0 0.0
    %2246 = vmatprep.subr.mxu0 0.0
    %2247 = vmatpush1.msra.mxu0 0.0
    %2248 = vmatprep.subr.mxu0 0.0
    %2249 = vmatpush1.msra.mxu0 0.0
    %2250 = vmatprep.mubr.f32.mxu0 0.0
    %2251 = vmatmul.mubr.f32.gmra.mrb[0].mxu0 %v2181
    %v2252 = vpop.f32.mrb[0].mxu0
    %v2253 = vadd.f32 %v2178, %v2252
    %v2254 = vpop.f32.mrb[0].mxu0
    %2255 = vmatprep.mubr.f32.mxu0 0.0
    %2256 = vmatmul.mubr.f32.gmra.mrb[0].mxu0 %v2184
    %v2257 = vpop.f32.mrb[0].mxu0
    %v2258 = vadd.f32 %v2178, %v2257
    %v2259 = vpop.f32.mrb[0].mxu0
    %2260 = vdwg.mxu0
    %v2261 = vmax.f32 %v2253, 0.0
    %v2262 = vmax.f32 %v2258, 0.0
    %v2264 = vlaneseq
    %v2265 = vshrl.u32 %v2264, 7
    %v2266 = vsub.s32 0, %v2265
    %v2267 = vrot.slane %v121, %v2266
    %vm2269 = vcmask 523264
    %v2271 = vsel %vm2269, %v2261, 0
    %v2274 = vsel %vm2269, %v2262, 0
    %2276 = vmatprep.subr.mxu0 0.0
    %2277 = vmatpush1.msra.mxu0 %v113
    %2278 = vmatprep.subr.mxu0 0.0
    %2279 = vmatpush1.msra.mxu0 %v114
    %2280 = vmatprep.subr.mxu0 0.0
    %2281 = vmatpush1.msra.mxu0 %v115
    %2282 = vmatprep.subr.mxu0 0.0
    %2283 = vmatpush1.msra.mxu0 %v116
    %2284 = vmatprep.subr.mxu0 0.0
    %2285 = vmatpush1.msra.mxu0 %v117
    %2286 = vmatprep.subr.mxu0 0.0
    %2287 = vmatpush1.msra.mxu0 %v118
    %2288 = vmatprep.subr.mxu0 0.0
    %2289 = vmatpush1.msra.mxu0 %v119
    %2290 = vmatprep.subr.mxu0 0.0
    %2291 = vmatpush1.msra.mxu0 %v120
    %2292 = vmatprep.subr.mxu0 0.0
    %2293 = vmatpush1.msra.mxu0 0.0
    %2294 = vmatprep.subr.mxu0 0.0
    %2295 = vmatpush1.msra.mxu0 0.0
    %2296 = vmatprep.subr.mxu0 0.0
    %2297 = vmatpush1.msra.mxu0 0.0
    %2298 = vmatprep.subr.mxu0 0.0
    %2299 = vmatpush1.msra.mxu0 0.0
    %2300 = vmatprep.subr.mxu0 0.0
    %2301 = vmatpush1.msra.mxu0 0.0
    %2302 = vmatprep.subr.mxu0 0.0
    %2303 = vmatpush1.msra.mxu0 0.0
    %2304 = vmatprep.subr.mxu0 0.0
    %2305 = vmatpush1.msra.mxu0 0.0
    %2306 = vmatprep.subr.mxu0 0.0
    %2307 = vmatpush1.msra.mxu0 0.0
    %2308 = vmatprep.subr.mxu0 0.0
    %2309 = vmatpush1.msra.mxu0 0.0
    %2310 = vmatprep.subr.mxu0 0.0
    %2311 = vmatpush1.msra.mxu0 0.0
    %2312 = vmatprep.subr.mxu0 0.0
    %2313 = vmatpush1.msra.mxu0 0.0
    %2314 = vmatprep.subr.mxu0 0.0
    %2315 = vmatpush1.msra.mxu0 0.0
    %2316 = vmatprep.subr.mxu0 0.0
    %2317 = vmatpush1.msra.mxu0 0.0
    %2318 = vmatprep.subr.mxu0 0.0
    %2319 = vmatpush1.msra.mxu0 0.0
    %2320 = vmatprep.subr.mxu0 0.0
    %2321 = vmatpush1.msra.mxu0 0.0
    %2322 = vmatprep.subr.mxu0 0.0
    %2323 = vmatpush1.msra.mxu0 0.0
    %2324 = vmatprep.subr.mxu0 0.0
    %2325 = vmatpush1.msra.mxu0 0.0
    %2326 = vmatprep.subr.mxu0 0.0
    %2327 = vmatpush1.msra.mxu0 0.0
    %2328 = vmatprep.subr.mxu0 0.0
    %2329 = vmatpush1.msra.mxu0 0.0
    %2330 = vmatprep.subr.mxu0 0.0
    %2331 = vmatpush1.msra.mxu0 0.0
    %2332 = vmatprep.subr.mxu0 0.0
    %2333 = vmatpush1.msra.mxu0 0.0
    %2334 = vmatprep.subr.mxu0 0.0
    %2335 = vmatpush1.msra.mxu0 0.0
    %2336 = vmatprep.subr.mxu0 0.0
    %2337 = vmatpush1.msra.mxu0 0.0
    %2338 = vmatprep.subr.mxu0 0.0
    %2339 = vmatpush1.msra.mxu0 0.0
    %2340 = vmatprep.mubr.f32.mxu0 0.0
    %2341 = vmatmul.mubr.f32.gmra.mrb[0].mxu0 %v2271
    %v2342 = vpop.f32.mrb[0].mxu0
    %v2343 = vadd.f32 %v2267, %v2342
    %v2344 = vpop.f32.mrb[0].mxu0
    %2345 = vmatprep.mubr.f32.mxu0 0.0
    %2346 = vmatmul.mubr.f32.gmra.mrb[0].mxu0 %v2274
    %v2347 = vpop.f32.mrb[0].mxu0
    %v2348 = vadd.f32 %v2267, %v2347
    %v2349 = vpop.f32.mrb[0].mxu0
    %2350 = vdwg.mxu0
    %v2351 = vadd.f32 %v2172, %v2343
    %v2352 = vadd.f32 %v2173, %v2348
    %v2353 = vsel %vm130, %v2351, 0.0
    %2354 = vadd.xlane.f32.xlu0 %v2353
    %v2355 = vpop.xlane.xlu0 %2354
    %v2356 = vsel %vm130, %v2352, 0.0
    %2357 = vadd.xlane.f32.xlu0 %v2356
    %v2358 = vpop.xlane.xlu0 %2357
    %v2359 = vmul.f32 %v2355, %v2137
    %v2360 = vmul.f32 %v2358, %v2137
    %v2361 = vsub.f32 %v2351, %v2359
    %v2362 = vsub.f32 %v2352, %v2360
    %v2363 = vmul.f32 %v2361, %v2361
    %v2364 = vmul.f32 %v2362, %v2362
    %v2365 = vsel %vm130, %v2363, 0.0
    %2366 = vadd.xlane.f32.xlu0 %v2365
    %v2367 = vpop.xlane.xlu0 %2366
    %v2368 = vsel %vm130, %v2364, 0.0
    %2369 = vadd.xlane.f32.xlu0 %v2368
    %v2370 = vpop.xlane.xlu0 %2369
    %v2371 = vmul.f32 %v2367, %v2137
    %v2372 = vmul.f32 %v2370, %v2137
    %v2373 = vadd.f32 %v2371, 1e-05
    %v2374 = vadd.f32 %v2372, 1e-05
    %v2375 = vrsqrt.pop %v2373
    %v2376 = vrsqrt.pop %v2374
    %v2377 = vmul.f32 %v2361, %v2375
    %v2378 = vmul.f32 %v2362, %v2376
    %v2380 = vlaneseq
    %v2381 = vshrl.u32 %v2380, 7
    %v2382 = vsub.s32 0, %v2381
    %v2383 = vrot.slane %v122, %v2382
    %v2385 = vmul.f32 %v2377, %v2383
    %v2386 = vmul.f32 %v2378, %v2383
    %v2388 = vlaneseq
    %v2389 = vshrl.u32 %v2388, 7
    %v2390 = vsub.s32 0, %v2389
    %v2391 = vrot.slane %v123, %v2390
    %v2393 = vadd.f32 %v2385, %v2391
    %v2394 = vadd.f32 %v2386, %v2391
    %v2396 = vsel %vm130, %v2393, 0
    %v2399 = vsel %vm130, %v2394, 0
    %2401 = vmatprep.subr.mxu0 0.0
    %2402 = vmatpush1.msra.mxu0 %v96
    %2403 = vmatprep.subr.mxu0 0.0
    %2404 = vmatpush1.msra.mxu0 %v97
    %2405 = vmatprep.subr.mxu0 0.0
    %2406 = vmatpush1.msra.mxu0 %v98
    %2407 = vmatprep.subr.mxu0 0.0
    %2408 = vmatpush1.msra.mxu0 %v99
    %2409 = vmatprep.subr.mxu0 0.0
    %2410 = vmatpush1.msra.mxu0 0.0
    %2411 = vmatprep.subr.mxu0 0.0
    %2412 = vmatpush1.msra.mxu0 0.0
    %2413 = vmatprep.subr.mxu0 0.0
    %2414 = vmatpush1.msra.mxu0 0.0
    %2415 = vmatprep.subr.mxu0 0.0
    %2416 = vmatpush1.msra.mxu0 0.0
    %2417 = vmatprep.subr.mxu0 0.0
    %2418 = vmatpush1.msra.mxu0 0.0
    %2419 = vmatprep.subr.mxu0 0.0
    %2420 = vmatpush1.msra.mxu0 0.0
    %2421 = vmatprep.subr.mxu0 0.0
    %2422 = vmatpush1.msra.mxu0 0.0
    %2423 = vmatprep.subr.mxu0 0.0
    %2424 = vmatpush1.msra.mxu0 0.0
    %2425 = vmatprep.subr.mxu0 0.0
    %2426 = vmatpush1.msra.mxu0 0.0
    %2427 = vmatprep.subr.mxu0 0.0
    %2428 = vmatpush1.msra.mxu0 0.0
    %2429 = vmatprep.subr.mxu0 0.0
    %2430 = vmatpush1.msra.mxu0 0.0
    %2431 = vmatprep.subr.mxu0 0.0
    %2432 = vmatpush1.msra.mxu0 0.0
    %2433 = vmatprep.subr.mxu0 0.0
    %2434 = vmatpush1.msra.mxu0 0.0
    %2435 = vmatprep.subr.mxu0 0.0
    %2436 = vmatpush1.msra.mxu0 0.0
    %2437 = vmatprep.subr.mxu0 0.0
    %2438 = vmatpush1.msra.mxu0 0.0
    %2439 = vmatprep.subr.mxu0 0.0
    %2440 = vmatpush1.msra.mxu0 0.0
    %2441 = vmatprep.subr.mxu0 0.0
    %2442 = vmatpush1.msra.mxu0 0.0
    %2443 = vmatprep.subr.mxu0 0.0
    %2444 = vmatpush1.msra.mxu0 0.0
    %2445 = vmatprep.subr.mxu0 0.0
    %2446 = vmatpush1.msra.mxu0 0.0
    %2447 = vmatprep.subr.mxu0 0.0
    %2448 = vmatpush1.msra.mxu0 0.0
    %2449 = vmatprep.subr.mxu0 0.0
    %2450 = vmatpush1.msra.mxu0 0.0
    %2451 = vmatprep.subr.mxu0 0.0
    %2452 = vmatpush1.msra.mxu0 0.0
    %2453 = vmatprep.subr.mxu0 0.0
    %2454 = vmatpush1.msra.mxu0 0.0
    %2455 = vmatprep.subr.mxu0 0.0
    %2456 = vmatpush1.msra.mxu0 0.0
    %2457 = vmatprep.subr.mxu0 0.0
    %2458 = vmatpush1.msra.mxu0 0.0
    %2459 = vmatprep.subr.mxu0 0.0
    %2460 = vmatpush1.msra.mxu0 0.0
    %2461 = vmatprep.subr.mxu0 0.0
    %2462 = vmatpush1.msra.mxu0 0.0
    %2463 = vmatprep.subr.mxu0 0.0
    %2464 = vmatpush1.msra.mxu0 0.0
    %2465 = vmatprep.mubr.f32.mxu0 0.0
    %2466 = vmatmul.mubr.f32.gmra.mrb[0].mxu0 %v2396
    %v2467 = vpop.f32.mrb[0].mxu0
    %v2468 = vadd.f32 %v128, %v2467
    %v2469 = vpop.f32.mrb[0].mxu0
    %2470 = vmatprep.mubr.f32.mxu0 0.0
    %2471 = vmatmul.mubr.f32.gmra.mrb[0].mxu0 %v2399
    %v2472 = vpop.f32.mrb[0].mxu0
    %v2473 = vadd.f32 %v128, %v2472
    %v2474 = vpop.f32.mrb[0].mxu0
    %2475 = vdwg.mxu0
    %2477 = vrot.lane.b32.xlu0 %v2468, 96
    %v2478 = vpop.permute.xlu0 %2477
    %v2479 = vsel %vm215, %v2468, 0
    %v2481 = vsel %vm215, %v2478, 0
    %2483 = vmatprep.subr.mxu0 0.0
    %2484 = vmatpush1.xpose.msra.mxu0 %v2481
    %2485 = vmatprep.subr.mxu0 0.0
    %2486 = vmatpush1.xpose.msra.mxu0 0.0
    %2487 = vmatprep.subr.mxu0 0.0
    %2488 = vmatpush1.xpose.msra.mxu0 0.0
    %2489 = vmatprep.subr.mxu0 0.0
    %2490 = vmatpush1.xpose.msra.mxu0 0.0
    %2491 = vmatprep.subr.mxu0 0.0
    %2492 = vmatpush1.xpose.msra.mxu0 0.0
    %2493 = vmatprep.subr.mxu0 0.0
    %2494 = vmatpush1.xpose.msra.mxu0 0.0
    %2495 = vmatprep.subr.mxu0 0.0
    %2496 = vmatpush1.xpose.msra.mxu0 0.0
    %2497 = vmatprep.subr.mxu0 0.0
    %2498 = vmatpush1.xpose.msra.mxu0 0.0
    %2499 = vmatprep.subr.mxu0 0.0
    %2500 = vmatpush1.xpose.msra.mxu0 0.0
    %2501 = vmatprep.subr.mxu0 0.0
    %2502 = vmatpush1.xpose.msra.mxu0 0.0
    %2503 = vmatprep.subr.mxu0 0.0
    %2504 = vmatpush1.xpose.msra.mxu0 0.0
    %2505 = vmatprep.subr.mxu0 0.0
    %2506 = vmatpush1.xpose.msra.mxu0 0.0
    %2507 = vmatprep.subr.mxu0 0.0
    %2508 = vmatpush1.xpose.msra.mxu0 0.0
    %2509 = vmatprep.subr.mxu0 0.0
    %2510 = vmatpush1.xpose.msra.mxu0 0.0
    %2511 = vmatprep.subr.mxu0 0.0
    %2512 = vmatpush1.xpose.msra.mxu0 0.0
    %2513 = vmatprep.subr.mxu0 0.0
    %2514 = vmatpush1.xpose.msra.mxu0 0.0
    %2515 = vmatprep.subr.mxu0 0.0
    %2516 = vmatpush1.xpose.msra.mxu0 0.0
    %2517 = vmatprep.subr.mxu0 0.0
    %2518 = vmatpush1.xpose.msra.mxu0 0.0
    %2519 = vmatprep.subr.mxu0 0.0
    %2520 = vmatpush1.xpose.msra.mxu0 0.0
    %2521 = vmatprep.subr.mxu0 0.0
    %2522 = vmatpush1.xpose.msra.mxu0 0.0
    %2523 = vmatprep.subr.mxu0 0.0
    %2524 = vmatpush1.xpose.msra.mxu0 0.0
    %2525 = vmatprep.subr.mxu0 0.0
    %2526 = vmatpush1.xpose.msra.mxu0 0.0
    %2527 = vmatprep.subr.mxu0 0.0
    %2528 = vmatpush1.xpose.msra.mxu0 0.0
    %2529 = vmatprep.subr.mxu0 0.0
    %2530 = vmatpush1.xpose.msra.mxu0 0.0
    %2531 = vmatprep.subr.mxu0 0.0
    %2532 = vmatpush1.xpose.msra.mxu0 0.0
    %2533 = vmatprep.subr.mxu0 0.0
    %2534 = vmatpush1.xpose.msra.mxu0 0.0
    %2535 = vmatprep.subr.mxu0 0.0
    %2536 = vmatpush1.xpose.msra.mxu0 0.0
    %2537 = vmatprep.subr.mxu0 0.0
    %2538 = vmatpush1.xpose.msra.mxu0 0.0
    %2539 = vmatprep.subr.mxu0 0.0
    %2540 = vmatpush1.xpose.msra.mxu0 0.0
    %2541 = vmatprep.subr.mxu0 0.0
    %2542 = vmatpush1.xpose.msra.mxu0 0.0
    %2543 = vmatprep.subr.mxu0 0.0
    %2544 = vmatpush1.xpose.msra.mxu0 0.0
    %2545 = vmatprep.subr.mxu0 0.0
    %2546 = vmatpush1.xpose.msra.mxu0 0.0
    %2547 = vmatprep.mubr.f32.mxu0 0.0
    %2548 = vmatmul.mubr.f32.gmra.mrb[0].mxu0 %v2479
    %v2549 = vpop.f32.mrb[0].mxu0
    %v2550 = vadd.f32 0.0, %v2549
    %v2551 = vpop.f32.mrb[0].mxu0
    %2552 = vdwg.mxu0
    %v2553 = vsel %vm215, %v2550, -inf
    %2554 = vmax.xlane.f32.xlu0 %v2553
    %v2555 = vpop.xlane.xlu0 %2554
    %v2556 = vsub.f32 %v2550, %v2555
    %v2557 = vmul.f32 %v2556, 1.442695
    %v2558 = vpow.pop %v2557
    %v2559 = vsel %vm215, %v2558, 0.0
    %2560 = vadd.xlane.f32.xlu0 %v2559
    %v2561 = vpop.xlane.xlu0 %2560
    %v2562 = vrcp.pop %v2561
    %v2563 = vmul.f32 %v2558, %v2562
    %2564 = vrot.lane.b32.xlu0 %v2468, 64
    %v2565 = vpop.permute.xlu0 %2564
    %v2568 = vsel %vm215, %v2563, 0
    %2570 = vmatprep.subr.mxu0 0.0
    %2571 = vmatpush1.msra.mxu0 %v2565
    %2572 = vmatprep.subr.mxu0 0.0
    %2573 = vmatpush1.msra.mxu0 0.0
    %2574 = vmatprep.subr.mxu0 0.0
    %2575 = vmatpush1.msra.mxu0 0.0
    %2576 = vmatprep.subr.mxu0 0.0
    %2577 = vmatpush1.msra.mxu0 0.0
    %2578 = vmatprep.subr.mxu0 0.0
    %2579 = vmatpush1.msra.mxu0 0.0
    %2580 = vmatprep.subr.mxu0 0.0
    %2581 = vmatpush1.msra.mxu0 0.0
    %2582 = vmatprep.subr.mxu0 0.0
    %2583 = vmatpush1.msra.mxu0 0.0
    %2584 = vmatprep.subr.mxu0 0.0
    %2585 = vmatpush1.msra.mxu0 0.0
    %2586 = vmatprep.subr.mxu0 0.0
    %2587 = vmatpush1.msra.mxu0 0.0
    %2588 = vmatprep.subr.mxu0 0.0
    %2589 = vmatpush1.msra.mxu0 0.0
    %2590 = vmatprep.subr.mxu0 0.0
    %2591 = vmatpush1.msra.mxu0 0.0
    %2592 = vmatprep.subr.mxu0 0.0
    %2593 = vmatpush1.msra.mxu0 0.0
    %2594 = vmatprep.subr.mxu0 0.0
    %2595 = vmatpush1.msra.mxu0 0.0
    %2596 = vmatprep.subr.mxu0 0.0
    %2597 = vmatpush1.msra.mxu0 0.0
    %2598 = vmatprep.subr.mxu0 0.0
    %2599 = vmatpush1.msra.mxu0 0.0
    %2600 = vmatprep.subr.mxu0 0.0
    %2601 = vmatpush1.msra.mxu0 0.0
    %2602 = vmatprep.subr.mxu0 0.0
    %2603 = vmatpush1.msra.mxu0 0.0
    %2604 = vmatprep.subr.mxu0 0.0
    %2605 = vmatpush1.msra.mxu0 0.0
    %2606 = vmatprep.subr.mxu0 0.0
    %2607 = vmatpush1.msra.mxu0 0.0
    %2608 = vmatprep.subr.mxu0 0.0
    %2609 = vmatpush1.msra.mxu0 0.0
    %2610 = vmatprep.subr.mxu0 0.0
    %2611 = vmatpush1.msra.mxu0 0.0
    %2612 = vmatprep.subr.mxu0 0.0
    %2613 = vmatpush1.msra.mxu0 0.0
    %2614 = vmatprep.subr.mxu0 0.0
    %2615 = vmatpush1.msra.mxu0 0.0
    %2616 = vmatprep.subr.mxu0 0.0
    %2617 = vmatpush1.msra.mxu0 0.0
    %2618 = vmatprep.subr.mxu0 0.0
    %2619 = vmatpush1.msra.mxu0 0.0
    %2620 = vmatprep.subr.mxu0 0.0
    %2621 = vmatpush1.msra.mxu0 0.0
    %2622 = vmatprep.subr.mxu0 0.0
    %2623 = vmatpush1.msra.mxu0 0.0
    %2624 = vmatprep.subr.mxu0 0.0
    %2625 = vmatpush1.msra.mxu0 0.0
    %2626 = vmatprep.subr.mxu0 0.0
    %2627 = vmatpush1.msra.mxu0 0.0
    %2628 = vmatprep.subr.mxu0 0.0
    %2629 = vmatpush1.msra.mxu0 0.0
    %2630 = vmatprep.subr.mxu0 0.0
    %2631 = vmatpush1.msra.mxu0 0.0
    %2632 = vmatprep.subr.mxu0 0.0
    %2633 = vmatpush1.msra.mxu0 0.0
    %2634 = vmatprep.mubr.f32.mxu0 0.0
    %2635 = vmatmul.mubr.f32.gmra.mrb[0].mxu0 %v2568
    %v2636 = vpop.f32.mrb[0].mxu0
    %v2637 = vadd.f32 0.0, %v2636
    %v2638 = vpop.f32.mrb[0].mxu0
    %2639 = vdwg.mxu0
    %v2641 = vsel %vm215, %v2637, 0
    %2643 = vmatprep.subr.mxu0 0.0
    %2644 = vmatpush1.msra.mxu0 %v101
    %2645 = vmatprep.subr.mxu0 0.0
    %2646 = vmatpush1.msra.mxu0 0.0
    %2647 = vmatprep.subr.mxu0 0.0
    %2648 = vmatpush1.msra.mxu0 0.0
    %2649 = vmatprep.subr.mxu0 0.0
    %2650 = vmatpush1.msra.mxu0 0.0
    %2651 = vmatprep.subr.mxu0 0.0
    %2652 = vmatpush1.msra.mxu0 0.0
    %2653 = vmatprep.subr.mxu0 0.0
    %2654 = vmatpush1.msra.mxu0 0.0
    %2655 = vmatprep.subr.mxu0 0.0
    %2656 = vmatpush1.msra.mxu0 0.0
    %2657 = vmatprep.subr.mxu0 0.0
    %2658 = vmatpush1.msra.mxu0 0.0
    %2659 = vmatprep.subr.mxu0 0.0
    %2660 = vmatpush1.msra.mxu0 0.0
    %2661 = vmatprep.subr.mxu0 0.0
    %2662 = vmatpush1.msra.mxu0 0.0
    %2663 = vmatprep.subr.mxu0 0.0
    %2664 = vmatpush1.msra.mxu0 0.0
    %2665 = vmatprep.subr.mxu0 0.0
    %2666 = vmatpush1.msra.mxu0 0.0
    %2667 = vmatprep.subr.mxu0 0.0
    %2668 = vmatpush1.msra.mxu0 0.0
    %2669 = vmatprep.subr.mxu0 0.0
    %2670 = vmatpush1.msra.mxu0 0.0
    %2671 = vmatprep.subr.mxu0 0.0
    %2672 = vmatpush1.msra.mxu0 0.0
    %2673 = vmatprep.subr.mxu0 0.0
    %2674 = vmatpush1.msra.mxu0 0.0
    %2675 = vmatprep.subr.mxu0 0.0
    %2676 = vmatpush1.msra.mxu0 0.0
    %2677 = vmatprep.subr.mxu0 0.0
    %2678 = vmatpush1.msra.mxu0 0.0
    %2679 = vmatprep.subr.mxu0 0.0
    %2680 = vmatpush1.msra.mxu0 0.0
    %2681 = vmatprep.subr.mxu0 0.0
    %2682 = vmatpush1.msra.mxu0 0.0
    %2683 = vmatprep.subr.mxu0 0.0
    %2684 = vmatpush1.msra.mxu0 0.0
    %2685 = vmatprep.subr.mxu0 0.0
    %2686 = vmatpush1.msra.mxu0 0.0
    %2687 = vmatprep.subr.mxu0 0.0
    %2688 = vmatpush1.msra.mxu0 0.0
    %2689 = vmatprep.subr.mxu0 0.0
    %2690 = vmatpush1.msra.mxu0 0.0
    %2691 = vmatprep.subr.mxu0 0.0
    %2692 = vmatpush1.msra.mxu0 0.0
    %2693 = vmatprep.subr.mxu0 0.0
    %2694 = vmatpush1.msra.mxu0 0.0
    %2695 = vmatprep.subr.mxu0 0.0
    %2696 = vmatpush1.msra.mxu0 0.0
    %2697 = vmatprep.subr.mxu0 0.0
    %2698 = vmatpush1.msra.mxu0 0.0
    %2699 = vmatprep.subr.mxu0 0.0
    %2700 = vmatpush1.msra.mxu0 0.0
    %2701 = vmatprep.subr.mxu0 0.0
    %2702 = vmatpush1.msra.mxu0 0.0
    %2703 = vmatprep.subr.mxu0 0.0
    %2704 = vmatpush1.msra.mxu0 0.0
    %2705 = vmatprep.subr.mxu0 0.0
    %2706 = vmatpush1.msra.mxu0 0.0
    %2707 = vmatprep.mubr.f32.mxu0 0.0
    %2708 = vmatmul.mubr.f32.gmra.mrb[0].mxu0 %v2641
    %v2709 = vpop.f32.mrb[0].mxu0
    %v2710 = vadd.f32 0.0, %v2709
    %v2711 = vpop.f32.mrb[0].mxu0
    %2712 = vdwg.mxu0
    %v2713 = vadd.f32 %v454, %v2710
    %2714 = vrot.lane.b32.xlu0 %v2468, 120
    %v2715 = vpop.permute.xlu0 %2714
    %2716 = vrot.lane.b32.xlu0 %v2468, 88
    %v2717 = vpop.permute.xlu0 %2716
    %v2718 = vsel %vm215, %v2715, 0
    %v2720 = vsel %vm215, %v2717, 0
    %2722 = vmatprep.subr.mxu0 0.0
    %2723 = vmatpush1.xpose.msra.mxu0 %v2720
    %2724 = vmatprep.subr.mxu0 0.0
    %2725 = vmatpush1.xpose.msra.mxu0 0.0
    %2726 = vmatprep.subr.mxu0 0.0
    %2727 = vmatpush1.xpose.msra.mxu0 0.0
    %2728 = vmatprep.subr.mxu0 0.0
    %2729 = vmatpush1.xpose.msra.mxu0 0.0
    %2730 = vmatprep.subr.mxu0 0.0
    %2731 = vmatpush1.xpose.msra.mxu0 0.0
    %2732 = vmatprep.subr.mxu0 0.0
    %2733 = vmatpush1.xpose.msra.mxu0 0.0
    %2734 = vmatprep.subr.mxu0 0.0
    %2735 = vmatpush1.xpose.msra.mxu0 0.0
    %2736 = vmatprep.subr.mxu0 0.0
    %2737 = vmatpush1.xpose.msra.mxu0 0.0
    %2738 = vmatprep.subr.mxu0 0.0
    %2739 = vmatpush1.xpose.msra.mxu0 0.0
    %2740 = vmatprep.subr.mxu0 0.0
    %2741 = vmatpush1.xpose.msra.mxu0 0.0
    %2742 = vmatprep.subr.mxu0 0.0
    %2743 = vmatpush1.xpose.msra.mxu0 0.0
    %2744 = vmatprep.subr.mxu0 0.0
    %2745 = vmatpush1.xpose.msra.mxu0 0.0
    %2746 = vmatprep.subr.mxu0 0.0
    %2747 = vmatpush1.xpose.msra.mxu0 0.0
    %2748 = vmatprep.subr.mxu0 0.0
    %2749 = vmatpush1.xpose.msra.mxu0 0.0
    %2750 = vmatprep.subr.mxu0 0.0
    %2751 = vmatpush1.xpose.msra.mxu0 0.0
    %2752 = vmatprep.subr.mxu0 0.0
    %2753 = vmatpush1.xpose.msra.mxu0 0.0
    %2754 = vmatprep.subr.mxu0 0.0
    %2755 = vmatpush1.xpose.msra.mxu0 0.0
    %2756 = vmatprep.subr.mxu0 0.0
    %2757 = vmatpush1.xpose.msra.mxu0 0.0
    %2758 = vmatprep.subr.mxu0 0.0
    %2759 = vmatpush1.xpose.msra.mxu0 0.0
    %2760 = vmatprep.subr.mxu0 0.0
    %2761 = vmatpush1.xpose.msra.mxu0 0.0
    %2762 = vmatprep.subr.mxu0 0.0
    %2763 = vmatpush1.xpose.msra.mxu0 0.0
    %2764 = vmatprep.subr.mxu0 0.0
    %2765 = vmatpush1.xpose.msra.mxu0 0.0
    %2766 = vmatprep.subr.mxu0 0.0
    %2767 = vmatpush1.xpose.msra.mxu0 0.0
    %2768 = vmatprep.subr.mxu0 0.0
    %2769 = vmatpush1.xpose.msra.mxu0 0.0
    %2770 = vmatprep.subr.mxu0 0.0
    %2771 = vmatpush1.xpose.msra.mxu0 0.0
    %2772 = vmatprep.subr.mxu0 0.0
    %2773 = vmatpush1.xpose.msra.mxu0 0.0
    %2774 = vmatprep.subr.mxu0 0.0
    %2775 = vmatpush1.xpose.msra.mxu0 0.0
    %2776 = vmatprep.subr.mxu0 0.0
    %2777 = vmatpush1.xpose.msra.mxu0 0.0
    %2778 = vmatprep.subr.mxu0 0.0
    %2779 = vmatpush1.xpose.msra.mxu0 0.0
    %2780 = vmatprep.subr.mxu0 0.0
    %2781 = vmatpush1.xpose.msra.mxu0 0.0
    %2782 = vmatprep.subr.mxu0 0.0
    %2783 = vmatpush1.xpose.msra.mxu0 0.0
    %2784 = vmatprep.subr.mxu0 0.0
    %2785 = vmatpush1.xpose.msra.mxu0 0.0
    %2786 = vmatprep.mubr.f32.mxu0 0.0
    %2787 = vmatmul.mubr.f32.gmra.mrb[0].mxu0 %v2718
    %v2788 = vpop.f32.mrb[0].mxu0
    %v2789 = vadd.f32 0.0, %v2788
    %v2790 = vpop.f32.mrb[0].mxu0
    %2791 = vdwg.mxu0
    %v2792 = vsel %vm215, %v2789, -inf
    %2793 = vmax.xlane.f32.xlu0 %v2792
    %v2794 = vpop.xlane.xlu0 %2793
    %v2795 = vsub.f32 %v2789, %v2794
    %v2796 = vmul.f32 %v2795, 1.442695
    %v2797 = vpow.pop %v2796
    %v2798 = vsel %vm215, %v2797, 0.0
    %2799 = vadd.xlane.f32.xlu0 %v2798
    %v2800 = vpop.xlane.xlu0 %2799
    %v2801 = vrcp.pop %v2800
    %v2802 = vmul.f32 %v2797, %v2801
    %2803 = vrot.lane.b32.xlu0 %v2468, 56
    %v2804 = vpop.permute.xlu0 %2803
    %v2807 = vsel %vm215, %v2802, 0
    %2809 = vmatprep.subr.mxu0 0.0
    %2810 = vmatpush1.msra.mxu0 %v2804
    %2811 = vmatprep.subr.mxu0 0.0
    %2812 = vmatpush1.msra.mxu0 0.0
    %2813 = vmatprep.subr.mxu0 0.0
    %2814 = vmatpush1.msra.mxu0 0.0
    %2815 = vmatprep.subr.mxu0 0.0
    %2816 = vmatpush1.msra.mxu0 0.0
    %2817 = vmatprep.subr.mxu0 0.0
    %2818 = vmatpush1.msra.mxu0 0.0
    %2819 = vmatprep.subr.mxu0 0.0
    %2820 = vmatpush1.msra.mxu0 0.0
    %2821 = vmatprep.subr.mxu0 0.0
    %2822 = vmatpush1.msra.mxu0 0.0
    %2823 = vmatprep.subr.mxu0 0.0
    %2824 = vmatpush1.msra.mxu0 0.0
    %2825 = vmatprep.subr.mxu0 0.0
    %2826 = vmatpush1.msra.mxu0 0.0
    %2827 = vmatprep.subr.mxu0 0.0
    %2828 = vmatpush1.msra.mxu0 0.0
    %2829 = vmatprep.subr.mxu0 0.0
    %2830 = vmatpush1.msra.mxu0 0.0
    %2831 = vmatprep.subr.mxu0 0.0
    %2832 = vmatpush1.msra.mxu0 0.0
    %2833 = vmatprep.subr.mxu0 0.0
    %2834 = vmatpush1.msra.mxu0 0.0
    %2835 = vmatprep.subr.mxu0 0.0
    %2836 = vmatpush1.msra.mxu0 0.0
    %2837 = vmatprep.subr.mxu0 0.0
    %2838 = vmatpush1.msra.mxu0 0.0
    %2839 = vmatprep.subr.mxu0 0.0
    %2840 = vmatpush1.msra.mxu0 0.0
    %2841 = vmatprep.subr.mxu0 0.0
    %2842 = vmatpush1.msra.mxu0 0.0
    %2843 = vmatprep.subr.mxu0 0.0
    %2844 = vmatpush1.msra.mxu0 0.0
    %2845 = vmatprep.subr.mxu0 0.0
    %2846 = vmatpush1.msra.mxu0 0.0
    %2847 = vmatprep.subr.mxu0 0.0
    %2848 = vmatpush1.msra.mxu0 0.0
    %2849 = vmatprep.subr.mxu0 0.0
    %2850 = vmatpush1.msra.mxu0 0.0
    %2851 = vmatprep.subr.mxu0 0.0
    %2852 = vmatpush1.msra.mxu0 0.0
    %2853 = vmatprep.subr.mxu0 0.0
    %2854 = vmatpush1.msra.mxu0 0.0
    %2855 = vmatprep.subr.mxu0 0.0
    %2856 = vmatpush1.msra.mxu0 0.0
    %2857 = vmatprep.subr.mxu0 0.0
    %2858 = vmatpush1.msra.mxu0 0.0
    %2859 = vmatprep.subr.mxu0 0.0
    %2860 = vmatpush1.msra.mxu0 0.0
    %2861 = vmatprep.subr.mxu0 0.0
    %2862 = vmatpush1.msra.mxu0 0.0
    %2863 = vmatprep.subr.mxu0 0.0
    %2864 = vmatpush1.msra.mxu0 0.0
    %2865 = vmatprep.subr.mxu0 0.0
    %2866 = vmatpush1.msra.mxu0 0.0
    %2867 = vmatprep.subr.mxu0 0.0
    %2868 = vmatpush1.msra.mxu0 0.0
    %2869 = vmatprep.subr.mxu0 0.0
    %2870 = vmatpush1.msra.mxu0 0.0
    %2871 = vmatprep.subr.mxu0 0.0
    %2872 = vmatpush1.msra.mxu0 0.0
    %2873 = vmatprep.mubr.f32.mxu0 0.0
    %2874 = vmatmul.mubr.f32.gmra.mrb[0].mxu0 %v2807
    %v2875 = vpop.f32.mrb[0].mxu0
    %v2876 = vadd.f32 0.0, %v2875
    %v2877 = vpop.f32.mrb[0].mxu0
    %2878 = vdwg.mxu0
    %v2880 = vsel %vm215, %v2876, 0
    %2882 = vmatprep.subr.mxu0 0.0
    %2883 = vmatpush1.msra.mxu0 %v102
    %2884 = vmatprep.subr.mxu0 0.0
    %2885 = vmatpush1.msra.mxu0 0.0
    %2886 = vmatprep.subr.mxu0 0.0
    %2887 = vmatpush1.msra.mxu0 0.0
    %2888 = vmatprep.subr.mxu0 0.0
    %2889 = vmatpush1.msra.mxu0 0.0
    %2890 = vmatprep.subr.mxu0 0.0
    %2891 = vmatpush1.msra.mxu0 0.0
    %2892 = vmatprep.subr.mxu0 0.0
    %2893 = vmatpush1.msra.mxu0 0.0
    %2894 = vmatprep.subr.mxu0 0.0
    %2895 = vmatpush1.msra.mxu0 0.0
    %2896 = vmatprep.subr.mxu0 0.0
    %2897 = vmatpush1.msra.mxu0 0.0
    %2898 = vmatprep.subr.mxu0 0.0
    %2899 = vmatpush1.msra.mxu0 0.0
    %2900 = vmatprep.subr.mxu0 0.0
    %2901 = vmatpush1.msra.mxu0 0.0
    %2902 = vmatprep.subr.mxu0 0.0
    %2903 = vmatpush1.msra.mxu0 0.0
    %2904 = vmatprep.subr.mxu0 0.0
    %2905 = vmatpush1.msra.mxu0 0.0
    %2906 = vmatprep.subr.mxu0 0.0
    %2907 = vmatpush1.msra.mxu0 0.0
    %2908 = vmatprep.subr.mxu0 0.0
    %2909 = vmatpush1.msra.mxu0 0.0
    %2910 = vmatprep.subr.mxu0 0.0
    %2911 = vmatpush1.msra.mxu0 0.0
    %2912 = vmatprep.subr.mxu0 0.0
    %2913 = vmatpush1.msra.mxu0 0.0
    %2914 = vmatprep.subr.mxu0 0.0
    %2915 = vmatpush1.msra.mxu0 0.0
    %2916 = vmatprep.subr.mxu0 0.0
    %2917 = vmatpush1.msra.mxu0 0.0
    %2918 = vmatprep.subr.mxu0 0.0
    %2919 = vmatpush1.msra.mxu0 0.0
    %2920 = vmatprep.subr.mxu0 0.0
    %2921 = vmatpush1.msra.mxu0 0.0
    %2922 = vmatprep.subr.mxu0 0.0
    %2923 = vmatpush1.msra.mxu0 0.0
    %2924 = vmatprep.subr.mxu0 0.0
    %2925 = vmatpush1.msra.mxu0 0.0
    %2926 = vmatprep.subr.mxu0 0.0
    %2927 = vmatpush1.msra.mxu0 0.0
    %2928 = vmatprep.subr.mxu0 0.0
    %2929 = vmatpush1.msra.mxu0 0.0
    %2930 = vmatprep.subr.mxu0 0.0
    %2931 = vmatpush1.msra.mxu0 0.0
    %2932 = vmatprep.subr.mxu0 0.0
    %2933 = vmatpush1.msra.mxu0 0.0
    %2934 = vmatprep.subr.mxu0 0.0
    %2935 = vmatpush1.msra.mxu0 0.0
    %2936 = vmatprep.subr.mxu0 0.0
    %2937 = vmatpush1.msra.mxu0 0.0
    %2938 = vmatprep.subr.mxu0 0.0
    %2939 = vmatpush1.msra.mxu0 0.0
    %2940 = vmatprep.subr.mxu0 0.0
    %2941 = vmatpush1.msra.mxu0 0.0
    %2942 = vmatprep.subr.mxu0 0.0
    %2943 = vmatpush1.msra.mxu0 0.0
    %2944 = vmatprep.subr.mxu0 0.0
    %2945 = vmatpush1.msra.mxu0 0.0
    %2946 = vmatprep.mubr.f32.mxu0 0.0
    %2947 = vmatmul.mubr.f32.gmra.mrb[0].mxu0 %v2880
    %v2948 = vpop.f32.mrb[0].mxu0
    %v2949 = vadd.f32 0.0, %v2948
    %v2950 = vpop.f32.mrb[0].mxu0
    %2951 = vdwg.mxu0
    %v2952 = vadd.f32 %v2713, %v2949
    %2953 = vrot.lane.b32.xlu0 %v2468, 112
    %v2954 = vpop.permute.xlu0 %2953
    %2955 = vrot.lane.b32.xlu0 %v2468, 80
    %v2956 = vpop.permute.xlu0 %2955
    %v2957 = vsel %vm215, %v2954, 0
    %v2959 = vsel %vm215, %v2956, 0
    %2961 = vmatprep.subr.mxu0 0.0
    %2962 = vmatpush1.xpose.msra.mxu0 %v2959
    %2963 = vmatprep.subr.mxu0 0.0
    %2964 = vmatpush1.xpose.msra.mxu0 0.0
    %2965 = vmatprep.subr.mxu0 0.0
    %2966 = vmatpush1.xpose.msra.mxu0 0.0
    %2967 = vmatprep.subr.mxu0 0.0
    %2968 = vmatpush1.xpose.msra.mxu0 0.0
    %2969 = vmatprep.subr.mxu0 0.0
    %2970 = vmatpush1.xpose.msra.mxu0 0.0
    %2971 = vmatprep.subr.mxu0 0.0
    %2972 = vmatpush1.xpose.msra.mxu0 0.0
    %2973 = vmatprep.subr.mxu0 0.0
    %2974 = vmatpush1.xpose.msra.mxu0 0.0
    %2975 = vmatprep.subr.mxu0 0.0
    %2976 = vmatpush1.xpose.msra.mxu0 0.0
    %2977 = vmatprep.subr.mxu0 0.0
    %2978 = vmatpush1.xpose.msra.mxu0 0.0
    %2979 = vmatprep.subr.mxu0 0.0
    %2980 = vmatpush1.xpose.msra.mxu0 0.0
    %2981 = vmatprep.subr.mxu0 0.0
    %2982 = vmatpush1.xpose.msra.mxu0 0.0
    %2983 = vmatprep.subr.mxu0 0.0
    %2984 = vmatpush1.xpose.msra.mxu0 0.0
    %2985 = vmatprep.subr.mxu0 0.0
    %2986 = vmatpush1.xpose.msra.mxu0 0.0
    %2987 = vmatprep.subr.mxu0 0.0
    %2988 = vmatpush1.xpose.msra.mxu0 0.0
    %2989 = vmatprep.subr.mxu0 0.0
    %2990 = vmatpush1.xpose.msra.mxu0 0.0
    %2991 = vmatprep.subr.mxu0 0.0
    %2992 = vmatpush1.xpose.msra.mxu0 0.0
    %2993 = vmatprep.subr.mxu0 0.0
    %2994 = vmatpush1.xpose.msra.mxu0 0.0
    %2995 = vmatprep.subr.mxu0 0.0
    %2996 = vmatpush1.xpose.msra.mxu0 0.0
    %2997 = vmatprep.subr.mxu0 0.0
    %2998 = vmatpush1.xpose.msra.mxu0 0.0
    %2999 = vmatprep.subr.mxu0 0.0
    %3000 = vmatpush1.xpose.msra.mxu0 0.0
    %3001 = vmatprep.subr.mxu0 0.0
    %3002 = vmatpush1.xpose.msra.mxu0 0.0
    %3003 = vmatprep.subr.mxu0 0.0
    %3004 = vmatpush1.xpose.msra.mxu0 0.0
    %3005 = vmatprep.subr.mxu0 0.0
    %3006 = vmatpush1.xpose.msra.mxu0 0.0
    %3007 = vmatprep.subr.mxu0 0.0
    %3008 = vmatpush1.xpose.msra.mxu0 0.0
    %3009 = vmatprep.subr.mxu0 0.0
    %3010 = vmatpush1.xpose.msra.mxu0 0.0
    %3011 = vmatprep.subr.mxu0 0.0
    %3012 = vmatpush1.xpose.msra.mxu0 0.0
    %3013 = vmatprep.subr.mxu0 0.0
    %3014 = vmatpush1.xpose.msra.mxu0 0.0
    %3015 = vmatprep.subr.mxu0 0.0
    %3016 = vmatpush1.xpose.msra.mxu0 0.0
    %3017 = vmatprep.subr.mxu0 0.0
    %3018 = vmatpush1.xpose.msra.mxu0 0.0
    %3019 = vmatprep.subr.mxu0 0.0
    %3020 = vmatpush1.xpose.msra.mxu0 0.0
    %3021 = vmatprep.subr.mxu0 0.0
    %3022 = vmatpush1.xpose.msra.mxu0 0.0
    %3023 = vmatprep.subr.mxu0 0.0
    %3024 = vmatpush1.xpose.msra.mxu0 0.0
    %3025 = vmatprep.mubr.f32.mxu0 0.0
    %3026 = vmatmul.mubr.f32.gmra.mrb[0].mxu0 %v2957
    %v3027 = vpop.f32.mrb[0].mxu0
    %v3028 = vadd.f32 0.0, %v3027
    %v3029 = vpop.f32.mrb[0].mxu0
    %3030 = vdwg.mxu0
    %v3031 = vsel %vm215, %v3028, -inf
    %3032 = vmax.xlane.f32.xlu0 %v3031
    %v3033 = vpop.xlane.xlu0 %3032
    %v3034 = vsub.f32 %v3028, %v3033
    %v3035 = vmul.f32 %v3034, 1.442695
    %v3036 = vpow.pop %v3035
    %v3037 = vsel %vm215, %v3036, 0.0
    %3038 = vadd.xlane.f32.xlu0 %v3037
    %v3039 = vpop.xlane.xlu0 %3038
    %v3040 = vrcp.pop %v3039
    %v3041 = vmul.f32 %v3036, %v3040
    %3042 = vrot.lane.b32.xlu0 %v2468, 48
    %v3043 = vpop.permute.xlu0 %3042
    %v3046 = vsel %vm215, %v3041, 0
    %3048 = vmatprep.subr.mxu0 0.0
    %3049 = vmatpush1.msra.mxu0 %v3043
    %3050 = vmatprep.subr.mxu0 0.0
    %3051 = vmatpush1.msra.mxu0 0.0
    %3052 = vmatprep.subr.mxu0 0.0
    %3053 = vmatpush1.msra.mxu0 0.0
    %3054 = vmatprep.subr.mxu0 0.0
    %3055 = vmatpush1.msra.mxu0 0.0
    %3056 = vmatprep.subr.mxu0 0.0
    %3057 = vmatpush1.msra.mxu0 0.0
    %3058 = vmatprep.subr.mxu0 0.0
    %3059 = vmatpush1.msra.mxu0 0.0
    %3060 = vmatprep.subr.mxu0 0.0
    %3061 = vmatpush1.msra.mxu0 0.0
    %3062 = vmatprep.subr.mxu0 0.0
    %3063 = vmatpush1.msra.mxu0 0.0
    %3064 = vmatprep.subr.mxu0 0.0
    %3065 = vmatpush1.msra.mxu0 0.0
    %3066 = vmatprep.subr.mxu0 0.0
    %3067 = vmatpush1.msra.mxu0 0.0
    %3068 = vmatprep.subr.mxu0 0.0
    %3069 = vmatpush1.msra.mxu0 0.0
    %3070 = vmatprep.subr.mxu0 0.0
    %3071 = vmatpush1.msra.mxu0 0.0
    %3072 = vmatprep.subr.mxu0 0.0
    %3073 = vmatpush1.msra.mxu0 0.0
    %3074 = vmatprep.subr.mxu0 0.0
    %3075 = vmatpush1.msra.mxu0 0.0
    %3076 = vmatprep.subr.mxu0 0.0
    %3077 = vmatpush1.msra.mxu0 0.0
    %3078 = vmatprep.subr.mxu0 0.0
    %3079 = vmatpush1.msra.mxu0 0.0
    %3080 = vmatprep.subr.mxu0 0.0
    %3081 = vmatpush1.msra.mxu0 0.0
    %3082 = vmatprep.subr.mxu0 0.0
    %3083 = vmatpush1.msra.mxu0 0.0
    %3084 = vmatprep.subr.mxu0 0.0
    %3085 = vmatpush1.msra.mxu0 0.0
    %3086 = vmatprep.subr.mxu0 0.0
    %3087 = vmatpush1.msra.mxu0 0.0
    %3088 = vmatprep.subr.mxu0 0.0
    %3089 = vmatpush1.msra.mxu0 0.0
    %3090 = vmatprep.subr.mxu0 0.0
    %3091 = vmatpush1.msra.mxu0 0.0
    %3092 = vmatprep.subr.mxu0 0.0
    %3093 = vmatpush1.msra.mxu0 0.0
    %3094 = vmatprep.subr.mxu0 0.0
    %3095 = vmatpush1.msra.mxu0 0.0
    %3096 = vmatprep.subr.mxu0 0.0
    %3097 = vmatpush1.msra.mxu0 0.0
    %3098 = vmatprep.subr.mxu0 0.0
    %3099 = vmatpush1.msra.mxu0 0.0
    %3100 = vmatprep.subr.mxu0 0.0
    %3101 = vmatpush1.msra.mxu0 0.0
    %3102 = vmatprep.subr.mxu0 0.0
    %3103 = vmatpush1.msra.mxu0 0.0
    %3104 = vmatprep.subr.mxu0 0.0
    %3105 = vmatpush1.msra.mxu0 0.0
    %3106 = vmatprep.subr.mxu0 0.0
    %3107 = vmatpush1.msra.mxu0 0.0
    %3108 = vmatprep.subr.mxu0 0.0
    %3109 = vmatpush1.msra.mxu0 0.0
    %3110 = vmatprep.subr.mxu0 0.0
    %3111 = vmatpush1.msra.mxu0 0.0
    %3112 = vmatprep.mubr.f32.mxu0 0.0
    %3113 = vmatmul.mubr.f32.gmra.mrb[0].mxu0 %v3046
    %v3114 = vpop.f32.mrb[0].mxu0
    %v3115 = vadd.f32 0.0, %v3114
    %v3116 = vpop.f32.mrb[0].mxu0
    %3117 = vdwg.mxu0
    %v3119 = vsel %vm215, %v3115, 0
    %3121 = vmatprep.subr.mxu0 0.0
    %3122 = vmatpush1.msra.mxu0 %v103
    %3123 = vmatprep.subr.mxu0 0.0
    %3124 = vmatpush1.msra.mxu0 0.0
    %3125 = vmatprep.subr.mxu0 0.0
    %3126 = vmatpush1.msra.mxu0 0.0
    %3127 = vmatprep.subr.mxu0 0.0
    %3128 = vmatpush1.msra.mxu0 0.0
    %3129 = vmatprep.subr.mxu0 0.0
    %3130 = vmatpush1.msra.mxu0 0.0
    %3131 = vmatprep.subr.mxu0 0.0
    %3132 = vmatpush1.msra.mxu0 0.0
    %3133 = vmatprep.subr.mxu0 0.0
    %3134 = vmatpush1.msra.mxu0 0.0
    %3135 = vmatprep.subr.mxu0 0.0
    %3136 = vmatpush1.msra.mxu0 0.0
    %3137 = vmatprep.subr.mxu0 0.0
    %3138 = vmatpush1.msra.mxu0 0.0
    %3139 = vmatprep.subr.mxu0 0.0
    %3140 = vmatpush1.msra.mxu0 0.0
    %3141 = vmatprep.subr.mxu0 0.0
    %3142 = vmatpush1.msra.mxu0 0.0
    %3143 = vmatprep.subr.mxu0 0.0
    %3144 = vmatpush1.msra.mxu0 0.0
    %3145 = vmatprep.subr.mxu0 0.0
    %3146 = vmatpush1.msra.mxu0 0.0
    %3147 = vmatprep.subr.mxu0 0.0
    %3148 = vmatpush1.msra.mxu0 0.0
    %3149 = vmatprep.subr.mxu0 0.0
    %3150 = vmatpush1.msra.mxu0 0.0
    %3151 = vmatprep.subr.mxu0 0.0
    %3152 = vmatpush1.msra.mxu0 0.0
    %3153 = vmatprep.subr.mxu0 0.0
    %3154 = vmatpush1.msra.mxu0 0.0
    %3155 = vmatprep.subr.mxu0 0.0
    %3156 = vmatpush1.msra.mxu0 0.0
    %3157 = vmatprep.subr.mxu0 0.0
    %3158 = vmatpush1.msra.mxu0 0.0
    %3159 = vmatprep.subr.mxu0 0.0
    %3160 = vmatpush1.msra.mxu0 0.0
    %3161 = vmatprep.subr.mxu0 0.0
    %3162 = vmatpush1.msra.mxu0 0.0
    %3163 = vmatprep.subr.mxu0 0.0
    %3164 = vmatpush1.msra.mxu0 0.0
    %3165 = vmatprep.subr.mxu0 0.0
    %3166 = vmatpush1.msra.mxu0 0.0
    %3167 = vmatprep.subr.mxu0 0.0
    %3168 = vmatpush1.msra.mxu0 0.0
    %3169 = vmatprep.subr.mxu0 0.0
    %3170 = vmatpush1.msra.mxu0 0.0
    %3171 = vmatprep.subr.mxu0 0.0
    %3172 = vmatpush1.msra.mxu0 0.0
    %3173 = vmatprep.subr.mxu0 0.0
    %3174 = vmatpush1.msra.mxu0 0.0
    %3175 = vmatprep.subr.mxu0 0.0
    %3176 = vmatpush1.msra.mxu0 0.0
    %3177 = vmatprep.subr.mxu0 0.0
    %3178 = vmatpush1.msra.mxu0 0.0
    %3179 = vmatprep.subr.mxu0 0.0
    %3180 = vmatpush1.msra.mxu0 0.0
    %3181 = vmatprep.subr.mxu0 0.0
    %3182 = vmatpush1.msra.mxu0 0.0
    %3183 = vmatprep.subr.mxu0 0.0
    %3184 = vmatpush1.msra.mxu0 0.0
    %3185 = vmatprep.mubr.f32.mxu0 0.0
    %3186 = vmatmul.mubr.f32.gmra.mrb[0].mxu0 %v3119
    %v3187 = vpop.f32.mrb[0].mxu0
    %v3188 = vadd.f32 0.0, %v3187
    %v3189 = vpop.f32.mrb[0].mxu0
    %3190 = vdwg.mxu0
    %v3191 = vadd.f32 %v2952, %v3188
    %3192 = vrot.lane.b32.xlu0 %v2468, 104
    %v3193 = vpop.permute.xlu0 %3192
    %3194 = vrot.lane.b32.xlu0 %v2468, 72
    %v3195 = vpop.permute.xlu0 %3194
    %v3196 = vsel %vm215, %v3193, 0
    %v3198 = vsel %vm215, %v3195, 0
    %3200 = vmatprep.subr.mxu0 0.0
    %3201 = vmatpush1.xpose.msra.mxu0 %v3198
    %3202 = vmatprep.subr.mxu0 0.0
    %3203 = vmatpush1.xpose.msra.mxu0 0.0
    %3204 = vmatprep.subr.mxu0 0.0
    %3205 = vmatpush1.xpose.msra.mxu0 0.0
    %3206 = vmatprep.subr.mxu0 0.0
    %3207 = vmatpush1.xpose.msra.mxu0 0.0
    %3208 = vmatprep.subr.mxu0 0.0
    %3209 = vmatpush1.xpose.msra.mxu0 0.0
    %3210 = vmatprep.subr.mxu0 0.0
    %3211 = vmatpush1.xpose.msra.mxu0 0.0
    %3212 = vmatprep.subr.mxu0 0.0
    %3213 = vmatpush1.xpose.msra.mxu0 0.0
    %3214 = vmatprep.subr.mxu0 0.0
    %3215 = vmatpush1.xpose.msra.mxu0 0.0
    %3216 = vmatprep.subr.mxu0 0.0
    %3217 = vmatpush1.xpose.msra.mxu0 0.0
    %3218 = vmatprep.subr.mxu0 0.0
    %3219 = vmatpush1.xpose.msra.mxu0 0.0
    %3220 = vmatprep.subr.mxu0 0.0
    %3221 = vmatpush1.xpose.msra.mxu0 0.0
    %3222 = vmatprep.subr.mxu0 0.0
    %3223 = vmatpush1.xpose.msra.mxu0 0.0
    %3224 = vmatprep.subr.mxu0 0.0
    %3225 = vmatpush1.xpose.msra.mxu0 0.0
    %3226 = vmatprep.subr.mxu0 0.0
    %3227 = vmatpush1.xpose.msra.mxu0 0.0
    %3228 = vmatprep.subr.mxu0 0.0
    %3229 = vmatpush1.xpose.msra.mxu0 0.0
    %3230 = vmatprep.subr.mxu0 0.0
    %3231 = vmatpush1.xpose.msra.mxu0 0.0
    %3232 = vmatprep.subr.mxu0 0.0
    %3233 = vmatpush1.xpose.msra.mxu0 0.0
    %3234 = vmatprep.subr.mxu0 0.0
    %3235 = vmatpush1.xpose.msra.mxu0 0.0
    %3236 = vmatprep.subr.mxu0 0.0
    %3237 = vmatpush1.xpose.msra.mxu0 0.0
    %3238 = vmatprep.subr.mxu0 0.0
    %3239 = vmatpush1.xpose.msra.mxu0 0.0
    %3240 = vmatprep.subr.mxu0 0.0
    %3241 = vmatpush1.xpose.msra.mxu0 0.0
    %3242 = vmatprep.subr.mxu0 0.0
    %3243 = vmatpush1.xpose.msra.mxu0 0.0
    %3244 = vmatprep.subr.mxu0 0.0
    %3245 = vmatpush1.xpose.msra.mxu0 0.0
    %3246 = vmatprep.subr.mxu0 0.0
    %3247 = vmatpush1.xpose.msra.mxu0 0.0
    %3248 = vmatprep.subr.mxu0 0.0
    %3249 = vmatpush1.xpose.msra.mxu0 0.0
    %3250 = vmatprep.subr.mxu0 0.0
    %3251 = vmatpush1.xpose.msra.mxu0 0.0
    %3252 = vmatprep.subr.mxu0 0.0
    %3253 = vmatpush1.xpose.msra.mxu0 0.0
    %3254 = vmatprep.subr.mxu0 0.0
    %3255 = vmatpush1.xpose.msra.mxu0 0.0
    %3256 = vmatprep.subr.mxu0 0.0
    %3257 = vmatpush1.xpose.msra.mxu0 0.0
    %3258 = vmatprep.subr.mxu0 0.0
    %3259 = vmatpush1.xpose.msra.mxu0 0.0
    %3260 = vmatprep.subr.mxu0 0.0
    %3261 = vmatpush1.xpose.msra.mxu0 0.0
    %3262 = vmatprep.subr.mxu0 0.0
    %3263 = vmatpush1.xpose.msra.mxu0 0.0
    %3264 = vmatprep.mubr.f32.mxu0 0.0
    %3265 = vmatmul.mubr.f32.gmra.mrb[0].mxu0 %v3196
    %v3266 = vpop.f32.mrb[0].mxu0
    %v3267 = vadd.f32 0.0, %v3266
    %v3268 = vpop.f32.mrb[0].mxu0
    %3269 = vdwg.mxu0
    %v3270 = vsel %vm215, %v3267, -inf
    %3271 = vmax.xlane.f32.xlu0 %v3270
    %v3272 = vpop.xlane.xlu0 %3271
    %v3273 = vsub.f32 %v3267, %v3272
    %v3274 = vmul.f32 %v3273, 1.442695
    %v3275 = vpow.pop %v3274
    %v3276 = vsel %vm215, %v3275, 0.0
    %3277 = vadd.xlane.f32.xlu0 %v3276
    %v3278 = vpop.xlane.xlu0 %3277
    %v3279 = vrcp.pop %v3278
    %v3280 = vmul.f32 %v3275, %v3279
    %3281 = vrot.lane.b32.xlu0 %v2468, 40
    %v3282 = vpop.permute.xlu0 %3281
    %v3285 = vsel %vm215, %v3280, 0
    %3287 = vmatprep.subr.mxu0 0.0
    %3288 = vmatpush1.msra.mxu0 %v3282
    %3289 = vmatprep.subr.mxu0 0.0
    %3290 = vmatpush1.msra.mxu0 0.0
    %3291 = vmatprep.subr.mxu0 0.0
    %3292 = vmatpush1.msra.mxu0 0.0
    %3293 = vmatprep.subr.mxu0 0.0
    %3294 = vmatpush1.msra.mxu0 0.0
    %3295 = vmatprep.subr.mxu0 0.0
    %3296 = vmatpush1.msra.mxu0 0.0
    %3297 = vmatprep.subr.mxu0 0.0
    %3298 = vmatpush1.msra.mxu0 0.0
    %3299 = vmatprep.subr.mxu0 0.0
    %3300 = vmatpush1.msra.mxu0 0.0
    %3301 = vmatprep.subr.mxu0 0.0
    %3302 = vmatpush1.msra.mxu0 0.0
    %3303 = vmatprep.subr.mxu0 0.0
    %3304 = vmatpush1.msra.mxu0 0.0
    %3305 = vmatprep.subr.mxu0 0.0
    %3306 = vmatpush1.msra.mxu0 0.0
    %3307 = vmatprep.subr.mxu0 0.0
    %3308 = vmatpush1.msra.mxu0 0.0
    %3309 = vmatprep.subr.mxu0 0.0
    %3310 = vmatpush1.msra.mxu0 0.0
    %3311 = vmatprep.subr.mxu0 0.0
    %3312 = vmatpush1.msra.mxu0 0.0
    %3313 = vmatprep.subr.mxu0 0.0
    %3314 = vmatpush1.msra.mxu0 0.0
    %3315 = vmatprep.subr.mxu0 0.0
    %3316 = vmatpush1.msra.mxu0 0.0
    %3317 = vmatprep.subr.mxu0 0.0
    %3318 = vmatpush1.msra.mxu0 0.0
    %3319 = vmatprep.subr.mxu0 0.0
    %3320 = vmatpush1.msra.mxu0 0.0
    %3321 = vmatprep.subr.mxu0 0.0
    %3322 = vmatpush1.msra.mxu0 0.0
    %3323 = vmatprep.subr.mxu0 0.0
    %3324 = vmatpush1.msra.mxu0 0.0
    %3325 = vmatprep.subr.mxu0 0.0
    %3326 = vmatpush1.msra.mxu0 0.0
    %3327 = vmatprep.subr.mxu0 0.0
    %3328 = vmatpush1.msra.mxu0 0.0
    %3329 = vmatprep.subr.mxu0 0.0
    %3330 = vmatpush1.msra.mxu0 0.0
    %3331 = vmatprep.subr.mxu0 0.0
    %3332 = vmatpush1.msra.mxu0 0.0
    %3333 = vmatprep.subr.mxu0 0.0
    %3334 = vmatpush1.msra.mxu0 0.0
    %3335 = vmatprep.subr.mxu0 0.0
    %3336 = vmatpush1.msra.mxu0 0.0
    %3337 = vmatprep.subr.mxu0 0.0
    %3338 = vmatpush1.msra.mxu0 0.0
    %3339 = vmatprep.subr.mxu0 0.0
    %3340 = vmatpush1.msra.mxu0 0.0
    %3341 = vmatprep.subr.mxu0 0.0
    %3342 = vmatpush1.msra.mxu0 0.0
    %3343 = vmatprep.subr.mxu0 0.0
    %3344 = vmatpush1.msra.mxu0 0.0
    %3345 = vmatprep.subr.mxu0 0.0
    %3346 = vmatpush1.msra.mxu0 0.0
    %3347 = vmatprep.subr.mxu0 0.0
    %3348 = vmatpush1.msra.mxu0 0.0
    %3349 = vmatprep.subr.mxu0 0.0
    %3350 = vmatpush1.msra.mxu0 0.0
    %3351 = vmatprep.mubr.f32.mxu0 0.0
    %3352 = vmatmul.mubr.f32.gmra.mrb[0].mxu0 %v3285
    %v3353 = vpop.f32.mrb[0].mxu0
    %v3354 = vadd.f32 0.0, %v3353
    %v3355 = vpop.f32.mrb[0].mxu0
    %3356 = vdwg.mxu0
    %v3358 = vsel %vm215, %v3354, 0
    %3360 = vmatprep.subr.mxu0 0.0
    %3361 = vmatpush1.msra.mxu0 %v104
    %3362 = vmatprep.subr.mxu0 0.0
    %3363 = vmatpush1.msra.mxu0 0.0
    %3364 = vmatprep.subr.mxu0 0.0
    %3365 = vmatpush1.msra.mxu0 0.0
    %3366 = vmatprep.subr.mxu0 0.0
    %3367 = vmatpush1.msra.mxu0 0.0
    %3368 = vmatprep.subr.mxu0 0.0
    %3369 = vmatpush1.msra.mxu0 0.0
    %3370 = vmatprep.subr.mxu0 0.0
    %3371 = vmatpush1.msra.mxu0 0.0
    %3372 = vmatprep.subr.mxu0 0.0
    %3373 = vmatpush1.msra.mxu0 0.0
    %3374 = vmatprep.subr.mxu0 0.0
    %3375 = vmatpush1.msra.mxu0 0.0
    %3376 = vmatprep.subr.mxu0 0.0
    %3377 = vmatpush1.msra.mxu0 0.0
    %3378 = vmatprep.subr.mxu0 0.0
    %3379 = vmatpush1.msra.mxu0 0.0
    %3380 = vmatprep.subr.mxu0 0.0
    %3381 = vmatpush1.msra.mxu0 0.0
    %3382 = vmatprep.subr.mxu0 0.0
    %3383 = vmatpush1.msra.mxu0 0.0
    %3384 = vmatprep.subr.mxu0 0.0
    %3385 = vmatpush1.msra.mxu0 0.0
    %3386 = vmatprep.subr.mxu0 0.0
    %3387 = vmatpush1.msra.mxu0 0.0
    %3388 = vmatprep.subr.mxu0 0.0
    %3389 = vmatpush1.msra.mxu0 0.0
    %3390 = vmatprep.subr.mxu0 0.0
    %3391 = vmatpush1.msra.mxu0 0.0
    %3392 = vmatprep.subr.mxu0 0.0
    %3393 = vmatpush1.msra.mxu0 0.0
    %3394 = vmatprep.subr.mxu0 0.0
    %3395 = vmatpush1.msra.mxu0 0.0
    %3396 = vmatprep.subr.mxu0 0.0
    %3397 = vmatpush1.msra.mxu0 0.0
    %3398 = vmatprep.subr.mxu0 0.0
    %3399 = vmatpush1.msra.mxu0 0.0
    %3400 = vmatprep.subr.mxu0 0.0
    %3401 = vmatpush1.msra.mxu0 0.0
    %3402 = vmatprep.subr.mxu0 0.0
    %3403 = vmatpush1.msra.mxu0 0.0
    %3404 = vmatprep.subr.mxu0 0.0
    %3405 = vmatpush1.msra.mxu0 0.0
    %3406 = vmatprep.subr.mxu0 0.0
    %3407 = vmatpush1.msra.mxu0 0.0
    %3408 = vmatprep.subr.mxu0 0.0
    %3409 = vmatpush1.msra.mxu0 0.0
    %3410 = vmatprep.subr.mxu0 0.0
    %3411 = vmatpush1.msra.mxu0 0.0
    %3412 = vmatprep.subr.mxu0 0.0
    %3413 = vmatpush1.msra.mxu0 0.0
    %3414 = vmatprep.subr.mxu0 0.0
    %3415 = vmatpush1.msra.mxu0 0.0
    %3416 = vmatprep.subr.mxu0 0.0
    %3417 = vmatpush1.msra.mxu0 0.0
    %3418 = vmatprep.subr.mxu0 0.0
    %3419 = vmatpush1.msra.mxu0 0.0
    %3420 = vmatprep.subr.mxu0 0.0
    %3421 = vmatpush1.msra.mxu0 0.0
    %3422 = vmatprep.subr.mxu0 0.0
    %3423 = vmatpush1.msra.mxu0 0.0
    %3424 = vmatprep.mubr.f32.mxu0 0.0
    %3425 = vmatmul.mubr.f32.gmra.mrb[0].mxu0 %v3358
    %v3426 = vpop.f32.mrb[0].mxu0
    %v3427 = vadd.f32 0.0, %v3426
    %v3428 = vpop.f32.mrb[0].mxu0
    %3429 = vdwg.mxu0
    %v3430 = vadd.f32 %v3191, %v3427
    %3432 = vrot.lane.b32.xlu0 %v2473, 96
    %v3433 = vpop.permute.xlu0 %3432
    %v3434 = vsel %vm215, %v2473, 0
    %v3436 = vsel %vm215, %v3433, 0
    %3438 = vmatprep.subr.mxu0 0.0
    %3439 = vmatpush1.xpose.msra.mxu0 %v3436
    %3440 = vmatprep.subr.mxu0 0.0
    %3441 = vmatpush1.xpose.msra.mxu0 0.0
    %3442 = vmatprep.subr.mxu0 0.0
    %3443 = vmatpush1.xpose.msra.mxu0 0.0
    %3444 = vmatprep.subr.mxu0 0.0
    %3445 = vmatpush1.xpose.msra.mxu0 0.0
    %3446 = vmatprep.subr.mxu0 0.0
    %3447 = vmatpush1.xpose.msra.mxu0 0.0
    %3448 = vmatprep.subr.mxu0 0.0
    %3449 = vmatpush1.xpose.msra.mxu0 0.0
    %3450 = vmatprep.subr.mxu0 0.0
    %3451 = vmatpush1.xpose.msra.mxu0 0.0
    %3452 = vmatprep.subr.mxu0 0.0
    %3453 = vmatpush1.xpose.msra.mxu0 0.0
    %3454 = vmatprep.subr.mxu0 0.0
    %3455 = vmatpush1.xpose.msra.mxu0 0.0
    %3456 = vmatprep.subr.mxu0 0.0
    %3457 = vmatpush1.xpose.msra.mxu0 0.0
    %3458 = vmatprep.subr.mxu0 0.0
    %3459 = vmatpush1.xpose.msra.mxu0 0.0
    %3460 = vmatprep.subr.mxu0 0.0
    %3461 = vmatpush1.xpose.msra.mxu0 0.0
    %3462 = vmatprep.subr.mxu0 0.0
    %3463 = vmatpush1.xpose.msra.mxu0 0.0
    %3464 = vmatprep.subr.mxu0 0.0
    %3465 = vmatpush1.xpose.msra.mxu0 0.0
    %3466 = vmatprep.subr.mxu0 0.0
    %3467 = vmatpush1.xpose.msra.mxu0 0.0
    %3468 = vmatprep.subr.mxu0 0.0
    %3469 = vmatpush1.xpose.msra.mxu0 0.0
    %3470 = vmatprep.subr.mxu0 0.0
    %3471 = vmatpush1.xpose.msra.mxu0 0.0
    %3472 = vmatprep.subr.mxu0 0.0
    %3473 = vmatpush1.xpose.msra.mxu0 0.0
    %3474 = vmatprep.subr.mxu0 0.0
    %3475 = vmatpush1.xpose.msra.mxu0 0.0
    %3476 = vmatprep.subr.mxu0 0.0
    %3477 = vmatpush1.xpose.msra.mxu0 0.0
    %3478 = vmatprep.subr.mxu0 0.0
    %3479 = vmatpush1.xpose.msra.mxu0 0.0
    %3480 = vmatprep.subr.mxu0 0.0
    %3481 = vmatpush1.xpose.msra.mxu0 0.0
    %3482 = vmatprep.subr.mxu0 0.0
    %3483 = vmatpush1.xpose.msra.mxu0 0.0
    %3484 = vmatprep.subr.mxu0 0.0
    %3485 = vmatpush1.xpose.msra.mxu0 0.0
    %3486 = vmatprep.subr.mxu0 0.0
    %3487 = vmatpush1.xpose.msra.mxu0 0.0
    %3488 = vmatprep.subr.mxu0 0.0
    %3489 = vmatpush1.xpose.msra.mxu0 0.0
    %3490 = vmatprep.subr.mxu0 0.0
    %3491 = vmatpush1.xpose.msra.mxu0 0.0
    %3492 = vmatprep.subr.mxu0 0.0
    %3493 = vmatpush1.xpose.msra.mxu0 0.0
    %3494 = vmatprep.subr.mxu0 0.0
    %3495 = vmatpush1.xpose.msra.mxu0 0.0
    %3496 = vmatprep.subr.mxu0 0.0
    %3497 = vmatpush1.xpose.msra.mxu0 0.0
    %3498 = vmatprep.subr.mxu0 0.0
    %3499 = vmatpush1.xpose.msra.mxu0 0.0
    %3500 = vmatprep.subr.mxu0 0.0
    %3501 = vmatpush1.xpose.msra.mxu0 0.0
    %3502 = vmatprep.mubr.f32.mxu0 0.0
    %3503 = vmatmul.mubr.f32.gmra.mrb[0].mxu0 %v3434
    %v3504 = vpop.f32.mrb[0].mxu0
    %v3505 = vadd.f32 0.0, %v3504
    %v3506 = vpop.f32.mrb[0].mxu0
    %3507 = vdwg.mxu0
    %v3508 = vsel %vm215, %v3505, -inf
    %3509 = vmax.xlane.f32.xlu0 %v3508
    %v3510 = vpop.xlane.xlu0 %3509
    %v3511 = vsub.f32 %v3505, %v3510
    %v3512 = vmul.f32 %v3511, 1.442695
    %v3513 = vpow.pop %v3512
    %v3514 = vsel %vm215, %v3513, 0.0
    %3515 = vadd.xlane.f32.xlu0 %v3514
    %v3516 = vpop.xlane.xlu0 %3515
    %v3517 = vrcp.pop %v3516
    %v3518 = vmul.f32 %v3513, %v3517
    %3519 = vrot.lane.b32.xlu0 %v2473, 64
    %v3520 = vpop.permute.xlu0 %3519
    %v3523 = vsel %vm215, %v3518, 0
    %3525 = vmatprep.subr.mxu0 0.0
    %3526 = vmatpush1.msra.mxu0 %v3520
    %3527 = vmatprep.subr.mxu0 0.0
    %3528 = vmatpush1.msra.mxu0 0.0
    %3529 = vmatprep.subr.mxu0 0.0
    %3530 = vmatpush1.msra.mxu0 0.0
    %3531 = vmatprep.subr.mxu0 0.0
    %3532 = vmatpush1.msra.mxu0 0.0
    %3533 = vmatprep.subr.mxu0 0.0
    %3534 = vmatpush1.msra.mxu0 0.0
    %3535 = vmatprep.subr.mxu0 0.0
    %3536 = vmatpush1.msra.mxu0 0.0
    %3537 = vmatprep.subr.mxu0 0.0
    %3538 = vmatpush1.msra.mxu0 0.0
    %3539 = vmatprep.subr.mxu0 0.0
    %3540 = vmatpush1.msra.mxu0 0.0
    %3541 = vmatprep.subr.mxu0 0.0
    %3542 = vmatpush1.msra.mxu0 0.0
    %3543 = vmatprep.subr.mxu0 0.0
    %3544 = vmatpush1.msra.mxu0 0.0
    %3545 = vmatprep.subr.mxu0 0.0
    %3546 = vmatpush1.msra.mxu0 0.0
    %3547 = vmatprep.subr.mxu0 0.0
    %3548 = vmatpush1.msra.mxu0 0.0
    %3549 = vmatprep.subr.mxu0 0.0
    %3550 = vmatpush1.msra.mxu0 0.0
    %3551 = vmatprep.subr.mxu0 0.0
    %3552 = vmatpush1.msra.mxu0 0.0
    %3553 = vmatprep.subr.mxu0 0.0
    %3554 = vmatpush1.msra.mxu0 0.0
    %3555 = vmatprep.subr.mxu0 0.0
    %3556 = vmatpush1.msra.mxu0 0.0
    %3557 = vmatprep.subr.mxu0 0.0
    %3558 = vmatpush1.msra.mxu0 0.0
    %3559 = vmatprep.subr.mxu0 0.0
    %3560 = vmatpush1.msra.mxu0 0.0
    %3561 = vmatprep.subr.mxu0 0.0
    %3562 = vmatpush1.msra.mxu0 0.0
    %3563 = vmatprep.subr.mxu0 0.0
    %3564 = vmatpush1.msra.mxu0 0.0
    %3565 = vmatprep.subr.mxu0 0.0
    %3566 = vmatpush1.msra.mxu0 0.0
    %3567 = vmatprep.subr.mxu0 0.0
    %3568 = vmatpush1.msra.mxu0 0.0
    %3569 = vmatprep.subr.mxu0 0.0
    %3570 = vmatpush1.msra.mxu0 0.0
    %3571 = vmatprep.subr.mxu0 0.0
    %3572 = vmatpush1.msra.mxu0 0.0
    %3573 = vmatprep.subr.mxu0 0.0
    %3574 = vmatpush1.msra.mxu0 0.0
    %3575 = vmatprep.subr.mxu0 0.0
    %3576 = vmatpush1.msra.mxu0 0.0
    %3577 = vmatprep.subr.mxu0 0.0
    %3578 = vmatpush1.msra.mxu0 0.0
    %3579 = vmatprep.subr.mxu0 0.0
    %3580 = vmatpush1.msra.mxu0 0.0
    %3581 = vmatprep.subr.mxu0 0.0
    %3582 = vmatpush1.msra.mxu0 0.0
    %3583 = vmatprep.subr.mxu0 0.0
    %3584 = vmatpush1.msra.mxu0 0.0
    %3585 = vmatprep.subr.mxu0 0.0
    %3586 = vmatpush1.msra.mxu0 0.0
    %3587 = vmatprep.subr.mxu0 0.0
    %3588 = vmatpush1.msra.mxu0 0.0
    %3589 = vmatprep.mubr.f32.mxu0 0.0
    %3590 = vmatmul.mubr.f32.gmra.mrb[0].mxu0 %v3523
    %v3591 = vpop.f32.mrb[0].mxu0
    %v3592 = vadd.f32 0.0, %v3591
    %v3593 = vpop.f32.mrb[0].mxu0
    %3594 = vdwg.mxu0
    %v3596 = vsel %vm215, %v3592, 0
    %3598 = vmatprep.subr.mxu0 0.0
    %3599 = vmatpush1.msra.mxu0 %v101
    %3600 = vmatprep.subr.mxu0 0.0
    %3601 = vmatpush1.msra.mxu0 0.0
    %3602 = vmatprep.subr.mxu0 0.0
    %3603 = vmatpush1.msra.mxu0 0.0
    %3604 = vmatprep.subr.mxu0 0.0
    %3605 = vmatpush1.msra.mxu0 0.0
    %3606 = vmatprep.subr.mxu0 0.0
    %3607 = vmatpush1.msra.mxu0 0.0
    %3608 = vmatprep.subr.mxu0 0.0
    %3609 = vmatpush1.msra.mxu0 0.0
    %3610 = vmatprep.subr.mxu0 0.0
    %3611 = vmatpush1.msra.mxu0 0.0
    %3612 = vmatprep.subr.mxu0 0.0
    %3613 = vmatpush1.msra.mxu0 0.0
    %3614 = vmatprep.subr.mxu0 0.0
    %3615 = vmatpush1.msra.mxu0 0.0
    %3616 = vmatprep.subr.mxu0 0.0
    %3617 = vmatpush1.msra.mxu0 0.0
    %3618 = vmatprep.subr.mxu0 0.0
    %3619 = vmatpush1.msra.mxu0 0.0
    %3620 = vmatprep.subr.mxu0 0.0
    %3621 = vmatpush1.msra.mxu0 0.0
    %3622 = vmatprep.subr.mxu0 0.0
    %3623 = vmatpush1.msra.mxu0 0.0
    %3624 = vmatprep.subr.mxu0 0.0
    %3625 = vmatpush1.msra.mxu0 0.0
    %3626 = vmatprep.subr.mxu0 0.0
    %3627 = vmatpush1.msra.mxu0 0.0
    %3628 = vmatprep.subr.mxu0 0.0
    %3629 = vmatpush1.msra.mxu0 0.0
    %3630 = vmatprep.subr.mxu0 0.0
    %3631 = vmatpush1.msra.mxu0 0.0
    %3632 = vmatprep.subr.mxu0 0.0
    %3633 = vmatpush1.msra.mxu0 0.0
    %3634 = vmatprep.subr.mxu0 0.0
    %3635 = vmatpush1.msra.mxu0 0.0
    %3636 = vmatprep.subr.mxu0 0.0
    %3637 = vmatpush1.msra.mxu0 0.0
    %3638 = vmatprep.subr.mxu0 0.0
    %3639 = vmatpush1.msra.mxu0 0.0
    %3640 = vmatprep.subr.mxu0 0.0
    %3641 = vmatpush1.msra.mxu0 0.0
    %3642 = vmatprep.subr.mxu0 0.0
    %3643 = vmatpush1.msra.mxu0 0.0
    %3644 = vmatprep.subr.mxu0 0.0
    %3645 = vmatpush1.msra.mxu0 0.0
    %3646 = vmatprep.subr.mxu0 0.0
    %3647 = vmatpush1.msra.mxu0 0.0
    %3648 = vmatprep.subr.mxu0 0.0
    %3649 = vmatpush1.msra.mxu0 0.0
    %3650 = vmatprep.subr.mxu0 0.0
    %3651 = vmatpush1.msra.mxu0 0.0
    %3652 = vmatprep.subr.mxu0 0.0
    %3653 = vmatpush1.msra.mxu0 0.0
    %3654 = vmatprep.subr.mxu0 0.0
    %3655 = vmatpush1.msra.mxu0 0.0
    %3656 = vmatprep.subr.mxu0 0.0
    %3657 = vmatpush1.msra.mxu0 0.0
    %3658 = vmatprep.subr.mxu0 0.0
    %3659 = vmatpush1.msra.mxu0 0.0
    %3660 = vmatprep.subr.mxu0 0.0
    %3661 = vmatpush1.msra.mxu0 0.0
    %3662 = vmatprep.mubr.f32.mxu0 0.0
    %3663 = vmatmul.mubr.f32.gmra.mrb[0].mxu0 %v3596
    %v3664 = vpop.f32.mrb[0].mxu0
    %v3665 = vadd.f32 0.0, %v3664
    %v3666 = vpop.f32.mrb[0].mxu0
    %3667 = vdwg.mxu0
    %v3668 = vadd.f32 %v454, %v3665
    %3669 = vrot.lane.b32.xlu0 %v2473, 120
    %v3670 = vpop.permute.xlu0 %3669
    %3671 = vrot.lane.b32.xlu0 %v2473, 88
    %v3672 = vpop.permute.xlu0 %3671
    %v3673 = vsel %vm215, %v3670, 0
    %v3675 = vsel %vm215, %v3672, 0
    %3677 = vmatprep.subr.mxu0 0.0
    %3678 = vmatpush1.xpose.msra.mxu0 %v3675
    %3679 = vmatprep.subr.mxu0 0.0
    %3680 = vmatpush1.xpose.msra.mxu0 0.0
    %3681 = vmatprep.subr.mxu0 0.0
    %3682 = vmatpush1.xpose.msra.mxu0 0.0
    %3683 = vmatprep.subr.mxu0 0.0
    %3684 = vmatpush1.xpose.msra.mxu0 0.0
    %3685 = vmatprep.subr.mxu0 0.0
    %3686 = vmatpush1.xpose.msra.mxu0 0.0
    %3687 = vmatprep.subr.mxu0 0.0
    %3688 = vmatpush1.xpose.msra.mxu0 0.0
    %3689 = vmatprep.subr.mxu0 0.0
    %3690 = vmatpush1.xpose.msra.mxu0 0.0
    %3691 = vmatprep.subr.mxu0 0.0
    %3692 = vmatpush1.xpose.msra.mxu0 0.0
    %3693 = vmatprep.subr.mxu0 0.0
    %3694 = vmatpush1.xpose.msra.mxu0 0.0
    %3695 = vmatprep.subr.mxu0 0.0
    %3696 = vmatpush1.xpose.msra.mxu0 0.0
    %3697 = vmatprep.subr.mxu0 0.0
    %3698 = vmatpush1.xpose.msra.mxu0 0.0
    %3699 = vmatprep.subr.mxu0 0.0
    %3700 = vmatpush1.xpose.msra.mxu0 0.0
    %3701 = vmatprep.subr.mxu0 0.0
    %3702 = vmatpush1.xpose.msra.mxu0 0.0
    %3703 = vmatprep.subr.mxu0 0.0
    %3704 = vmatpush1.xpose.msra.mxu0 0.0
    %3705 = vmatprep.subr.mxu0 0.0
    %3706 = vmatpush1.xpose.msra.mxu0 0.0
    %3707 = vmatprep.subr.mxu0 0.0
    %3708 = vmatpush1.xpose.msra.mxu0 0.0
    %3709 = vmatprep.subr.mxu0 0.0
    %3710 = vmatpush1.xpose.msra.mxu0 0.0
    %3711 = vmatprep.subr.mxu0 0.0
    %3712 = vmatpush1.xpose.msra.mxu0 0.0
    %3713 = vmatprep.subr.mxu0 0.0
    %3714 = vmatpush1.xpose.msra.mxu0 0.0
    %3715 = vmatprep.subr.mxu0 0.0
    %3716 = vmatpush1.xpose.msra.mxu0 0.0
    %3717 = vmatprep.subr.mxu0 0.0
    %3718 = vmatpush1.xpose.msra.mxu0 0.0
    %3719 = vmatprep.subr.mxu0 0.0
    %3720 = vmatpush1.xpose.msra.mxu0 0.0
    %3721 = vmatprep.subr.mxu0 0.0
    %3722 = vmatpush1.xpose.msra.mxu0 0.0
    %3723 = vmatprep.subr.mxu0 0.0
    %3724 = vmatpush1.xpose.msra.mxu0 0.0
    %3725 = vmatprep.subr.mxu0 0.0
    %3726 = vmatpush1.xpose.msra.mxu0 0.0
    %3727 = vmatprep.subr.mxu0 0.0
    %3728 = vmatpush1.xpose.msra.mxu0 0.0
    %3729 = vmatprep.subr.mxu0 0.0
    %3730 = vmatpush1.xpose.msra.mxu0 0.0
    %3731 = vmatprep.subr.mxu0 0.0
    %3732 = vmatpush1.xpose.msra.mxu0 0.0
    %3733 = vmatprep.subr.mxu0 0.0
    %3734 = vmatpush1.xpose.msra.mxu0 0.0
    %3735 = vmatprep.subr.mxu0 0.0
    %3736 = vmatpush1.xpose.msra.mxu0 0.0
    %3737 = vmatprep.subr.mxu0 0.0
    %3738 = vmatpush1.xpose.msra.mxu0 0.0
    %3739 = vmatprep.subr.mxu0 0.0
    %3740 = vmatpush1.xpose.msra.mxu0 0.0
    %3741 = vmatprep.mubr.f32.mxu0 0.0
    %3742 = vmatmul.mubr.f32.gmra.mrb[0].mxu0 %v3673
    %v3743 = vpop.f32.mrb[0].mxu0
    %v3744 = vadd.f32 0.0, %v3743
    %v3745 = vpop.f32.mrb[0].mxu0
    %3746 = vdwg.mxu0
    %v3747 = vsel %vm215, %v3744, -inf
    %3748 = vmax.xlane.f32.xlu0 %v3747
    %v3749 = vpop.xlane.xlu0 %3748
    %v3750 = vsub.f32 %v3744, %v3749
    %v3751 = vmul.f32 %v3750, 1.442695
    %v3752 = vpow.pop %v3751
    %v3753 = vsel %vm215, %v3752, 0.0
    %3754 = vadd.xlane.f32.xlu0 %v3753
    %v3755 = vpop.xlane.xlu0 %3754
    %v3756 = vrcp.pop %v3755
    %v3757 = vmul.f32 %v3752, %v3756
    %3758 = vrot.lane.b32.xlu0 %v2473, 56
    %v3759 = vpop.permute.xlu0 %3758
    %v3762 = vsel %vm215, %v3757, 0
    %3764 = vmatprep.subr.mxu0 0.0
    %3765 = vmatpush1.msra.mxu0 %v3759
    %3766 = vmatprep.subr.mxu0 0.0
    %3767 = vmatpush1.msra.mxu0 0.0
    %3768 = vmatprep.subr.mxu0 0.0
    %3769 = vmatpush1.msra.mxu0 0.0
    %3770 = vmatprep.subr.mxu0 0.0
    %3771 = vmatpush1.msra.mxu0 0.0
    %3772 = vmatprep.subr.mxu0 0.0
    %3773 = vmatpush1.msra.mxu0 0.0
    %3774 = vmatprep.subr.mxu0 0.0
    %3775 = vmatpush1.msra.mxu0 0.0
    %3776 = vmatprep.subr.mxu0 0.0
    %3777 = vmatpush1.msra.mxu0 0.0
    %3778 = vmatprep.subr.mxu0 0.0
    %3779 = vmatpush1.msra.mxu0 0.0
    %3780 = vmatprep.subr.mxu0 0.0
    %3781 = vmatpush1.msra.mxu0 0.0
    %3782 = vmatprep.subr.mxu0 0.0
    %3783 = vmatpush1.msra.mxu0 0.0
    %3784 = vmatprep.subr.mxu0 0.0
    %3785 = vmatpush1.msra.mxu0 0.0
    %3786 = vmatprep.subr.mxu0 0.0
    %3787 = vmatpush1.msra.mxu0 0.0
    %3788 = vmatprep.subr.mxu0 0.0
    %3789 = vmatpush1.msra.mxu0 0.0
    %3790 = vmatprep.subr.mxu0 0.0
    %3791 = vmatpush1.msra.mxu0 0.0
    %3792 = vmatprep.subr.mxu0 0.0
    %3793 = vmatpush1.msra.mxu0 0.0
    %3794 = vmatprep.subr.mxu0 0.0
    %3795 = vmatpush1.msra.mxu0 0.0
    %3796 = vmatprep.subr.mxu0 0.0
    %3797 = vmatpush1.msra.mxu0 0.0
    %3798 = vmatprep.subr.mxu0 0.0
    %3799 = vmatpush1.msra.mxu0 0.0
    %3800 = vmatprep.subr.mxu0 0.0
    %3801 = vmatpush1.msra.mxu0 0.0
    %3802 = vmatprep.subr.mxu0 0.0
    %3803 = vmatpush1.msra.mxu0 0.0
    %3804 = vmatprep.subr.mxu0 0.0
    %3805 = vmatpush1.msra.mxu0 0.0
    %3806 = vmatprep.subr.mxu0 0.0
    %3807 = vmatpush1.msra.mxu0 0.0
    %3808 = vmatprep.subr.mxu0 0.0
    %3809 = vmatpush1.msra.mxu0 0.0
    %3810 = vmatprep.subr.mxu0 0.0
    %3811 = vmatpush1.msra.mxu0 0.0
    %3812 = vmatprep.subr.mxu0 0.0
    %3813 = vmatpush1.msra.mxu0 0.0
    %3814 = vmatprep.subr.mxu0 0.0
    %3815 = vmatpush1.msra.mxu0 0.0
    %3816 = vmatprep.subr.mxu0 0.0
    %3817 = vmatpush1.msra.mxu0 0.0
    %3818 = vmatprep.subr.mxu0 0.0
    %3819 = vmatpush1.msra.mxu0 0.0
    %3820 = vmatprep.subr.mxu0 0.0
    %3821 = vmatpush1.msra.mxu0 0.0
    %3822 = vmatprep.subr.mxu0 0.0
    %3823 = vmatpush1.msra.mxu0 0.0
    %3824 = vmatprep.subr.mxu0 0.0
    %3825 = vmatpush1.msra.mxu0 0.0
    %3826 = vmatprep.subr.mxu0 0.0
    %3827 = vmatpush1.msra.mxu0 0.0
    %3828 = vmatprep.mubr.f32.mxu0 0.0
    %3829 = vmatmul.mubr.f32.gmra.mrb[0].mxu0 %v3762
    %v3830 = vpop.f32.mrb[0].mxu0
    %v3831 = vadd.f32 0.0, %v3830
    %v3832 = vpop.f32.mrb[0].mxu0
    %3833 = vdwg.mxu0
    %v3835 = vsel %vm215, %v3831, 0
    %3837 = vmatprep.subr.mxu0 0.0
    %3838 = vmatpush1.msra.mxu0 %v102
    %3839 = vmatprep.subr.mxu0 0.0
    %3840 = vmatpush1.msra.mxu0 0.0
    %3841 = vmatprep.subr.mxu0 0.0
    %3842 = vmatpush1.msra.mxu0 0.0
    %3843 = vmatprep.subr.mxu0 0.0
    %3844 = vmatpush1.msra.mxu0 0.0
    %3845 = vmatprep.subr.mxu0 0.0
    %3846 = vmatpush1.msra.mxu0 0.0
    %3847 = vmatprep.subr.mxu0 0.0
    %3848 = vmatpush1.msra.mxu0 0.0
    %3849 = vmatprep.subr.mxu0 0.0
    %3850 = vmatpush1.msra.mxu0 0.0
    %3851 = vmatprep.subr.mxu0 0.0
    %3852 = vmatpush1.msra.mxu0 0.0
    %3853 = vmatprep.subr.mxu0 0.0
    %3854 = vmatpush1.msra.mxu0 0.0
    %3855 = vmatprep.subr.mxu0 0.0
    %3856 = vmatpush1.msra.mxu0 0.0
    %3857 = vmatprep.subr.mxu0 0.0
    %3858 = vmatpush1.msra.mxu0 0.0
    %3859 = vmatprep.subr.mxu0 0.0
    %3860 = vmatpush1.msra.mxu0 0.0
    %3861 = vmatprep.subr.mxu0 0.0
    %3862 = vmatpush1.msra.mxu0 0.0
    %3863 = vmatprep.subr.mxu0 0.0
    %3864 = vmatpush1.msra.mxu0 0.0
    %3865 = vmatprep.subr.mxu0 0.0
    %3866 = vmatpush1.msra.mxu0 0.0
    %3867 = vmatprep.subr.mxu0 0.0
    %3868 = vmatpush1.msra.mxu0 0.0
    %3869 = vmatprep.subr.mxu0 0.0
    %3870 = vmatpush1.msra.mxu0 0.0
    %3871 = vmatprep.subr.mxu0 0.0
    %3872 = vmatpush1.msra.mxu0 0.0
    %3873 = vmatprep.subr.mxu0 0.0
    %3874 = vmatpush1.msra.mxu0 0.0
    %3875 = vmatprep.subr.mxu0 0.0
    %3876 = vmatpush1.msra.mxu0 0.0
    %3877 = vmatprep.subr.mxu0 0.0
    %3878 = vmatpush1.msra.mxu0 0.0
    %3879 = vmatprep.subr.mxu0 0.0
    %3880 = vmatpush1.msra.mxu0 0.0
    %3881 = vmatprep.subr.mxu0 0.0
    %3882 = vmatpush1.msra.mxu0 0.0
    %3883 = vmatprep.subr.mxu0 0.0
    %3884 = vmatpush1.msra.mxu0 0.0
    %3885 = vmatprep.subr.mxu0 0.0
    %3886 = vmatpush1.msra.mxu0 0.0
    %3887 = vmatprep.subr.mxu0 0.0
    %3888 = vmatpush1.msra.mxu0 0.0
    %3889 = vmatprep.subr.mxu0 0.0
    %3890 = vmatpush1.msra.mxu0 0.0
    %3891 = vmatprep.subr.mxu0 0.0
    %3892 = vmatpush1.msra.mxu0 0.0
    %3893 = vmatprep.subr.mxu0 0.0
    %3894 = vmatpush1.msra.mxu0 0.0
    %3895 = vmatprep.subr.mxu0 0.0
    %3896 = vmatpush1.msra.mxu0 0.0
    %3897 = vmatprep.subr.mxu0 0.0
    %3898 = vmatpush1.msra.mxu0 0.0
    %3899 = vmatprep.subr.mxu0 0.0
    %3900 = vmatpush1.msra.mxu0 0.0
    %3901 = vmatprep.mubr.f32.mxu0 0.0
    %3902 = vmatmul.mubr.f32.gmra.mrb[0].mxu0 %v3835
    %v3903 = vpop.f32.mrb[0].mxu0
    %v3904 = vadd.f32 0.0, %v3903
    %v3905 = vpop.f32.mrb[0].mxu0
    %3906 = vdwg.mxu0
    %v3907 = vadd.f32 %v3668, %v3904
    %3908 = vrot.lane.b32.xlu0 %v2473, 112
    %v3909 = vpop.permute.xlu0 %3908
    %3910 = vrot.lane.b32.xlu0 %v2473, 80
    %v3911 = vpop.permute.xlu0 %3910
    %v3912 = vsel %vm215, %v3909, 0
    %v3914 = vsel %vm215, %v3911, 0
    %3916 = vmatprep.subr.mxu0 0.0
    %3917 = vmatpush1.xpose.msra.mxu0 %v3914
    %3918 = vmatprep.subr.mxu0 0.0
    %3919 = vmatpush1.xpose.msra.mxu0 0.0
    %3920 = vmatprep.subr.mxu0 0.0
    %3921 = vmatpush1.xpose.msra.mxu0 0.0
    %3922 = vmatprep.subr.mxu0 0.0
    %3923 = vmatpush1.xpose.msra.mxu0 0.0
    %3924 = vmatprep.subr.mxu0 0.0
    %3925 = vmatpush1.xpose.msra.mxu0 0.0
    %3926 = vmatprep.subr.mxu0 0.0
    %3927 = vmatpush1.xpose.msra.mxu0 0.0
    %3928 = vmatprep.subr.mxu0 0.0
    %3929 = vmatpush1.xpose.msra.mxu0 0.0
    %3930 = vmatprep.subr.mxu0 0.0
    %3931 = vmatpush1.xpose.msra.mxu0 0.0
    %3932 = vmatprep.subr.mxu0 0.0
    %3933 = vmatpush1.xpose.msra.mxu0 0.0
    %3934 = vmatprep.subr.mxu0 0.0
    %3935 = vmatpush1.xpose.msra.mxu0 0.0
    %3936 = vmatprep.subr.mxu0 0.0
    %3937 = vmatpush1.xpose.msra.mxu0 0.0
    %3938 = vmatprep.subr.mxu0 0.0
    %3939 = vmatpush1.xpose.msra.mxu0 0.0
    %3940 = vmatprep.subr.mxu0 0.0
    %3941 = vmatpush1.xpose.msra.mxu0 0.0
    %3942 = vmatprep.subr.mxu0 0.0
    %3943 = vmatpush1.xpose.msra.mxu0 0.0
    %3944 = vmatprep.subr.mxu0 0.0
    %3945 = vmatpush1.xpose.msra.mxu0 0.0
    %3946 = vmatprep.subr.mxu0 0.0
    %3947 = vmatpush1.xpose.msra.mxu0 0.0
    %3948 = vmatprep.subr.mxu0 0.0
    %3949 = vmatpush1.xpose.msra.mxu0 0.0
    %3950 = vmatprep.subr.mxu0 0.0
    %3951 = vmatpush1.xpose.msra.mxu0 0.0
    %3952 = vmatprep.subr.mxu0 0.0
    %3953 = vmatpush1.xpose.msra.mxu0 0.0
    %3954 = vmatprep.subr.mxu0 0.0
    %3955 = vmatpush1.xpose.msra.mxu0 0.0
    %3956 = vmatprep.subr.mxu0 0.0
    %3957 = vmatpush1.xpose.msra.mxu0 0.0
    %3958 = vmatprep.subr.mxu0 0.0
    %3959 = vmatpush1.xpose.msra.mxu0 0.0
    %3960 = vmatprep.subr.mxu0 0.0
    %3961 = vmatpush1.xpose.msra.mxu0 0.0
    %3962 = vmatprep.subr.mxu0 0.0
    %3963 = vmatpush1.xpose.msra.mxu0 0.0
    %3964 = vmatprep.subr.mxu0 0.0
    %3965 = vmatpush1.xpose.msra.mxu0 0.0
    %3966 = vmatprep.subr.mxu0 0.0
    %3967 = vmatpush1.xpose.msra.mxu0 0.0
    %3968 = vmatprep.subr.mxu0 0.0
    %3969 = vmatpush1.xpose.msra.mxu0 0.0
    %3970 = vmatprep.subr.mxu0 0.0
    %3971 = vmatpush1.xpose.msra.mxu0 0.0
    %3972 = vmatprep.subr.mxu0 0.0
    %3973 = vmatpush1.xpose.msra.mxu0 0.0
    %3974 = vmatprep.subr.mxu0 0.0
    %3975 = vmatpush1.xpose.msra.mxu0 0.0
    %3976 = vmatprep.subr.mxu0 0.0
    %3977 = vmatpush1.xpose.msra.mxu0 0.0
    %3978 = vmatprep.subr.mxu0 0.0
    %3979 = vmatpush1.xpose.msra.mxu0 0.0
    %3980 = vmatprep.mubr.f32.mxu0 0.0
    %3981 = vmatmul.mubr.f32.gmra.mrb[0].mxu0 %v3912
    %v3982 = vpop.f32.mrb[0].mxu0
    %v3983 = vadd.f32 0.0, %v3982
    %v3984 = vpop.f32.mrb[0].mxu0
    %3985 = vdwg.mxu0
    %v3986 = vsel %vm215, %v3983, -inf
    %3987 = vmax.xlane.f32.xlu0 %v3986
    %v3988 = vpop.xlane.xlu0 %3987
    %v3989 = vsub.f32 %v3983, %v3988
    %v3990 = vmul.f32 %v3989, 1.442695
    %v3991 = vpow.pop %v3990
    %v3992 = vsel %vm215, %v3991, 0.0
    %3993 = vadd.xlane.f32.xlu0 %v3992
    %v3994 = vpop.xlane.xlu0 %3993
    %v3995 = vrcp.pop %v3994
    %v3996 = vmul.f32 %v3991, %v3995
    %3997 = vrot.lane.b32.xlu0 %v2473, 48
    %v3998 = vpop.permute.xlu0 %3997
    %v4001 = vsel %vm215, %v3996, 0
    %4003 = vmatprep.subr.mxu0 0.0
    %4004 = vmatpush1.msra.mxu0 %v3998
    %4005 = vmatprep.subr.mxu0 0.0
    %4006 = vmatpush1.msra.mxu0 0.0
    %4007 = vmatprep.subr.mxu0 0.0
    %4008 = vmatpush1.msra.mxu0 0.0
    %4009 = vmatprep.subr.mxu0 0.0
    %4010 = vmatpush1.msra.mxu0 0.0
    %4011 = vmatprep.subr.mxu0 0.0
    %4012 = vmatpush1.msra.mxu0 0.0
    %4013 = vmatprep.subr.mxu0 0.0
    %4014 = vmatpush1.msra.mxu0 0.0
    %4015 = vmatprep.subr.mxu0 0.0
    %4016 = vmatpush1.msra.mxu0 0.0
    %4017 = vmatprep.subr.mxu0 0.0
    %4018 = vmatpush1.msra.mxu0 0.0
    %4019 = vmatprep.subr.mxu0 0.0
    %4020 = vmatpush1.msra.mxu0 0.0
    %4021 = vmatprep.subr.mxu0 0.0
    %4022 = vmatpush1.msra.mxu0 0.0
    %4023 = vmatprep.subr.mxu0 0.0
    %4024 = vmatpush1.msra.mxu0 0.0
    %4025 = vmatprep.subr.mxu0 0.0
    %4026 = vmatpush1.msra.mxu0 0.0
    %4027 = vmatprep.subr.mxu0 0.0
    %4028 = vmatpush1.msra.mxu0 0.0
    %4029 = vmatprep.subr.mxu0 0.0
    %4030 = vmatpush1.msra.mxu0 0.0
    %4031 = vmatprep.subr.mxu0 0.0
    %4032 = vmatpush1.msra.mxu0 0.0
    %4033 = vmatprep.subr.mxu0 0.0
    %4034 = vmatpush1.msra.mxu0 0.0
    %4035 = vmatprep.subr.mxu0 0.0
    %4036 = vmatpush1.msra.mxu0 0.0
    %4037 = vmatprep.subr.mxu0 0.0
    %4038 = vmatpush1.msra.mxu0 0.0
    %4039 = vmatprep.subr.mxu0 0.0
    %4040 = vmatpush1.msra.mxu0 0.0
    %4041 = vmatprep.subr.mxu0 0.0
    %4042 = vmatpush1.msra.mxu0 0.0
    %4043 = vmatprep.subr.mxu0 0.0
    %4044 = vmatpush1.msra.mxu0 0.0
    %4045 = vmatprep.subr.mxu0 0.0
    %4046 = vmatpush1.msra.mxu0 0.0
    %4047 = vmatprep.subr.mxu0 0.0
    %4048 = vmatpush1.msra.mxu0 0.0
    %4049 = vmatprep.subr.mxu0 0.0
    %4050 = vmatpush1.msra.mxu0 0.0
    %4051 = vmatprep.subr.mxu0 0.0
    %4052 = vmatpush1.msra.mxu0 0.0
    %4053 = vmatprep.subr.mxu0 0.0
    %4054 = vmatpush1.msra.mxu0 0.0
    %4055 = vmatprep.subr.mxu0 0.0
    %4056 = vmatpush1.msra.mxu0 0.0
    %4057 = vmatprep.subr.mxu0 0.0
    %4058 = vmatpush1.msra.mxu0 0.0
    %4059 = vmatprep.subr.mxu0 0.0
    %4060 = vmatpush1.msra.mxu0 0.0
    %4061 = vmatprep.subr.mxu0 0.0
    %4062 = vmatpush1.msra.mxu0 0.0
    %4063 = vmatprep.subr.mxu0 0.0
    %4064 = vmatpush1.msra.mxu0 0.0
    %4065 = vmatprep.subr.mxu0 0.0
    %4066 = vmatpush1.msra.mxu0 0.0
    %4067 = vmatprep.mubr.f32.mxu0 0.0
    %4068 = vmatmul.mubr.f32.gmra.mrb[0].mxu0 %v4001
    %v4069 = vpop.f32.mrb[0].mxu0
    %v4070 = vadd.f32 0.0, %v4069
    %v4071 = vpop.f32.mrb[0].mxu0
    %4072 = vdwg.mxu0
    %v4074 = vsel %vm215, %v4070, 0
    %4076 = vmatprep.subr.mxu0 0.0
    %4077 = vmatpush1.msra.mxu0 %v103
    %4078 = vmatprep.subr.mxu0 0.0
    %4079 = vmatpush1.msra.mxu0 0.0
    %4080 = vmatprep.subr.mxu0 0.0
    %4081 = vmatpush1.msra.mxu0 0.0
    %4082 = vmatprep.subr.mxu0 0.0
    %4083 = vmatpush1.msra.mxu0 0.0
    %4084 = vmatprep.subr.mxu0 0.0
    %4085 = vmatpush1.msra.mxu0 0.0
    %4086 = vmatprep.subr.mxu0 0.0
    %4087 = vmatpush1.msra.mxu0 0.0
    %4088 = vmatprep.subr.mxu0 0.0
    %4089 = vmatpush1.msra.mxu0 0.0
    %4090 = vmatprep.subr.mxu0 0.0
    %4091 = vmatpush1.msra.mxu0 0.0
    %4092 = vmatprep.subr.mxu0 0.0
    %4093 = vmatpush1.msra.mxu0 0.0
    %4094 = vmatprep.subr.mxu0 0.0
    %4095 = vmatpush1.msra.mxu0 0.0
    %4096 = vmatprep.subr.mxu0 0.0
    %4097 = vmatpush1.msra.mxu0 0.0
    %4098 = vmatprep.subr.mxu0 0.0
    %4099 = vmatpush1.msra.mxu0 0.0
    %4100 = vmatprep.subr.mxu0 0.0
    %4101 = vmatpush1.msra.mxu0 0.0
    %4102 = vmatprep.subr.mxu0 0.0
    %4103 = vmatpush1.msra.mxu0 0.0
    %4104 = vmatprep.subr.mxu0 0.0
    %4105 = vmatpush1.msra.mxu0 0.0
    %4106 = vmatprep.subr.mxu0 0.0
    %4107 = vmatpush1.msra.mxu0 0.0
    %4108 = vmatprep.subr.mxu0 0.0
    %4109 = vmatpush1.msra.mxu0 0.0
    %4110 = vmatprep.subr.mxu0 0.0
    %4111 = vmatpush1.msra.mxu0 0.0
    %4112 = vmatprep.subr.mxu0 0.0
    %4113 = vmatpush1.msra.mxu0 0.0
    %4114 = vmatprep.subr.mxu0 0.0
    %4115 = vmatpush1.msra.mxu0 0.0
    %4116 = vmatprep.subr.mxu0 0.0
    %4117 = vmatpush1.msra.mxu0 0.0
    %4118 = vmatprep.subr.mxu0 0.0
    %4119 = vmatpush1.msra.mxu0 0.0
    %4120 = vmatprep.subr.mxu0 0.0
    %4121 = vmatpush1.msra.mxu0 0.0
    %4122 = vmatprep.subr.mxu0 0.0
    %4123 = vmatpush1.msra.mxu0 0.0
    %4124 = vmatprep.subr.mxu0 0.0
    %4125 = vmatpush1.msra.mxu0 0.0
    %4126 = vmatprep.subr.mxu0 0.0
    %4127 = vmatpush1.msra.mxu0 0.0
    %4128 = vmatprep.subr.mxu0 0.0
    %4129 = vmatpush1.msra.mxu0 0.0
    %4130 = vmatprep.subr.mxu0 0.0
    %4131 = vmatpush1.msra.mxu0 0.0
    %4132 = vmatprep.subr.mxu0 0.0
    %4133 = vmatpush1.msra.mxu0 0.0
    %4134 = vmatprep.subr.mxu0 0.0
    %4135 = vmatpush1.msra.mxu0 0.0
    %4136 = vmatprep.subr.mxu0 0.0
    %4137 = vmatpush1.msra.mxu0 0.0
    %4138 = vmatprep.subr.mxu0 0.0
    %4139 = vmatpush1.msra.mxu0 0.0
    %4140 = vmatprep.mubr.f32.mxu0 0.0
    %4141 = vmatmul.mubr.f32.gmra.mrb[0].mxu0 %v4074
    %v4142 = vpop.f32.mrb[0].mxu0
    %v4143 = vadd.f32 0.0, %v4142
    %v4144 = vpop.f32.mrb[0].mxu0
    %4145 = vdwg.mxu0
    %v4146 = vadd.f32 %v3907, %v4143
    %4147 = vrot.lane.b32.xlu0 %v2473, 104
    %v4148 = vpop.permute.xlu0 %4147
    %4149 = vrot.lane.b32.xlu0 %v2473, 72
    %v4150 = vpop.permute.xlu0 %4149
    %v4151 = vsel %vm215, %v4148, 0
    %v4153 = vsel %vm215, %v4150, 0
    %4155 = vmatprep.subr.mxu0 0.0
    %4156 = vmatpush1.xpose.msra.mxu0 %v4153
    %4157 = vmatprep.subr.mxu0 0.0
    %4158 = vmatpush1.xpose.msra.mxu0 0.0
    %4159 = vmatprep.subr.mxu0 0.0
    %4160 = vmatpush1.xpose.msra.mxu0 0.0
    %4161 = vmatprep.subr.mxu0 0.0
    %4162 = vmatpush1.xpose.msra.mxu0 0.0
    %4163 = vmatprep.subr.mxu0 0.0
    %4164 = vmatpush1.xpose.msra.mxu0 0.0
    %4165 = vmatprep.subr.mxu0 0.0
    %4166 = vmatpush1.xpose.msra.mxu0 0.0
    %4167 = vmatprep.subr.mxu0 0.0
    %4168 = vmatpush1.xpose.msra.mxu0 0.0
    %4169 = vmatprep.subr.mxu0 0.0
    %4170 = vmatpush1.xpose.msra.mxu0 0.0
    %4171 = vmatprep.subr.mxu0 0.0
    %4172 = vmatpush1.xpose.msra.mxu0 0.0
    %4173 = vmatprep.subr.mxu0 0.0
    %4174 = vmatpush1.xpose.msra.mxu0 0.0
    %4175 = vmatprep.subr.mxu0 0.0
    %4176 = vmatpush1.xpose.msra.mxu0 0.0
    %4177 = vmatprep.subr.mxu0 0.0
    %4178 = vmatpush1.xpose.msra.mxu0 0.0
    %4179 = vmatprep.subr.mxu0 0.0
    %4180 = vmatpush1.xpose.msra.mxu0 0.0
    %4181 = vmatprep.subr.mxu0 0.0
    %4182 = vmatpush1.xpose.msra.mxu0 0.0
    %4183 = vmatprep.subr.mxu0 0.0
    %4184 = vmatpush1.xpose.msra.mxu0 0.0
    %4185 = vmatprep.subr.mxu0 0.0
    %4186 = vmatpush1.xpose.msra.mxu0 0.0
    %4187 = vmatprep.subr.mxu0 0.0
    %4188 = vmatpush1.xpose.msra.mxu0 0.0
    %4189 = vmatprep.subr.mxu0 0.0
    %4190 = vmatpush1.xpose.msra.mxu0 0.0
    %4191 = vmatprep.subr.mxu0 0.0
    %4192 = vmatpush1.xpose.msra.mxu0 0.0
    %4193 = vmatprep.subr.mxu0 0.0
    %4194 = vmatpush1.xpose.msra.mxu0 0.0
    %4195 = vmatprep.subr.mxu0 0.0
    %4196 = vmatpush1.xpose.msra.mxu0 0.0
    %4197 = vmatprep.subr.mxu0 0.0
    %4198 = vmatpush1.xpose.msra.mxu0 0.0
    %4199 = vmatprep.subr.mxu0 0.0
    %4200 = vmatpush1.xpose.msra.mxu0 0.0
    %4201 = vmatprep.subr.mxu0 0.0
    %4202 = vmatpush1.xpose.msra.mxu0 0.0
    %4203 = vmatprep.subr.mxu0 0.0
    %4204 = vmatpush1.xpose.msra.mxu0 0.0
    %4205 = vmatprep.subr.mxu0 0.0
    %4206 = vmatpush1.xpose.msra.mxu0 0.0
    %4207 = vmatprep.subr.mxu0 0.0
    %4208 = vmatpush1.xpose.msra.mxu0 0.0
    %4209 = vmatprep.subr.mxu0 0.0
    %4210 = vmatpush1.xpose.msra.mxu0 0.0
    %4211 = vmatprep.subr.mxu0 0.0
    %4212 = vmatpush1.xpose.msra.mxu0 0.0
    %4213 = vmatprep.subr.mxu0 0.0
    %4214 = vmatpush1.xpose.msra.mxu0 0.0
    %4215 = vmatprep.subr.mxu0 0.0
    %4216 = vmatpush1.xpose.msra.mxu0 0.0
    %4217 = vmatprep.subr.mxu0 0.0
    %4218 = vmatpush1.xpose.msra.mxu0 0.0
    %4219 = vmatprep.mubr.f32.mxu0 0.0
    %4220 = vmatmul.mubr.f32.gmra.mrb[0].mxu0 %v4151
    %v4221 = vpop.f32.mrb[0].mxu0
    %v4222 = vadd.f32 0.0, %v4221
    %v4223 = vpop.f32.mrb[0].mxu0
    %4224 = vdwg.mxu0
    %v4225 = vsel %vm215, %v4222, -inf
    %4226 = vmax.xlane.f32.xlu0 %v4225
    %v4227 = vpop.xlane.xlu0 %4226
    %v4228 = vsub.f32 %v4222, %v4227
    %v4229 = vmul.f32 %v4228, 1.442695
    %v4230 = vpow.pop %v4229
    %v4231 = vsel %vm215, %v4230, 0.0
    %4232 = vadd.xlane.f32.xlu0 %v4231
    %v4233 = vpop.xlane.xlu0 %4232
    %v4234 = vrcp.pop %v4233
    %v4235 = vmul.f32 %v4230, %v4234
    %4236 = vrot.lane.b32.xlu0 %v2473, 40
    %v4237 = vpop.permute.xlu0 %4236
    %v4240 = vsel %vm215, %v4235, 0
    %4242 = vmatprep.subr.mxu0 0.0
    %4243 = vmatpush1.msra.mxu0 %v4237
    %4244 = vmatprep.subr.mxu0 0.0
    %4245 = vmatpush1.msra.mxu0 0.0
    %4246 = vmatprep.subr.mxu0 0.0
    %4247 = vmatpush1.msra.mxu0 0.0
    %4248 = vmatprep.subr.mxu0 0.0
    %4249 = vmatpush1.msra.mxu0 0.0
    %4250 = vmatprep.subr.mxu0 0.0
    %4251 = vmatpush1.msra.mxu0 0.0
    %4252 = vmatprep.subr.mxu0 0.0
    %4253 = vmatpush1.msra.mxu0 0.0
    %4254 = vmatprep.subr.mxu0 0.0
    %4255 = vmatpush1.msra.mxu0 0.0
    %4256 = vmatprep.subr.mxu0 0.0
    %4257 = vmatpush1.msra.mxu0 0.0
    %4258 = vmatprep.subr.mxu0 0.0
    %4259 = vmatpush1.msra.mxu0 0.0
    %4260 = vmatprep.subr.mxu0 0.0
    %4261 = vmatpush1.msra.mxu0 0.0
    %4262 = vmatprep.subr.mxu0 0.0
    %4263 = vmatpush1.msra.mxu0 0.0
    %4264 = vmatprep.subr.mxu0 0.0
    %4265 = vmatpush1.msra.mxu0 0.0
    %4266 = vmatprep.subr.mxu0 0.0
    %4267 = vmatpush1.msra.mxu0 0.0
    %4268 = vmatprep.subr.mxu0 0.0
    %4269 = vmatpush1.msra.mxu0 0.0
    %4270 = vmatprep.subr.mxu0 0.0
    %4271 = vmatpush1.msra.mxu0 0.0
    %4272 = vmatprep.subr.mxu0 0.0
    %4273 = vmatpush1.msra.mxu0 0.0
    %4274 = vmatprep.subr.mxu0 0.0
    %4275 = vmatpush1.msra.mxu0 0.0
    %4276 = vmatprep.subr.mxu0 0.0
    %4277 = vmatpush1.msra.mxu0 0.0
    %4278 = vmatprep.subr.mxu0 0.0
    %4279 = vmatpush1.msra.mxu0 0.0
    %4280 = vmatprep.subr.mxu0 0.0
    %4281 = vmatpush1.msra.mxu0 0.0
    %4282 = vmatprep.subr.mxu0 0.0
    %4283 = vmatpush1.msra.mxu0 0.0
    %4284 = vmatprep.subr.mxu0 0.0
    %4285 = vmatpush1.msra.mxu0 0.0
    %4286 = vmatprep.subr.mxu0 0.0
    %4287 = vmatpush1.msra.mxu0 0.0
    %4288 = vmatprep.subr.mxu0 0.0
    %4289 = vmatpush1.msra.mxu0 0.0
    %4290 = vmatprep.subr.mxu0 0.0
    %4291 = vmatpush1.msra.mxu0 0.0
    %4292 = vmatprep.subr.mxu0 0.0
    %4293 = vmatpush1.msra.mxu0 0.0
    %4294 = vmatprep.subr.mxu0 0.0
    %4295 = vmatpush1.msra.mxu0 0.0
    %4296 = vmatprep.subr.mxu0 0.0
    %4297 = vmatpush1.msra.mxu0 0.0
    %4298 = vmatprep.subr.mxu0 0.0
    %4299 = vmatpush1.msra.mxu0 0.0
    %4300 = vmatprep.subr.mxu0 0.0
    %4301 = vmatpush1.msra.mxu0 0.0
    %4302 = vmatprep.subr.mxu0 0.0
    %4303 = vmatpush1.msra.mxu0 0.0
    %4304 = vmatprep.subr.mxu0 0.0
    %4305 = vmatpush1.msra.mxu0 0.0
    %4306 = vmatprep.mubr.f32.mxu0 0.0
    %4307 = vmatmul.mubr.f32.gmra.mrb[0].mxu0 %v4240
    %v4308 = vpop.f32.mrb[0].mxu0
    %v4309 = vadd.f32 0.0, %v4308
    %v4310 = vpop.f32.mrb[0].mxu0
    %4311 = vdwg.mxu0
    %v4313 = vsel %vm215, %v4309, 0
    %4315 = vmatprep.subr.mxu0 0.0
    %4316 = vmatpush1.msra.mxu0 %v104
    %4317 = vmatprep.subr.mxu0 0.0
    %4318 = vmatpush1.msra.mxu0 0.0
    %4319 = vmatprep.subr.mxu0 0.0
    %4320 = vmatpush1.msra.mxu0 0.0
    %4321 = vmatprep.subr.mxu0 0.0
    %4322 = vmatpush1.msra.mxu0 0.0
    %4323 = vmatprep.subr.mxu0 0.0
    %4324 = vmatpush1.msra.mxu0 0.0
    %4325 = vmatprep.subr.mxu0 0.0
    %4326 = vmatpush1.msra.mxu0 0.0
    %4327 = vmatprep.subr.mxu0 0.0
    %4328 = vmatpush1.msra.mxu0 0.0
    %4329 = vmatprep.subr.mxu0 0.0
    %4330 = vmatpush1.msra.mxu0 0.0
    %4331 = vmatprep.subr.mxu0 0.0
    %4332 = vmatpush1.msra.mxu0 0.0
    %4333 = vmatprep.subr.mxu0 0.0
    %4334 = vmatpush1.msra.mxu0 0.0
    %4335 = vmatprep.subr.mxu0 0.0
    %4336 = vmatpush1.msra.mxu0 0.0
    %4337 = vmatprep.subr.mxu0 0.0
    %4338 = vmatpush1.msra.mxu0 0.0
    %4339 = vmatprep.subr.mxu0 0.0
    %4340 = vmatpush1.msra.mxu0 0.0
    %4341 = vmatprep.subr.mxu0 0.0
    %4342 = vmatpush1.msra.mxu0 0.0
    %4343 = vmatprep.subr.mxu0 0.0
    %4344 = vmatpush1.msra.mxu0 0.0
    %4345 = vmatprep.subr.mxu0 0.0
    %4346 = vmatpush1.msra.mxu0 0.0
    %4347 = vmatprep.subr.mxu0 0.0
    %4348 = vmatpush1.msra.mxu0 0.0
    %4349 = vmatprep.subr.mxu0 0.0
    %4350 = vmatpush1.msra.mxu0 0.0
    %4351 = vmatprep.subr.mxu0 0.0
    %4352 = vmatpush1.msra.mxu0 0.0
    %4353 = vmatprep.subr.mxu0 0.0
    %4354 = vmatpush1.msra.mxu0 0.0
    %4355 = vmatprep.subr.mxu0 0.0
    %4356 = vmatpush1.msra.mxu0 0.0
    %4357 = vmatprep.subr.mxu0 0.0
    %4358 = vmatpush1.msra.mxu0 0.0
    %4359 = vmatprep.subr.mxu0 0.0
    %4360 = vmatpush1.msra.mxu0 0.0
    %4361 = vmatprep.subr.mxu0 0.0
    %4362 = vmatpush1.msra.mxu0 0.0
    %4363 = vmatprep.subr.mxu0 0.0
    %4364 = vmatpush1.msra.mxu0 0.0
    %4365 = vmatprep.subr.mxu0 0.0
    %4366 = vmatpush1.msra.mxu0 0.0
    %4367 = vmatprep.subr.mxu0 0.0
    %4368 = vmatpush1.msra.mxu0 0.0
    %4369 = vmatprep.subr.mxu0 0.0
    %4370 = vmatpush1.msra.mxu0 0.0
    %4371 = vmatprep.subr.mxu0 0.0
    %4372 = vmatpush1.msra.mxu0 0.0
    %4373 = vmatprep.subr.mxu0 0.0
    %4374 = vmatpush1.msra.mxu0 0.0
    %4375 = vmatprep.subr.mxu0 0.0
    %4376 = vmatpush1.msra.mxu0 0.0
    %4377 = vmatprep.subr.mxu0 0.0
    %4378 = vmatpush1.msra.mxu0 0.0
    %4379 = vmatprep.mubr.f32.mxu0 0.0
    %4380 = vmatmul.mubr.f32.gmra.mrb[0].mxu0 %v4313
    %v4381 = vpop.f32.mrb[0].mxu0
    %v4382 = vadd.f32 0.0, %v4381
    %v4383 = vpop.f32.mrb[0].mxu0
    %4384 = vdwg.mxu0
    %v4385 = vadd.f32 %v4146, %v4382
    %v4386 = vadd.f32 %v2393, %v3430
    %v4387 = vadd.f32 %v2394, %v4385
    %v4388 = vsel %vm130, %v4386, 0.0
    %4389 = vadd.xlane.f32.xlu0 %v4388
    %v4390 = vpop.xlane.xlu0 %4389
    %v4391 = vsel %vm130, %v4387, 0.0
    %4392 = vadd.xlane.f32.xlu0 %v4391
    %v4393 = vpop.xlane.xlu0 %4392
    %v4394 = vmul.f32 %v4390, %v2137
    %v4395 = vmul.f32 %v4393, %v2137
    %v4396 = vsub.f32 %v4386, %v4394
    %v4397 = vsub.f32 %v4387, %v4395
    %v4398 = vmul.f32 %v4396, %v4396
    %v4399 = vmul.f32 %v4397, %v4397
    %v4400 = vsel %vm130, %v4398, 0.0
    %4401 = vadd.xlane.f32.xlu0 %v4400
    %v4402 = vpop.xlane.xlu0 %4401
    %v4403 = vsel %vm130, %v4399, 0.0
    %4404 = vadd.xlane.f32.xlu0 %v4403
    %v4405 = vpop.xlane.xlu0 %4404
    %v4406 = vmul.f32 %v4402, %v2137
    %v4407 = vmul.f32 %v4405, %v2137
    %v4408 = vadd.f32 %v4406, 1e-05
    %v4409 = vadd.f32 %v4407, 1e-05
    %v4410 = vrsqrt.pop %v4408
    %v4411 = vrsqrt.pop %v4409
    %v4412 = vmul.f32 %v4396, %v4410
    %v4413 = vmul.f32 %v4397, %v4411
    %v4414 = vmul.f32 %v4412, %v2162
    %v4415 = vmul.f32 %v4413, %v2162
    %v4416 = vadd.f32 %v4414, %v2170
    %v4417 = vadd.f32 %v4415, %v2170
    %v4419 = vsel %vm130, %v4416, 0
    %v4422 = vsel %vm130, %v4417, 0
    %4424 = vmatprep.subr.mxu0 0.0
    %4425 = vmatpush1.msra.mxu0 %v108
    %4426 = vmatprep.subr.mxu0 0.0
    %4427 = vmatpush1.msra.mxu0 %v109
    %4428 = vmatprep.subr.mxu0 0.0
    %4429 = vmatpush1.msra.mxu0 %v110
    %4430 = vmatprep.subr.mxu0 0.0
    %4431 = vmatpush1.msra.mxu0 %v111
    %4432 = vmatprep.subr.mxu0 0.0
    %4433 = vmatpush1.msra.mxu0 0.0
    %4434 = vmatprep.subr.mxu0 0.0
    %4435 = vmatpush1.msra.mxu0 0.0
    %4436 = vmatprep.subr.mxu0 0.0
    %4437 = vmatpush1.msra.mxu0 0.0
    %4438 = vmatprep.subr.mxu0 0.0
    %4439 = vmatpush1.msra.mxu0 0.0
    %4440 = vmatprep.subr.mxu0 0.0
    %4441 = vmatpush1.msra.mxu0 0.0
    %4442 = vmatprep.subr.mxu0 0.0
    %4443 = vmatpush1.msra.mxu0 0.0
    %4444 = vmatprep.subr.mxu0 0.0
    %4445 = vmatpush1.msra.mxu0 0.0
    %4446 = vmatprep.subr.mxu0 0.0
    %4447 = vmatpush1.msra.mxu0 0.0
    %4448 = vmatprep.subr.mxu0 0.0
    %4449 = vmatpush1.msra.mxu0 0.0
    %4450 = vmatprep.subr.mxu0 0.0
    %4451 = vmatpush1.msra.mxu0 0.0
    %4452 = vmatprep.subr.mxu0 0.0
    %4453 = vmatpush1.msra.mxu0 0.0
    %4454 = vmatprep.subr.mxu0 0.0
    %4455 = vmatpush1.msra.mxu0 0.0
    %4456 = vmatprep.subr.mxu0 0.0
    %4457 = vmatpush1.msra.mxu0 0.0
    %4458 = vmatprep.subr.mxu0 0.0
    %4459 = vmatpush1.msra.mxu0 0.0
    %4460 = vmatprep.subr.mxu0 0.0
    %4461 = vmatpush1.msra.mxu0 0.0
    %4462 = vmatprep.subr.mxu0 0.0
    %4463 = vmatpush1.msra.mxu0 0.0
    %4464 = vmatprep.subr.mxu0 0.0
    %4465 = vmatpush1.msra.mxu0 0.0
    %4466 = vmatprep.subr.mxu0 0.0
    %4467 = vmatpush1.msra.mxu0 0.0
    %4468 = vmatprep.subr.mxu0 0.0
    %4469 = vmatpush1.msra.mxu0 0.0
    %4470 = vmatprep.subr.mxu0 0.0
    %4471 = vmatpush1.msra.mxu0 0.0
    %4472 = vmatprep.subr.mxu0 0.0
    %4473 = vmatpush1.msra.mxu0 0.0
    %4474 = vmatprep.subr.mxu0 0.0
    %4475 = vmatpush1.msra.mxu0 0.0
    %4476 = vmatprep.subr.mxu0 0.0
    %4477 = vmatpush1.msra.mxu0 0.0
    %4478 = vmatprep.subr.mxu0 0.0
    %4479 = vmatpush1.msra.mxu0 0.0
    %4480 = vmatprep.subr.mxu0 0.0
    %4481 = vmatpush1.msra.mxu0 0.0
    %4482 = vmatprep.subr.mxu0 0.0
    %4483 = vmatpush1.msra.mxu0 0.0
    %4484 = vmatprep.subr.mxu0 0.0
    %4485 = vmatpush1.msra.mxu0 0.0
    %4486 = vmatprep.subr.mxu0 0.0
    %4487 = vmatpush1.msra.mxu0 0.0
    %4488 = vmatprep.mubr.f32.mxu0 0.0
    %4489 = vmatmul.mubr.f32.gmra.mrb[0].mxu0 %v4419
    %v4490 = vpop.f32.mrb[0].mxu0
    %v4491 = vadd.f32 %v2178, %v4490
    %v4492 = vpop.f32.mrb[0].mxu0
    %4493 = vmatprep.mubr.f32.mxu0 0.0
    %4494 = vmatmul.mubr.f32.gmra.mrb[0].mxu0 %v4422
    %v4495 = vpop.f32.mrb[0].mxu0
    %v4496 = vadd.f32 %v2178, %v4495
    %v4497 = vpop.f32.mrb[0].mxu0
    %4498 = vdwg.mxu0
    %v4499 = vmax.f32 %v4491, 0.0
    %v4500 = vmax.f32 %v4496, 0.0
    %v4502 = vsel %vm2269, %v4499, 0
    %v4505 = vsel %vm2269, %v4500, 0
    %4507 = vmatprep.subr.mxu0 0.0
    %4508 = vmatpush1.msra.mxu0 %v113
    %4509 = vmatprep.subr.mxu0 0.0
    %4510 = vmatpush1.msra.mxu0 %v114
    %4511 = vmatprep.subr.mxu0 0.0
    %4512 = vmatpush1.msra.mxu0 %v115
    %4513 = vmatprep.subr.mxu0 0.0
    %4514 = vmatpush1.msra.mxu0 %v116
    %4515 = vmatprep.subr.mxu0 0.0
    %4516 = vmatpush1.msra.mxu0 %v117
    %4517 = vmatprep.subr.mxu0 0.0
    %4518 = vmatpush1.msra.mxu0 %v118
    %4519 = vmatprep.subr.mxu0 0.0
    %4520 = vmatpush1.msra.mxu0 %v119
    %4521 = vmatprep.subr.mxu0 0.0
    %4522 = vmatpush1.msra.mxu0 %v120
    %4523 = vmatprep.subr.mxu0 0.0
    %4524 = vmatpush1.msra.mxu0 0.0
    %4525 = vmatprep.subr.mxu0 0.0
    %4526 = vmatpush1.msra.mxu0 0.0
    %4527 = vmatprep.subr.mxu0 0.0
    %4528 = vmatpush1.msra.mxu0 0.0
    %4529 = vmatprep.subr.mxu0 0.0
    %4530 = vmatpush1.msra.mxu0 0.0
    %4531 = vmatprep.subr.mxu0 0.0
    %4532 = vmatpush1.msra.mxu0 0.0
    %4533 = vmatprep.subr.mxu0 0.0
    %4534 = vmatpush1.msra.mxu0 0.0
    %4535 = vmatprep.subr.mxu0 0.0
    %4536 = vmatpush1.msra.mxu0 0.0
    %4537 = vmatprep.subr.mxu0 0.0
    %4538 = vmatpush1.msra.mxu0 0.0
    %4539 = vmatprep.subr.mxu0 0.0
    %4540 = vmatpush1.msra.mxu0 0.0
    %4541 = vmatprep.subr.mxu0 0.0
    %4542 = vmatpush1.msra.mxu0 0.0
    %4543 = vmatprep.subr.mxu0 0.0
    %4544 = vmatpush1.msra.mxu0 0.0
    %4545 = vmatprep.subr.mxu0 0.0
    %4546 = vmatpush1.msra.mxu0 0.0
    %4547 = vmatprep.subr.mxu0 0.0
    %4548 = vmatpush1.msra.mxu0 0.0
    %4549 = vmatprep.subr.mxu0 0.0
    %4550 = vmatpush1.msra.mxu0 0.0
    %4551 = vmatprep.subr.mxu0 0.0
    %4552 = vmatpush1.msra.mxu0 0.0
    %4553 = vmatprep.subr.mxu0 0.0
    %4554 = vmatpush1.msra.mxu0 0.0
    %4555 = vmatprep.subr.mxu0 0.0
    %4556 = vmatpush1.msra.mxu0 0.0
    %4557 = vmatprep.subr.mxu0 0.0
    %4558 = vmatpush1.msra.mxu0 0.0
    %4559 = vmatprep.subr.mxu0 0.0
    %4560 = vmatpush1.msra.mxu0 0.0
    %4561 = vmatprep.subr.mxu0 0.0
    %4562 = vmatpush1.msra.mxu0 0.0
    %4563 = vmatprep.subr.mxu0 0.0
    %4564 = vmatpush1.msra.mxu0 0.0
    %4565 = vmatprep.subr.mxu0 0.0
    %4566 = vmatpush1.msra.mxu0 0.0
    %4567 = vmatprep.subr.mxu0 0.0
    %4568 = vmatpush1.msra.mxu0 0.0
    %4569 = vmatprep.subr.mxu0 0.0
    %4570 = vmatpush1.msra.mxu0 0.0
    %4571 = vmatprep.mubr.f32.mxu0 0.0
    %4572 = vmatmul.mubr.f32.gmra.mrb[0].mxu0 %v4502
    %v4573 = vpop.f32.mrb[0].mxu0
    %v4574 = vadd.f32 %v2267, %v4573
    %v4575 = vpop.f32.mrb[0].mxu0
    %4576 = vmatprep.mubr.f32.mxu0 0.0
    %4577 = vmatmul.mubr.f32.gmra.mrb[0].mxu0 %v4505
    %v4578 = vpop.f32.mrb[0].mxu0
    %v4579 = vadd.f32 %v2267, %v4578
    %v4580 = vpop.f32.mrb[0].mxu0
    %4581 = vdwg.mxu0
    %v4582 = vadd.f32 %v4416, %v4574
    %v4583 = vadd.f32 %v4417, %v4579
    %v4584 = vsel %vm130, %v4582, 0.0
    %4585 = vadd.xlane.f32.xlu0 %v4584
    %v4586 = vpop.xlane.xlu0 %4585
    %v4587 = vsel %vm130, %v4583, 0.0
    %4588 = vadd.xlane.f32.xlu0 %v4587
    %v4589 = vpop.xlane.xlu0 %4588
    %v4590 = vmul.f32 %v4586, %v2137
    %v4591 = vmul.f32 %v4589, %v2137
    %v4592 = vsub.f32 %v4582, %v4590
    %v4593 = vsub.f32 %v4583, %v4591
    %v4594 = vmul.f32 %v4592, %v4592
    %v4595 = vmul.f32 %v4593, %v4593
    %v4596 = vsel %vm130, %v4594, 0.0
    %4597 = vadd.xlane.f32.xlu0 %v4596
    %v4598 = vpop.xlane.xlu0 %4597
    %v4599 = vsel %vm130, %v4595, 0.0
    %4600 = vadd.xlane.f32.xlu0 %v4599
    %v4601 = vpop.xlane.xlu0 %4600
    %v4602 = vmul.f32 %v4598, %v2137
    %v4603 = vmul.f32 %v4601, %v2137
    %v4604 = vadd.f32 %v4602, 1e-05
    %v4605 = vadd.f32 %v4603, 1e-05
    %v4606 = vrsqrt.pop %v4604
    %v4607 = vrsqrt.pop %v4605
    %v4608 = vmul.f32 %v4592, %v4606
    %v4609 = vmul.f32 %v4593, %v4607
    %v4610 = vmul.f32 %v4608, %v2383
    %v4611 = vmul.f32 %v4609, %v2383
    %v4612 = vadd.f32 %v4610, %v2391
    %v4613 = vadd.f32 %v4611, %v2391
    %4614 = vst.msk [vmem:[#allocation10] sm:$0xff] %vm130, %v4612
    %4615 = vst.msk [vmem:[#allocation10 + $0x8] sm:$0xff] %vm130, %v4613
    // Predicated region
    $region70: #{tpu_custom_call.1} parent=1 // pred_check
      _
    $region71: #{tpu_custom_call.1} parent=1 // pred_check_branch
      %4617 = sbr.rel (0) target = $region73
    $region72: #{tpu_custom_call.1} parent=1 // pred_region
      %s4619 = ssub.s32 256, 256
      %4620 = vsyncadd [#allocation4], %s4619
      %s4621 = sshll.u32 [#allocation10], 4
      %s4622 = int_to_ptr.vmem [resolvable:$true] %s4621
      %4627 = dma.vmem_to_hbm [thread:$0]  %s4622, 256, %s13, [#allocation4], 128, 128, 8
    $region73: #{tpu_custom_call.1} parent=1 // pred_fallthru
      _
    // Predicated region
    $region74: #{tpu_custom_call.1} parent=1 // pred_check
      _
    $region75: #{tpu_custom_call.1} parent=1 // pred_check_branch
      %4629 = sbr.rel (0) target = $region77
    $region76: #{tpu_custom_call.1} parent=1 // pred_region
      %4630 = dma.done [#allocation4], 256
    $region77: #{tpu_custom_call.1} parent=1 // pred_fallthru
      _
    %4631 = vsyncpa [#allocation3], 1
    %4632 = vsyncpa [#allocation6], 1
    %4633 = vsyncpa [#allocation9], 1
    %4634 = vsyncpa [#allocation4], 1

</llo_original>
